<compile_context>
chip_gen: v7x
topology: tpu7x:2x2x1
jax: 0.10.0
libtpu: 0.0.40
codegen_flags: <defaults>
</compile_context>

<pallas_src>
import functools

import jax
import jax.numpy as jnp
from jax import lax
from jax.experimental import pallas as pl
from jax.experimental.pallas import tpu as pltpu


def _round_up(x, m):
    return (x + m - 1) // m * m


def _pick_batch_block(b, cap=8):
    """Largest divisor of b that is <= cap, preferring to keep >= 2 grid steps
    (so both TensorCores on a 2-TC chip stay busy)."""
    divisors = [d for d in range(1, b + 1) if b % d == 0 and d <= cap]
    best = max(divisors)
    if b // best < 2:
        keep_two = [d for d in divisors if b // d >= 2]
        if keep_two:
            best = max(keep_two)
    return best


def _ede_kernel(x_ref, g_ref, wt_ref, o_ref, *,
                inv_hw, wp, ks, dilation, bt, n_in, n_out, n_ker,
                off_out, off_k, use_bf16_matmul):
    """`bt` batch elements per grid step.

    x_ref : (bt, C, HWp_pad)    padded input, channels on sublanes, lane-dense flat spatial
    g_ref : (Rg, C)             fused gate matrix [band ; woc@band ; wk@band], row groups 8-padded
    wt_ref: (K, ks*ks*O, C)     conv taps stacked row-wise, row = (di*ks + dj)*O + o
    o_ref : (bt, O, HWp_pad)    full-map conv output (valid window sliced by the wrapper)
    """
    hwp = x_ref.shape[-1]

    # Constant operands: load once per grid step (shared across the bt elements).
    gmat = g_ref[...]                                                    # (Rg, C)
    w_all = wt_ref[...]                                                  # (K, ks*ks*O, C)

    for bi in range(bt):
        x = x_ref[bi].astype(jnp.float32)                                # (C, HWp_pad)

        # ---- attention: pool -> one fused gate matmul -> three gates ----
        pooled = jnp.sum(x, axis=1, keepdims=True) * inv_hw              # (C, 1) (pad zeros add 0)
        gates = jnp.dot(gmat, pooled,
                        preferred_element_type=jnp.float32)              # (Rg, 1)
        y = gates[0:n_in]                                                # (C, 1)
        o_logit = gates[off_out:off_out + n_out]                         # (O, 1)
        k_logit = gates[off_k:off_k + n_ker]                             # (K, 1)

        g_in = 1.0 / (1.0 + jnp.exp(-y))                                 # (C, 1) sigmoid
        g_out = 1.0 / (1.0 + jnp.exp(-o_logit))                          # (O, 1) sigmoid
        k_shift = k_logit - jnp.max(k_logit, axis=0, keepdims=True)
        k_exp = jnp.exp(k_shift)
        k_att = k_exp / jnp.sum(k_exp, axis=0, keepdims=True)            # (K, 1) softmax over K

        # ---- in-channel gate + kernel-attention aggregation (hoisted, once over K) ----
        xs = x * g_in                                                    # (C, HWp_pad)
        w_agg = w_all[0] * k_att[0:1, 0:1]                               # (ks*ks*O, C)
        for k in range(1, n_ker):
            w_agg = w_agg + w_all[k] * k_att[k:k + 1, 0:1]

        if use_bf16_matmul:
            w_mm = w_agg.astype(jnp.bfloat16)
            x_mm = xs.astype(jnp.bfloat16)
        else:
            w_mm = w_agg
            x_mm = xs

        # ---- ONE fused MXU matmul for all ks*ks taps ----
        big = jnp.dot(w_mm, x_mm, preferred_element_type=jnp.float32)    # (ks*ks*O, HWp_pad)

        # ---- lane-roll alignment + accumulation of the ks*ks output slabs ----
        acc = big[0:n_out]                                               # tap (0,0): offset 0
        for t in range(1, ks * ks):
            di, dj = divmod(t, ks)
            d = dilation * (di * wp + dj)
            slab = big[t * n_out:(t + 1) * n_out]
            # aligned[n] = slab[n + d]; wrap-around only lands in rows/cols the
            # wrapper slices away (max valid flat index + max tap offset < HWp).
            acc = acc + pltpu.roll(slab, hwp - d, axis=1)

        acc = acc * g_out                                                # out-channel gate
        o_ref[bi] = acc.astype(o_ref.dtype)


def ede_forward(x, w1d, w_oc, w_k, weight, *, stride=1, padding=0,
                dilation=1, groups=1, use_bf16_matmul=False, batch_block=None):
    """x: (B, C, H, W).
    w1d:    (1, 1, 3)        Conv1d(1, 1, 3, padding=1, bias=False) weight
    w_oc:   (O, C, 1, 1)     out_channel_conv2d weight
    w_k:    (K, C, 1, 1)     kernel_conv2d weight
    weight: (K, O, C//groups, ks, ks)  EDE.weight
    """
    B, C, H, W = x.shape
    K, O, Cg, ks, ks2 = weight.shape
    assert ks2 == ks
    if groups != 1 or stride != 1:
        # TODO(synk): stride>1 / groups>1 conv variants not implemented in the Pallas path.
        raise NotImplementedError("ede_forward Pallas path supports stride=1, groups=1")
    assert Cg == C

    Hp, Wp = H + 2 * padding, W + 2 * padding
    Hout = Hp - dilation * (ks - 1)
    Wout = Wp - dilation * (ks - 1)
    HWp = Hp * Wp
    HWp_pad = _round_up(HWp, 128)          # lane-dense in/out -> unmasked vst

    bt = batch_block if batch_block is not None else _pick_batch_block(B)
    assert B % bt == 0
    grid_b = B // bt

    xp = x
    if padding:
        xp = jnp.pad(x, ((0, 0), (0, 0), (padding, padding), (padding, padding)))
    x_flat = xp.reshape(B, C, HWp)
    if HWp_pad != HWp:
        x_flat = jnp.pad(x_flat, ((0, 0), (0, 0), (0, HWp_pad - HWp)))
    out_dtype = x.dtype

    w3 = w1d.reshape(3).astype(jnp.float32)
    woc = w_oc.reshape(O, C).astype(jnp.float32)
    wk = w_k.reshape(K, C).astype(jnp.float32)

    # (C, C) band matrix: y[i] = w3[0]*p[i-1] + w3[1]*p[i] + w3[2]*p[i+1], zero padded.
    row = jnp.arange(C)[:, None]
    col = jnp.arange(C)[None, :]
    band = (w3[0] * (col == row - 1)
            + w3[1] * (col == row)
            + w3[2] * (col == row + 1)).astype(jnp.float32)

    # Fused gate matrix: [band ; woc@band ; wk@band], each row group padded to 8 sublanes.
    Cp, Op, Kp = _round_up(C, 8), _round_up(O, 8), _round_up(K, 8)
    Rg = Cp + Op + Kp
    g_fused = jnp.zeros((Rg, C), jnp.float32)
    g_fused = g_fused.at[:C].set(band)
    g_fused = g_fused.at[Cp:Cp + O].set(woc @ band)
    g_fused = g_fused.at[Cp + Op:Cp + Op + K].set(wk @ band)

    # Stacked taps: (K, ks*ks*O, C), row (di*ks + dj)*O + o == weight[k, o, c, di, dj].
    w_stack = jnp.transpose(weight.astype(jnp.float32), (0, 3, 4, 1, 2))
    w_stack = w_stack.reshape(K, ks * ks * O, C)

    kernel = functools.partial(
        _ede_kernel, inv_hw=1.0 / (H * W), wp=Wp, ks=ks, dilation=dilation,
        bt=bt, n_in=C, n_out=O, n_ker=K, off_out=Cp, off_k=Cp + Op,
        use_bf16_matmul=use_bf16_matmul)

    # VMEM budget derived from actual block sizes (fits v7x's 64 MiB with headroom).
    itemsize = jnp.dtype(out_dtype).itemsize
    blk_bytes = (bt * (C + O) * HWp_pad * itemsize            # x / out blocks
                 + Rg * C * 4 + K * ks * ks * O * C * 4)      # weight blocks
    temps = bt and (C + (ks * ks + 2) * O) * HWp_pad * 4      # xs / big / acc temporaries
    vmem_limit = int(min(max(2 * blk_bytes + temps + (4 << 20), 16 << 20), 64 << 20))

    cost = pl.CostEstimate(
        flops=2 * B * ks * ks * O * C * HWp_pad + 2 * B * Rg * C,
        transcendentals=B * (C + O + K),
        bytes_accessed=itemsize * B * (C + O) * HWp_pad
                       + 4 * (K * ks * ks * O * C + Rg * C),
    )

    out_flat = pl.pallas_call(
        kernel,
        out_shape=jax.ShapeDtypeStruct((B, O, HWp_pad), out_dtype),
        grid_spec=pltpu.PrefetchScalarGridSpec(
            num_scalar_prefetch=0,
            grid=(grid_b,),
            in_specs=[
                pl.BlockSpec((bt, C, HWp_pad), lambda b: (b, 0, 0)),       # x slab
                pl.BlockSpec((Rg, C), lambda b: (0, 0)),                   # fused gate matrix
                pl.BlockSpec((K, ks * ks * O, C), lambda b: (0, 0, 0)),    # stacked conv taps
            ],
            out_specs=pl.BlockSpec((bt, O, HWp_pad), lambda b: (b, 0, 0)),
        ),
        compiler_params=pltpu.CompilerParams(
            dimension_semantics=("parallel",),     # batch grid shards across TCs
            vmem_limit_bytes=vmem_limit,
        ),
        cost_estimate=cost,
    )(x_flat, g_fused, w_stack)

    out = out_flat[:, :, :HWp].reshape(B, O, Hp, Wp)[:, :, :Hout, :Wout]
    return out


def ede_reference(x, w1d, w_oc, w_k, weight, *, stride=1, padding=0,
                  dilation=1, groups=1):
    """Pure-JAX reference mirroring the PyTorch EDE.forward."""
    B, C, H, W = x.shape
    K, O, Cg, ks, _ = weight.shape
    w3 = w1d.reshape(3)
    woc = w_oc.reshape(O, C)
    wk = w_k.reshape(K, C)

    pooled = jnp.mean(x, axis=(2, 3))                                   # (B, C)
    p_pad = jnp.pad(pooled, ((0, 0), (1, 1)))
    y = (w3[0] * p_pad[:, 0:C] + w3[1] * p_pad[:, 1:C + 1]
         + w3[2] * p_pad[:, 2:C + 2])                                   # (B, C)
    in_att = jax.nn.sigmoid(y)                                          # (B, C)
    out_att = jax.nn.sigmoid(y @ woc.T)                                 # (B, O)
    kern_att = jax.nn.softmax(y @ wk.T, axis=-1)                        # (B, K)

    xs = x * in_att[:, :, None, None]
    agg_w = jnp.einsum('bk,kocij->bocij', kern_att, weight)             # (B, O, C, ks, ks)

    def conv_one(xb, wb):
        return lax.conv_general_dilated(
            xb[None], wb, window_strides=(stride, stride),
            padding=[(padding, padding), (padding, padding)],
            rhs_dilation=(dilation, dilation),
            dimension_numbers=('NCHW', 'OIHW', 'NCHW'),
            feature_group_count=groups,
            precision=lax.Precision.HIGHEST)[0]

    out = jax.vmap(conv_one)(xs, agg_w)                                 # (B, O, Hout, Wout)
    return out * out_att[:, :, None, None]


if __name__ == "__main__":
    jax.config.update("jax_default_matmul_precision", "highest")

    B, C, O, K, ks = 2, 8, 16, 2, 3
    H = W = 16
    stride, padding, dilation, groups = 1, 1, 1, 1

    key = jax.random.PRNGKey(0)
    k1, k2, k3, k4, k5 = jax.random.split(key, 5)
    x = jax.random.normal(k1, (B, C, H, W), dtype=jnp.float32)
    w1d = jax.random.normal(k2, (1, 1, 3), dtype=jnp.float32) * 0.5
    w_oc = jax.random.normal(k3, (O, C, 1, 1), dtype=jnp.float32) * 0.3
    w_k = jax.random.normal(k4, (K, C, 1, 1), dtype=jnp.float32) * 0.3
    weight = jax.random.normal(k5, (K, O, C // groups, ks, ks), dtype=jnp.float32) * 0.2

    out = ede_forward(x, w1d, w_oc, w_k, weight,
                      stride=stride, padding=padding, dilation=dilation, groups=groups)
    out = jax.block_until_ready(out)

    ref = ede_reference(x, w1d, w_oc, w_k, weight,
                        stride=stride, padding=padding, dilation=dilation, groups=groups)
    ref = jax.block_until_ready(ref)

    assert out.shape == ref.shape, (out.shape, ref.shape)
    max_err = float(jnp.max(jnp.abs(out - ref)))
    assert jnp.allclose(out, ref, atol=1e-3, rtol=1e-3), f"mismatch vs reference: {max_err}"

    print("KERNEL_OK")
</pallas_src>

<mosaic_0001>
module attributes {stable_mosaic.version = 11 : i64} {
  func.func @_ede_kernel(%arg0: i32, %arg1: memref<1x8x384xf32, #tpu.memory_space<vmem>>, %arg2: memref<32x8xf32, #tpu.memory_space<vmem>>, %arg3: memref<2x144x8xf32, #tpu.memory_space<vmem>>, %arg4: memref<1x16x384xf32, #tpu.memory_space<vmem>>) attributes {dimension_semantics = [#tpu.dimension_semantics<parallel>], iteration_bounds = array<i64: 2>, scalar_prefetch = 0 : i64, scratch_operands = 0 : i64, tpu.core_type = #tpu.core_type<tc>, window_params = [{transform_indices = @transform_0, window_bounds = array<i64: 1, 8, 384>}, {pipeline_mode = #tpu.pipeline_mode<synchronous>, transform_indices = @transform_1, window_bounds = array<i64: 32, 8>}, {pipeline_mode = #tpu.pipeline_mode<synchronous>, transform_indices = @transform_2, window_bounds = array<i64: 2, 144, 8>}, {transform_indices = @transform_3, window_bounds = array<i64: 1, 16, 384>}]} {
    %c0 = arith.constant 0 : index
    %c0_0 = arith.constant 0 : index
    %0 = vector.load %arg2[%c0, %c0_0] : memref<32x8xf32, #tpu.memory_space<vmem>>, vector<32x8xf32>
    %c0_1 = arith.constant 0 : index
    %c0_2 = arith.constant 0 : index
    %c0_3 = arith.constant 0 : index
    %1 = vector.load %arg3[%c0_1, %c0_2, %c0_3] : memref<2x144x8xf32, #tpu.memory_space<vmem>>, vector<2x144x8xf32>
    %c0_4 = arith.constant 0 : index
    %c0_5 = arith.constant 0 : index
    %c0_6 = arith.constant 0 : index
    %2 = vector.load %arg1[%c0_4, %c0_5, %c0_6] : memref<1x8x384xf32, #tpu.memory_space<vmem>>, vector<1x8x384xf32>
    %3 = vector.shape_cast %2 : vector<1x8x384xf32> to vector<8x384xf32>
    %cst = arith.constant dense<0.000000e+00> : vector<8xf32>
    %4 = vector.multi_reduction <add>, %3, %cst [1] : vector<8x384xf32> to vector<8xf32>
    %5 = vector.shape_cast %4 : vector<8xf32> to vector<8x1xf32>
    %cst_7 = arith.constant 3.906250e-03 : f32
    %6 = vector.broadcast %cst_7 : f32 to vector<8x1xf32>
    %7 = arith.mulf %5, %6 : vector<8x1xf32>
    %cst_8 = arith.constant dense<0.000000e+00> : vector<32x1xf32>
    %8 = tpu.matmul %0, %7, %cst_8 {dimension_numbers = #tpu.dot_dimension_numbers<[1], [0], [0], [1], [0, 0, 1, 1], [], []>, precision = #tpu.contract_precision<fp32>} : vector<32x8xf32>, vector<8x1xf32>, vector<32x1xf32> -> vector<32x1xf32>
    %9 = vector.extract_strided_slice %8 {offsets = [0, 0], sizes = [8, 1], strides = [1, 1]} : vector<32x1xf32> to vector<8x1xf32>
    %10 = vector.extract_strided_slice %8 {offsets = [8, 0], sizes = [16, 1], strides = [1, 1]} : vector<32x1xf32> to vector<16x1xf32>
    %11 = vector.extract_strided_slice %8 {offsets = [24, 0], sizes = [2, 1], strides = [1, 1]} : vector<32x1xf32> to vector<2x1xf32>
    %cst_9 = arith.constant 0.000000e+00 : f32
    %12 = vector.broadcast %cst_9 : f32 to vector<8x1xf32>
    %13 = arith.subf %12, %9 : vector<8x1xf32>
    %14 = math.exp %13 : vector<8x1xf32>
    %cst_10 = arith.constant 1.000000e+00 : f32
    %15 = vector.broadcast %cst_10 : f32 to vector<8x1xf32>
    %16 = arith.addf %15, %14 : vector<8x1xf32>
    %cst_11 = arith.constant 1.000000e+00 : f32
    %17 = vector.broadcast %cst_11 : f32 to vector<8x1xf32>
    %18 = arith.divf %17, %16 : vector<8x1xf32>
    %cst_12 = arith.constant 0.000000e+00 : f32
    %19 = vector.broadcast %cst_12 : f32 to vector<16x1xf32>
    %20 = arith.subf %19, %10 : vector<16x1xf32>
    %21 = math.exp %20 : vector<16x1xf32>
    %cst_13 = arith.constant 1.000000e+00 : f32
    %22 = vector.broadcast %cst_13 : f32 to vector<16x1xf32>
    %23 = arith.addf %22, %21 : vector<16x1xf32>
    %cst_14 = arith.constant 1.000000e+00 : f32
    %24 = vector.broadcast %cst_14 : f32 to vector<16x1xf32>
    %25 = arith.divf %24, %23 : vector<16x1xf32>
    %cst_15 = arith.constant dense<0xFF800000> : vector<1xf32>
    %26 = vector.multi_reduction <maximumf>, %11, %cst_15 [0] : vector<2x1xf32> to vector<1xf32>
    %27 = vector.shape_cast %26 : vector<1xf32> to vector<1x1xf32>
    %28 = vector.broadcast %27 : vector<1x1xf32> to vector<2x1xf32>
    %29 = arith.subf %11, %28 : vector<2x1xf32>
    %30 = math.exp %29 : vector<2x1xf32>
    %cst_16 = arith.constant dense<0.000000e+00> : vector<1xf32>
    %31 = vector.multi_reduction <add>, %30, %cst_16 [0] : vector<2x1xf32> to vector<1xf32>
    %32 = vector.shape_cast %31 : vector<1xf32> to vector<1x1xf32>
    %33 = vector.broadcast %32 : vector<1x1xf32> to vector<2x1xf32>
    %34 = arith.divf %30, %33 : vector<2x1xf32>
    %35 = vector.broadcast %18 : vector<8x1xf32> to vector<8x384xf32>
    %36 = arith.mulf %3, %35 : vector<8x384xf32>
    %37 = vector.extract_strided_slice %1 {offsets = [0, 0, 0], sizes = [1, 144, 8], strides = [1, 1, 1]} : vector<2x144x8xf32> to vector<1x144x8xf32>
    %38 = vector.shape_cast %37 : vector<1x144x8xf32> to vector<144x8xf32>
    %39 = vector.extract_strided_slice %34 {offsets = [0, 0], sizes = [1, 1], strides = [1, 1]} : vector<2x1xf32> to vector<1x1xf32>
    %40 = vector.broadcast %39 : vector<1x1xf32> to vector<144x8xf32>
    %41 = arith.mulf %38, %40 : vector<144x8xf32>
    %42 = vector.extract_strided_slice %1 {offsets = [1, 0, 0], sizes = [1, 144, 8], strides = [1, 1, 1]} : vector<2x144x8xf32> to vector<1x144x8xf32>
    %43 = vector.shape_cast %42 : vector<1x144x8xf32> to vector<144x8xf32>
    %44 = vector.extract_strided_slice %34 {offsets = [1, 0], sizes = [1, 1], strides = [1, 1]} : vector<2x1xf32> to vector<1x1xf32>
    %45 = vector.broadcast %44 : vector<1x1xf32> to vector<144x8xf32>
    %46 = arith.mulf %43, %45 : vector<144x8xf32>
    %47 = arith.addf %41, %46 : vector<144x8xf32>
    %cst_17 = arith.constant dense<0.000000e+00> : vector<144x384xf32>
    %48 = tpu.matmul %47, %36, %cst_17 {dimension_numbers = #tpu.dot_dimension_numbers<[1], [0], [0], [1], [0, 0, 1, 1], [], []>, precision = #tpu.contract_precision<fp32>} : vector<144x8xf32>, vector<8x384xf32>, vector<144x384xf32> -> vector<144x384xf32>
    %49 = vector.extract_strided_slice %48 {offsets = [0, 0], sizes = [16, 384], strides = [1, 1]} : vector<144x384xf32> to vector<16x384xf32>
    %50 = vector.extract_strided_slice %48 {offsets = [16, 0], sizes = [16, 384], strides = [1, 1]} : vector<144x384xf32> to vector<16x384xf32>
    %c383_i32 = arith.constant 383 : i32
    %51 = tpu.dynamic_rotate %50 by %c383_i32 dim 1 : vector<16x384xf32>, i32 -> vector<16x384xf32>
    %52 = arith.addf %49, %51 : vector<16x384xf32>
    %53 = vector.extract_strided_slice %48 {offsets = [32, 0], sizes = [16, 384], strides = [1, 1]} : vector<144x384xf32> to vector<16x384xf32>
    %c382_i32 = arith.constant 382 : i32
    %54 = tpu.dynamic_rotate %53 by %c382_i32 dim 1 : vector<16x384xf32>, i32 -> vector<16x384xf32>
    %55 = arith.addf %52, %54 : vector<16x384xf32>
    %56 = vector.extract_strided_slice %48 {offsets = [48, 0], sizes = [16, 384], strides = [1, 1]} : vector<144x384xf32> to vector<16x384xf32>
    %c366_i32 = arith.constant 366 : i32
    %57 = tpu.dynamic_rotate %56 by %c366_i32 dim 1 : vector<16x384xf32>, i32 -> vector<16x384xf32>
    %58 = arith.addf %55, %57 : vector<16x384xf32>
    %59 = vector.extract_strided_slice %48 {offsets = [64, 0], sizes = [16, 384], strides = [1, 1]} : vector<144x384xf32> to vector<16x384xf32>
    %c365_i32 = arith.constant 365 : i32
    %60 = tpu.dynamic_rotate %59 by %c365_i32 dim 1 : vector<16x384xf32>, i32 -> vector<16x384xf32>
    %61 = arith.addf %58, %60 : vector<16x384xf32>
    %62 = vector.extract_strided_slice %48 {offsets = [80, 0], sizes = [16, 384], strides = [1, 1]} : vector<144x384xf32> to vector<16x384xf32>
    %c364_i32 = arith.constant 364 : i32
    %63 = tpu.dynamic_rotate %62 by %c364_i32 dim 1 : vector<16x384xf32>, i32 -> vector<16x384xf32>
    %64 = arith.addf %61, %63 : vector<16x384xf32>
    %65 = vector.extract_strided_slice %48 {offsets = [96, 0], sizes = [16, 384], strides = [1, 1]} : vector<144x384xf32> to vector<16x384xf32>
    %c348_i32 = arith.constant 348 : i32
    %66 = tpu.dynamic_rotate %65 by %c348_i32 dim 1 : vector<16x384xf32>, i32 -> vector<16x384xf32>
    %67 = arith.addf %64, %66 : vector<16x384xf32>
    %68 = vector.extract_strided_slice %48 {offsets = [112, 0], sizes = [16, 384], strides = [1, 1]} : vector<144x384xf32> to vector<16x384xf32>
    %c347_i32 = arith.constant 347 : i32
    %69 = tpu.dynamic_rotate %68 by %c347_i32 dim 1 : vector<16x384xf32>, i32 -> vector<16x384xf32>
    %70 = arith.addf %67, %69 : vector<16x384xf32>
    %71 = vector.extract_strided_slice %48 {offsets = [128, 0], sizes = [16, 384], strides = [1, 1]} : vector<144x384xf32> to vector<16x384xf32>
    %c346_i32 = arith.constant 346 : i32
    %72 = tpu.dynamic_rotate %71 by %c346_i32 dim 1 : vector<16x384xf32>, i32 -> vector<16x384xf32>
    %73 = arith.addf %70, %72 : vector<16x384xf32>
    %74 = vector.broadcast %25 : vector<16x1xf32> to vector<16x384xf32>
    %75 = arith.mulf %73, %74 : vector<16x384xf32>
    %c0_18 = arith.constant 0 : index
    %c0_19 = arith.constant 0 : index
    %c0_20 = arith.constant 0 : index
    %76 = vector.load %arg4[%c0_18, %c0_19, %c0_20] : memref<1x16x384xf32, #tpu.memory_space<vmem>>, vector<1x16x384xf32>
    %77 = vector.shape_cast %76 : vector<1x16x384xf32> to vector<16x384xf32>
    %78 = vector.shape_cast %75 : vector<16x384xf32> to vector<1x16x384xf32>
    tpu.vector_store %arg4[%c0_18, %c0_19, %c0_20], %78 {strides = array<i32>} : memref<1x16x384xf32, #tpu.memory_space<vmem>>, vector<1x16x384xf32>,
    return
  }
  func.func @transform_0(%arg0: i32) -> (i32, i32, i32) {
    %c0_i32 = arith.constant 0 : i32
    %c0_i32_0 = arith.constant 0 : i32
    %c0_i32_1 = arith.constant 0 : i32
    return %arg0, %c0_i32, %c0_i32_0 : i32, i32, i32
  }
  func.func @transform_1(%arg0: i32) -> (i32, i32) {
    %c0_i32 = arith.constant 0 : i32
    %c0_i32_0 = arith.constant 0 : i32
    %c0_i32_1 = arith.constant 0 : i32
    return %c0_i32, %c0_i32_0 : i32, i32
  }
  func.func @transform_2(%arg0: i32) -> (i32, i32, i32) {
    %c0_i32 = arith.constant 0 : i32
    %c0_i32_0 = arith.constant 0 : i32
    %c0_i32_1 = arith.constant 0 : i32
    %c0_i32_2 = arith.constant 0 : i32
    return %c0_i32, %c0_i32_0, %c0_i32_1 : i32, i32, i32
  }
  func.func @transform_3(%arg0: i32) -> (i32, i32, i32) {
    %c0_i32 = arith.constant 0 : i32
    %c0_i32_0 = arith.constant 0 : i32
    %c0_i32_1 = arith.constant 0 : i32
    return %arg0, %c0_i32, %c0_i32_0 : i32, i32, i32
  }
}

</mosaic_0001>

<llo_original>
// kernel: tpu_custom_call.1
$region0: #{tpu_custom_call.1}
  #allocation0 [shape = 'u32[]', space=smem, size = 0x4, offset = 0x4, fixed_abs, tag = 'smem constant byte address 0x4 - core index']
  #allocation1 [shape = 'u32[144,128]{1,0:T(1,128)}', space=vmem, size = 0x12000, scoped, tag = 'internal scratch']
  %s0 = inlined_call_operand.vmem [shape: f32[2,8,384], index: 0, kind: input, shape index: {}]
  %s1 = inlined_call_operand.vmem [shape: f32[32,8], index: 1, kind: input, shape index: {}]
  %s2 = inlined_call_operand.vmem [shape: f32[2,144,8], index: 2, kind: input, shape index: {}]
  %s3 = inlined_call_operand.hbm [shape: f32[2,16,384], index: 3, kind: output, shape index: {}]
  %s4 = sld [smem:[#allocation0]]
  $region45: #{tpu_custom_call.1} parent=0
    _
  %s6 = ssub.s32 1, %s4
  %s7 = scalar_select 0, %s6, %s4
  $region1: #{tpu_custom_call.1} parent=0
    #allocation2 [shape = 'u8[49152]{0}', space=vmem, size = 0xc000, scoped, tag = 'output window, operand 0']
    #allocation3 [shape = 's32[2]{0}', space=sflag, size = 0x8, scoped, tag = 'scoped memory for tpu_custom_call.1']
    %8 = vsyncpa [#allocation3], 0
    %s9 = scalar_lea.sflag [#allocation3], 1
    %10 = vsyncpa %s9, 0
    loop: start=0, step=1, limit=4
    $region2: #{tpu_custom_call.1} parent=1 // loop_pre_header
      _
    $region3: #{tpu_custom_call.1} parent=1 // loop_header
      %s12 = sphi 0, %s16
      %p13 = scmp.ge.s32.totalorder %s12, 4
      %s22 = sphi 0, %s24
      %s25 = sphi 0, %s22
      %s26 = sphi 0, %s25
      %s42 = sphi 0, %s26
      %s46 = sphi 0, %s46
      %s48 = sphi 0, %s46
      %s49 = sphi 0, %s48
      %s63 = sphi 0, %s49
      %s67 = sphi 0, %s67
      %s69 = sphi 0, %s67
      %s70 = sphi 0, %s69
      %s84 = sphi 0, %s70
      %s90 = sphi 0, %s92
      %s93 = sphi 0, %s90
      %s94 = sphi 0, %s93
      %s110 = sphi 0, %s94
    $region4: #{tpu_custom_call.1} parent=1 // loop_header_branch
      %15 = sbr.rel (%p13) target = $region8
    $region5: #{tpu_custom_call.1} parent=1 // loop_body
      %s17 = ssub.s32 %s12, 1
      %s18 = ssub.s32 %s12, 2
      %s19 = sadd.s32 %s12, 1
      %s20 = ssub.s32 %s12, %s19
      %p21 = scmp.eq.s32.totalorder %s20, 0
      %s23 = sadd.s32 %s22, 1
      %s24 = scalar_select %p21, %s22, %s23
      %p27 = pneg %p21
      %p28 = scmp.eq.s32.totalorder %s12, 1
      %p29 = por %p27, %p28
      %p30 = scmp.ne.s32.totalorder %s22, %s25
      %p31 = scmp.eq.s32.totalorder %s12, 0
      %p32 = por %p30, %p31
      %p33 = scmp.ne.s32.totalorder %s22, %s25
      %p34 = scmp.eq.s32.totalorder %s17, 1
      %p35 = por %p33, %p34
      %p36 = scmp.ne.s32.totalorder %s25, %s26
      %p37 = scmp.eq.s32.totalorder %s17, 0
      %p38 = por %p36, %p37
      %p39 = scmp.ne.s32.totalorder %s25, %s26
      %p40 = scmp.eq.s32.totalorder %s18, 1
      %p41 = por %p39, %p40
      %p43 = scmp.ne.s32.totalorder %s26, %s42
      %p44 = scmp.eq.s32.totalorder %s18, 0
      %p45 = por %p43, %p44
      %s47 = sadd.s32 %s46, 1
      %p50 = scmp.eq.s32.totalorder %s12, 1
      %p51 = scmp.ne.s32.totalorder %s46, %s48
      %p52 = scmp.eq.s32.totalorder %s12, 0
      %p53 = por %p51, %p52
      %p54 = scmp.ne.s32.totalorder %s46, %s48
      %p55 = scmp.eq.s32.totalorder %s17, 1
      %p56 = por %p54, %p55
      %p57 = scmp.ne.s32.totalorder %s48, %s49
      %p58 = scmp.eq.s32.totalorder %s17, 0
      %p59 = por %p57, %p58
      %p60 = scmp.ne.s32.totalorder %s48, %s49
      %p61 = scmp.eq.s32.totalorder %s18, 1
      %p62 = por %p60, %p61
      %p64 = scmp.ne.s32.totalorder %s49, %s63
      %p65 = scmp.eq.s32.totalorder %s18, 0
      %p66 = por %p64, %p65
      %s68 = sadd.s32 %s67, 1
      %p71 = scmp.eq.s32.totalorder %s12, 1
      %p72 = scmp.ne.s32.totalorder %s67, %s69
      %p73 = scmp.eq.s32.totalorder %s12, 0
      %p74 = por %p72, %p73
      %p75 = scmp.ne.s32.totalorder %s67, %s69
      %p76 = scmp.eq.s32.totalorder %s17, 1
      %p77 = por %p75, %p76
      %p78 = scmp.ne.s32.totalorder %s69, %s70
      %p79 = scmp.eq.s32.totalorder %s17, 0
      %p80 = por %p78, %p79
      %p81 = scmp.ne.s32.totalorder %s69, %s70
      %p82 = scmp.eq.s32.totalorder %s18, 1
      %p83 = por %p81, %p82
      %p85 = scmp.ne.s32.totalorder %s70, %s84
      %p86 = scmp.eq.s32.totalorder %s18, 0
      %p87 = por %p85, %p86
      %s88 = ssub.s32 %s12, %s19
      %p89 = scmp.eq.s32.totalorder %s88, 0
      %s91 = sadd.s32 %s90, 1
      %s92 = scalar_select %p89, %s90, %s91
      %p95 = pneg %p89
      %p96 = scmp.eq.s32.totalorder %s12, 1
      %p97 = por %p95, %p96
      %p98 = scmp.ne.s32.totalorder %s90, %s93
      %p99 = scmp.eq.s32.totalorder %s12, 0
      %p100 = por %p98, %p99
      %p101 = scmp.ne.s32.totalorder %s90, %s93
      %p102 = scmp.eq.s32.totalorder %s17, 1
      %p103 = por %p101, %p102
      %p104 = scmp.ne.s32.totalorder %s93, %s94
      %p105 = scmp.eq.s32.totalorder %s17, 0
      %p106 = por %p104, %p105
      %p107 = scmp.ne.s32.totalorder %s93, %s94
      %p108 = scmp.eq.s32.totalorder %s18, 1
      %p109 = por %p107, %p108
      %p111 = scmp.ne.s32.totalorder %s94, %s110
      %p112 = scmp.eq.s32.totalorder %s18, 0
      %p113 = por %p111, %p112
      %p114 = scmp.le.s32.totalorder 1, %s12
      %p115 = scmp.lt.s32.totalorder %s12, 3
      %p116 = pnand %p114, %p115
      %p117 = pneg %p116
      // Predicated region
      $region9: #{tpu_custom_call.1} parent=5 // pred_check
        _
      $region10: #{tpu_custom_call.1} parent=5 // pred_check_branch
        %119 = sbr.rel (%p116) target = $region12
      $region11: #{tpu_custom_call.1} parent=5 // pred_region
        %s120 = ssub.s32 %s12, 1
        // Predicated region
        $region13: #{tpu_custom_call.1} parent=11 // pred_check
          %p121 = pneg %p59
        $region14: #{tpu_custom_call.1} parent=11 // pred_check_branch
          %123 = sbr.rel (%p121) target = $region16
        $region15: #{tpu_custom_call.1} parent=11 // pred_region
          _
        $region16: #{tpu_custom_call.1} parent=11 // pred_fallthru
          _
        // Predicated region
        $region17: #{tpu_custom_call.1} parent=11 // pred_check
          %p124 = pneg %p80
        $region18: #{tpu_custom_call.1} parent=11 // pred_check_branch
          %126 = sbr.rel (%p124) target = $region20
        $region19: #{tpu_custom_call.1} parent=11 // pred_region
          _
        $region20: #{tpu_custom_call.1} parent=11 // pred_fallthru
          _
      $region12: #{tpu_custom_call.1} parent=5 // pred_fallthru
        _
      %p127 = scmp.lt.s32.totalorder %s12, 2
      // Predicated region
      $region21: #{tpu_custom_call.1} parent=5 // pred_check
        %p128 = pneg %p127
      $region22: #{tpu_custom_call.1} parent=5 // pred_check_branch
        %130 = sbr.rel (%p128) target = $region24
      $region23: #{tpu_custom_call.1} parent=5 // pred_region
        // Predicated region
        $region25: #{tpu_custom_call.1} parent=23 // pred_check
          %p131 = pneg %p32
        $region26: #{tpu_custom_call.1} parent=23 // pred_check_branch
          %133 = sbr.rel (%p131) target = $region28
        $region27: #{tpu_custom_call.1} parent=23 // pred_region
          %p134 = scmp.lt.s32.totalorder %s12, 1
          %s135 = scalar_select %p134, %s12, 1
          %s136 = smul.addr %s135, 3
          %s137 = smul.addr %s136, 8
          %s138 = scalar_lea.vmem %s0, %s137
        $region28: #{tpu_custom_call.1} parent=23 // pred_fallthru
          _
      $region24: #{tpu_custom_call.1} parent=5 // pred_fallthru
        _
      %p139 = scmp.le.s32.totalorder 1, %s12
      %p140 = scmp.lt.s32.totalorder %s12, 3
      %p141 = pnand %p139, %p140
      %p142 = pneg %p141
      // Predicated region
      $region29: #{tpu_custom_call.1} parent=5 // pred_check
        _
      $region30: #{tpu_custom_call.1} parent=5 // pred_check_branch
        %144 = sbr.rel (%p141) target = $region32
      $region31: #{tpu_custom_call.1} parent=5 // pred_region
        %s145 = ssub.s32 %s12, 1
        %p146 = scmp.lt.s32.totalorder %s17, 1
        %s147 = scalar_select %p146, %s17, 1
        %s148 = smul.addr %s147, 3
        %s149 = smul.addr %s148, 8
        %s150 = scalar_lea.vmem %s0, %s149
        %p151 = pneg %p38
        %p152 = pneg %p35
        %p153 = pneg %p59
        %p154 = pneg %p56
        %p155 = pneg %p80
        %p156 = pneg %p77
        %p157 = pneg %p106
        %p158 = pneg %p103
        %s159 = sand.u32 %s93, 1
        %s160 = scalar_lea.sflag [#allocation3], %s159
        %s161 = sand.u32 %s93, 1
        %s162 = smul.addr %s161, 48
        %s163 = scalar_lea.vmem [#allocation2], %s162
        %p164 = scmp.lt.s32.totalorder %s17, 1
        %s165 = scalar_select %p164, %s17, 1
        %s166 = smul.addr %s165, 3
        %s167 = smul.addr %s166, 8
        %s168 = scalar_lea.vmem %s0, %s167
        %v169 = vld [vmem:[%s1] sm:$0xff]
        %v170 = vld [vmem:[%s1 + $0x8] sm:$0xff]
        %v171 = vld [vmem:[%s1 + $0x10] sm:$0xff]
        %v172 = vld [vmem:[%s1 + $0x18] sm:$0xff]
        %v173 = vld [vmem:[%s2] sm:$0xff]
        %v174 = vld [vmem:[%s2 + $0x8] sm:$0xff]
        %v175 = vld [vmem:[%s2 + $0x10] sm:$0xff]
        %v176 = vld [vmem:[%s2 + $0x18] sm:$0xff]
        %v177 = vld [vmem:[%s2 + $0x20] sm:$0xff]
        %v178 = vld [vmem:[%s2 + $0x28] sm:$0xff]
        %v179 = vld [vmem:[%s2 + $0x30] sm:$0xff]
        %v180 = vld [vmem:[%s2 + $0x38] sm:$0xff]
        %v181 = vld [vmem:[%s2 + $0x40] sm:$0xff]
        %v182 = vld [vmem:[%s2 + $0x48] sm:$0xff]
        %v183 = vld [vmem:[%s2 + $0x50] sm:$0xff]
        %v184 = vld [vmem:[%s2 + $0x58] sm:$0xff]
        %v185 = vld [vmem:[%s2 + $0x60] sm:$0xff]
        %v186 = vld [vmem:[%s2 + $0x68] sm:$0xff]
        %v187 = vld [vmem:[%s2 + $0x70] sm:$0xff]
        %v188 = vld [vmem:[%s2 + $0x78] sm:$0xff]
        %v189 = vld [vmem:[%s2 + $0x80] sm:$0xff]
        %v190 = vld [vmem:[%s2 + $0x88] sm:$0xff]
        %v191 = vld [vmem:[%s2 + $0x90] sm:$0xff]
        %v192 = vld [vmem:[%s2 + $0x98] sm:$0xff]
        %v193 = vld [vmem:[%s2 + $0xa0] sm:$0xff]
        %v194 = vld [vmem:[%s2 + $0xa8] sm:$0xff]
        %v195 = vld [vmem:[%s2 + $0xb0] sm:$0xff]
        %v196 = vld [vmem:[%s2 + $0xb8] sm:$0xff]
        %v197 = vld [vmem:[%s2 + $0xc0] sm:$0xff]
        %v198 = vld [vmem:[%s2 + $0xc8] sm:$0xff]
        %v199 = vld [vmem:[%s2 + $0xd0] sm:$0xff]
        %v200 = vld [vmem:[%s2 + $0xd8] sm:$0xff]
        %v201 = vld [vmem:[%s2 + $0xe0] sm:$0xff]
        %v202 = vld [vmem:[%s2 + $0xe8] sm:$0xff]
        %v203 = vld [vmem:[%s2 + $0xf0] sm:$0xff]
        %v204 = vld [vmem:[%s2 + $0xf8] sm:$0xff]
        %v205 = vld [vmem:[%s2 + $0x100] sm:$0xff]
        %v206 = vld [vmem:[%s2 + $0x108] sm:$0xff]
        %v207 = vld [vmem:[%s2 + $0x110] sm:$0xff]
        %v208 = vld [vmem:[%s2 + $0x118] sm:$0xff]
        %v209 = vld [vmem:[%s168] sm:$0xff]
        %v210 = vld [vmem:[%s168 + $0x8] sm:$0xff]
        %v211 = vld [vmem:[%s168 + $0x10] sm:$0xff]
        %v212 = vadd.f32 %v209, %v210
        %v213 = vadd.f32 %v212, %v211
        %214 = vadd.xlane.f32.xlu0 %v213
        %v215 = vpop.xlane.xlu0 %214
        %v216 = vmul.f32 %v215, 0.00390625
        %vm217 = vcmask 64512
        %v219 = vsel %vm217, %v169, 0
        %v222 = vsel %vm217, %v170, 0
        %v225 = vsel %vm217, %v171, 0
        %v228 = vsel %vm217, %v172, 0
        %230 = vmatprep.subr.mxu0 0.0
        %v231 = vand.u32 %v216, 4294901760
        %232 = vmatpush1.msra.mxu0 %v231
        %233 = vmatprep.subr.mxu0 0.0
        %234 = vmatpush1.msra.mxu0 0.0
        %235 = vmatprep.subr.mxu0 0.0
        %236 = vmatpush1.msra.mxu0 0.0
        %237 = vmatprep.subr.mxu0 0.0
        %238 = vmatpush1.msra.mxu0 0.0
        %239 = vmatprep.subr.mxu0 0.0
        %240 = vmatpush1.msra.mxu0 0.0
        %241 = vmatprep.subr.mxu0 0.0
        %242 = vmatpush1.msra.mxu0 0.0
        %243 = vmatprep.subr.mxu0 0.0
        %244 = vmatpush1.msra.mxu0 0.0
        %245 = vmatprep.subr.mxu0 0.0
        %246 = vmatpush1.msra.mxu0 0.0
        %247 = vmatprep.subr.mxu0 0.0
        %248 = vmatpush1.msra.mxu0 0.0
        %249 = vmatprep.subr.mxu0 0.0
        %250 = vmatpush1.msra.mxu0 0.0
        %251 = vmatprep.subr.mxu0 0.0
        %252 = vmatpush1.msra.mxu0 0.0
        %253 = vmatprep.subr.mxu0 0.0
        %254 = vmatpush1.msra.mxu0 0.0
        %255 = vmatprep.subr.mxu0 0.0
        %256 = vmatpush1.msra.mxu0 0.0
        %257 = vmatprep.subr.mxu0 0.0
        %258 = vmatpush1.msra.mxu0 0.0
        %259 = vmatprep.subr.mxu0 0.0
        %260 = vmatpush1.msra.mxu0 0.0
        %261 = vmatprep.subr.mxu0 0.0
        %262 = vmatpush1.msra.mxu0 0.0
        %263 = vmatprep.subr.mxu0 0.0
        %264 = vmatpush1.msra.mxu0 0.0
        %265 = vmatprep.subr.mxu0 0.0
        %266 = vmatpush1.msra.mxu0 0.0
        %267 = vmatprep.subr.mxu0 0.0
        %268 = vmatpush1.msra.mxu0 0.0
        %269 = vmatprep.subr.mxu0 0.0
        %270 = vmatpush1.msra.mxu0 0.0
        %271 = vmatprep.subr.mxu0 0.0
        %272 = vmatpush1.msra.mxu0 0.0
        %273 = vmatprep.subr.mxu0 0.0
        %274 = vmatpush1.msra.mxu0 0.0
        %275 = vmatprep.subr.mxu0 0.0
        %276 = vmatpush1.msra.mxu0 0.0
        %277 = vmatprep.subr.mxu0 0.0
        %278 = vmatpush1.msra.mxu0 0.0
        %279 = vmatprep.subr.mxu0 0.0
        %280 = vmatpush1.msra.mxu0 0.0
        %281 = vmatprep.subr.mxu0 0.0
        %282 = vmatpush1.msra.mxu0 0.0
        %283 = vmatprep.subr.mxu0 0.0
        %284 = vmatpush1.msra.mxu0 0.0
        %285 = vmatprep.subr.mxu0 0.0
        %286 = vmatpush1.msra.mxu0 0.0
        %287 = vmatprep.subr.mxu0 0.0
        %288 = vmatpush1.msra.mxu0 0.0
        %289 = vmatprep.subr.mxu0 0.0
        %290 = vmatpush1.msra.mxu0 0.0
        %291 = vmatprep.subr.mxu0 0.0
        %292 = vmatpush1.msra.mxu0 0.0
        %293 = vmatprep.subr.mxu0 0.0
        %294 = vmatpush1.msra.mxu0 0.0
        %295 = vmatprep.mubr.f32.mxu0 0.0
        %v296 = vand.u32 %v219, 4294901760
        %v297 = vsub.f32 %v219, %v296
        %v298 = vand.u32 %v297, 4294901760
        %v299 = vsub.f32 %v297, %v298
        %v300 = vand.u32 %v299, 4294901760
        %301 = vmatmul.mubr.f32.gmra.mrb[0].mxu0 %v300
        %v302 = vpop.f32.mrb[0].mxu0
        %v303 = vadd.f32 0.0, %v302
        %v304 = vpop.f32.mrb[0].mxu0
        %305 = vmatprep.mubr.f32.mxu0 0.0
        %v306 = vand.u32 %v222, 4294901760
        %v307 = vsub.f32 %v222, %v306
        %v308 = vand.u32 %v307, 4294901760
        %v309 = vsub.f32 %v307, %v308
        %v310 = vand.u32 %v309, 4294901760
        %311 = vmatmul.mubr.f32.gmra.mrb[0].mxu0 %v310
        %v312 = vpop.f32.mrb[0].mxu0
        %v313 = vadd.f32 0.0, %v312
        %v314 = vpop.f32.mrb[0].mxu0
        %315 = vmatprep.mubr.f32.mxu0 0.0
        %v316 = vand.u32 %v225, 4294901760
        %v317 = vsub.f32 %v225, %v316
        %v318 = vand.u32 %v317, 4294901760
        %v319 = vsub.f32 %v317, %v318
        %v320 = vand.u32 %v319, 4294901760
        %321 = vmatmul.mubr.f32.gmra.mrb[0].mxu0 %v320
        %v322 = vpop.f32.mrb[0].mxu0
        %v323 = vadd.f32 0.0, %v322
        %v324 = vpop.f32.mrb[0].mxu0
        %325 = vmatprep.mubr.f32.mxu0 0.0
        %v326 = vand.u32 %v228, 4294901760
        %v327 = vsub.f32 %v228, %v326
        %v328 = vand.u32 %v327, 4294901760
        %v329 = vsub.f32 %v327, %v328
        %v330 = vand.u32 %v329, 4294901760
        %331 = vmatmul.mubr.f32.gmra.mrb[0].mxu0 %v330
        %v332 = vpop.f32.mrb[0].mxu0
        %v333 = vadd.f32 0.0, %v332
        %v334 = vpop.f32.mrb[0].mxu0
        %335 = vdwg.mxu0
        %336 = vmatprep.subr.mxu0 0.0
        %v337 = vand.u32 %v216, 4294901760
        %v338 = vsub.f32 %v216, %v337
        %v339 = vand.u32 %v338, 4294901760
        %v340 = vsub.f32 %v338, %v339
        %v341 = vand.u32 %v340, 4294901760
        %342 = vmatpush1.msra.mxu0 %v341
        %343 = vmatprep.subr.mxu0 0.0
        %344 = vmatpush1.msra.mxu0 0.0
        %345 = vmatprep.subr.mxu0 0.0
        %346 = vmatpush1.msra.mxu0 0.0
        %347 = vmatprep.subr.mxu0 0.0
        %348 = vmatpush1.msra.mxu0 0.0
        %349 = vmatprep.subr.mxu0 0.0
        %350 = vmatpush1.msra.mxu0 0.0
        %351 = vmatprep.subr.mxu0 0.0
        %352 = vmatpush1.msra.mxu0 0.0
        %353 = vmatprep.subr.mxu0 0.0
        %354 = vmatpush1.msra.mxu0 0.0
        %355 = vmatprep.subr.mxu0 0.0
        %356 = vmatpush1.msra.mxu0 0.0
        %357 = vmatprep.subr.mxu0 0.0
        %358 = vmatpush1.msra.mxu0 0.0
        %359 = vmatprep.subr.mxu0 0.0
        %360 = vmatpush1.msra.mxu0 0.0
        %361 = vmatprep.subr.mxu0 0.0
        %362 = vmatpush1.msra.mxu0 0.0
        %363 = vmatprep.subr.mxu0 0.0
        %364 = vmatpush1.msra.mxu0 0.0
        %365 = vmatprep.subr.mxu0 0.0
        %366 = vmatpush1.msra.mxu0 0.0
        %367 = vmatprep.subr.mxu0 0.0
        %368 = vmatpush1.msra.mxu0 0.0
        %369 = vmatprep.subr.mxu0 0.0
        %370 = vmatpush1.msra.mxu0 0.0
        %371 = vmatprep.subr.mxu0 0.0
        %372 = vmatpush1.msra.mxu0 0.0
        %373 = vmatprep.subr.mxu0 0.0
        %374 = vmatpush1.msra.mxu0 0.0
        %375 = vmatprep.subr.mxu0 0.0
        %376 = vmatpush1.msra.mxu0 0.0
        %377 = vmatprep.subr.mxu0 0.0
        %378 = vmatpush1.msra.mxu0 0.0
        %379 = vmatprep.subr.mxu0 0.0
        %380 = vmatpush1.msra.mxu0 0.0
        %381 = vmatprep.subr.mxu0 0.0
        %382 = vmatpush1.msra.mxu0 0.0
        %383 = vmatprep.subr.mxu0 0.0
        %384 = vmatpush1.msra.mxu0 0.0
        %385 = vmatprep.subr.mxu0 0.0
        %386 = vmatpush1.msra.mxu0 0.0
        %387 = vmatprep.subr.mxu0 0.0
        %388 = vmatpush1.msra.mxu0 0.0
        %389 = vmatprep.subr.mxu0 0.0
        %390 = vmatpush1.msra.mxu0 0.0
        %391 = vmatprep.subr.mxu0 0.0
        %392 = vmatpush1.msra.mxu0 0.0
        %393 = vmatprep.subr.mxu0 0.0
        %394 = vmatpush1.msra.mxu0 0.0
        %395 = vmatprep.subr.mxu0 0.0
        %396 = vmatpush1.msra.mxu0 0.0
        %397 = vmatprep.subr.mxu0 0.0
        %398 = vmatpush1.msra.mxu0 0.0
        %399 = vmatprep.subr.mxu0 0.0
        %400 = vmatpush1.msra.mxu0 0.0
        %401 = vmatprep.subr.mxu0 0.0
        %402 = vmatpush1.msra.mxu0 0.0
        %403 = vmatprep.subr.mxu0 0.0
        %404 = vmatpush1.msra.mxu0 0.0
        %405 = vmatprep.mubr.f32.mxu0 0.0
        %v406 = vand.u32 %v219, 4294901760
        %407 = vmatmul.mubr.f32.gmra.mrb[0].mxu0 %v406
        %v408 = vpop.f32.mrb[0].mxu0
        %v409 = vadd.f32 %v303, %v408
        %v410 = vpop.f32.mrb[0].mxu0
        %411 = vmatprep.mubr.f32.mxu0 0.0
        %v412 = vand.u32 %v222, 4294901760
        %413 = vmatmul.mubr.f32.gmra.mrb[0].mxu0 %v412
        %v414 = vpop.f32.mrb[0].mxu0
        %v415 = vadd.f32 %v313, %v414
        %v416 = vpop.f32.mrb[0].mxu0
        %417 = vmatprep.mubr.f32.mxu0 0.0
        %v418 = vand.u32 %v225, 4294901760
        %419 = vmatmul.mubr.f32.gmra.mrb[0].mxu0 %v418
        %v420 = vpop.f32.mrb[0].mxu0
        %v421 = vadd.f32 %v323, %v420
        %v422 = vpop.f32.mrb[0].mxu0
        %423 = vmatprep.mubr.f32.mxu0 0.0
        %v424 = vand.u32 %v228, 4294901760
        %425 = vmatmul.mubr.f32.gmra.mrb[0].mxu0 %v424
        %v426 = vpop.f32.mrb[0].mxu0
        %v427 = vadd.f32 %v333, %v426
        %v428 = vpop.f32.mrb[0].mxu0
        %429 = vdwg.mxu0
        %430 = vmatprep.subr.mxu0 0.0
        %v431 = vand.u32 %v216, 4294901760
        %v432 = vsub.f32 %v216, %v431
        %433 = vmatpush1.msra.mxu0 %v432
        %434 = vmatprep.subr.mxu0 0.0
        %435 = vmatpush1.msra.mxu0 0.0
        %436 = vmatprep.subr.mxu0 0.0
        %437 = vmatpush1.msra.mxu0 0.0
        %438 = vmatprep.subr.mxu0 0.0
        %439 = vmatpush1.msra.mxu0 0.0
        %440 = vmatprep.subr.mxu0 0.0
        %441 = vmatpush1.msra.mxu0 0.0
        %442 = vmatprep.subr.mxu0 0.0
        %443 = vmatpush1.msra.mxu0 0.0
        %444 = vmatprep.subr.mxu0 0.0
        %445 = vmatpush1.msra.mxu0 0.0
        %446 = vmatprep.subr.mxu0 0.0
        %447 = vmatpush1.msra.mxu0 0.0
        %448 = vmatprep.subr.mxu0 0.0
        %449 = vmatpush1.msra.mxu0 0.0
        %450 = vmatprep.subr.mxu0 0.0
        %451 = vmatpush1.msra.mxu0 0.0
        %452 = vmatprep.subr.mxu0 0.0
        %453 = vmatpush1.msra.mxu0 0.0
        %454 = vmatprep.subr.mxu0 0.0
        %455 = vmatpush1.msra.mxu0 0.0
        %456 = vmatprep.subr.mxu0 0.0
        %457 = vmatpush1.msra.mxu0 0.0
        %458 = vmatprep.subr.mxu0 0.0
        %459 = vmatpush1.msra.mxu0 0.0
        %460 = vmatprep.subr.mxu0 0.0
        %461 = vmatpush1.msra.mxu0 0.0
        %462 = vmatprep.subr.mxu0 0.0
        %463 = vmatpush1.msra.mxu0 0.0
        %464 = vmatprep.subr.mxu0 0.0
        %465 = vmatpush1.msra.mxu0 0.0
        %466 = vmatprep.subr.mxu0 0.0
        %467 = vmatpush1.msra.mxu0 0.0
        %468 = vmatprep.subr.mxu0 0.0
        %469 = vmatpush1.msra.mxu0 0.0
        %470 = vmatprep.subr.mxu0 0.0
        %471 = vmatpush1.msra.mxu0 0.0
        %472 = vmatprep.subr.mxu0 0.0
        %473 = vmatpush1.msra.mxu0 0.0
        %474 = vmatprep.subr.mxu0 0.0
        %475 = vmatpush1.msra.mxu0 0.0
        %476 = vmatprep.subr.mxu0 0.0
        %477 = vmatpush1.msra.mxu0 0.0
        %478 = vmatprep.subr.mxu0 0.0
        %479 = vmatpush1.msra.mxu0 0.0
        %480 = vmatprep.subr.mxu0 0.0
        %481 = vmatpush1.msra.mxu0 0.0
        %482 = vmatprep.subr.mxu0 0.0
        %483 = vmatpush1.msra.mxu0 0.0
        %484 = vmatprep.subr.mxu0 0.0
        %485 = vmatpush1.msra.mxu0 0.0
        %486 = vmatprep.subr.mxu0 0.0
        %487 = vmatpush1.msra.mxu0 0.0
        %488 = vmatprep.subr.mxu0 0.0
        %489 = vmatpush1.msra.mxu0 0.0
        %490 = vmatprep.subr.mxu0 0.0
        %491 = vmatpush1.msra.mxu0 0.0
        %492 = vmatprep.subr.mxu0 0.0
        %493 = vmatpush1.msra.mxu0 0.0
        %494 = vmatprep.subr.mxu0 0.0
        %495 = vmatpush1.msra.mxu0 0.0
        %496 = vmatprep.mubr.f32.mxu0 0.0
        %v497 = vand.u32 %v219, 4294901760
        %v498 = vsub.f32 %v219, %v497
        %499 = vmatmul.mubr.f32.gmra.mrb[0].mxu0 %v498
        %v500 = vpop.f32.mrb[0].mxu0
        %v501 = vadd.f32 %v409, %v500
        %v502 = vpop.f32.mrb[0].mxu0
        %503 = vmatprep.mubr.f32.mxu0 0.0
        %v504 = vand.u32 %v222, 4294901760
        %v505 = vsub.f32 %v222, %v504
        %506 = vmatmul.mubr.f32.gmra.mrb[0].mxu0 %v505
        %v507 = vpop.f32.mrb[0].mxu0
        %v508 = vadd.f32 %v415, %v507
        %v509 = vpop.f32.mrb[0].mxu0
        %510 = vmatprep.mubr.f32.mxu0 0.0
        %v511 = vand.u32 %v225, 4294901760
        %v512 = vsub.f32 %v225, %v511
        %513 = vmatmul.mubr.f32.gmra.mrb[0].mxu0 %v512
        %v514 = vpop.f32.mrb[0].mxu0
        %v515 = vadd.f32 %v421, %v514
        %v516 = vpop.f32.mrb[0].mxu0
        %517 = vmatprep.mubr.f32.mxu0 0.0
        %v518 = vand.u32 %v228, 4294901760
        %v519 = vsub.f32 %v228, %v518
        %520 = vmatmul.mubr.f32.gmra.mrb[0].mxu0 %v519
        %v521 = vpop.f32.mrb[0].mxu0
        %v522 = vadd.f32 %v427, %v521
        %v523 = vpop.f32.mrb[0].mxu0
        %524 = vdwg.mxu0
        %525 = vmatprep.subr.mxu0 0.0
        %v526 = vand.u32 %v216, 4294901760
        %527 = vmatpush1.msra.mxu0 %v526
        %528 = vmatprep.subr.mxu0 0.0
        %529 = vmatpush1.msra.mxu0 0.0
        %530 = vmatprep.subr.mxu0 0.0
        %531 = vmatpush1.msra.mxu0 0.0
        %532 = vmatprep.subr.mxu0 0.0
        %533 = vmatpush1.msra.mxu0 0.0
        %534 = vmatprep.subr.mxu0 0.0
        %535 = vmatpush1.msra.mxu0 0.0
        %536 = vmatprep.subr.mxu0 0.0
        %537 = vmatpush1.msra.mxu0 0.0
        %538 = vmatprep.subr.mxu0 0.0
        %539 = vmatpush1.msra.mxu0 0.0
        %540 = vmatprep.subr.mxu0 0.0
        %541 = vmatpush1.msra.mxu0 0.0
        %542 = vmatprep.subr.mxu0 0.0
        %543 = vmatpush1.msra.mxu0 0.0
        %544 = vmatprep.subr.mxu0 0.0
        %545 = vmatpush1.msra.mxu0 0.0
        %546 = vmatprep.subr.mxu0 0.0
        %547 = vmatpush1.msra.mxu0 0.0
        %548 = vmatprep.subr.mxu0 0.0
        %549 = vmatpush1.msra.mxu0 0.0
        %550 = vmatprep.subr.mxu0 0.0
        %551 = vmatpush1.msra.mxu0 0.0
        %552 = vmatprep.subr.mxu0 0.0
        %553 = vmatpush1.msra.mxu0 0.0
        %554 = vmatprep.subr.mxu0 0.0
        %555 = vmatpush1.msra.mxu0 0.0
        %556 = vmatprep.subr.mxu0 0.0
        %557 = vmatpush1.msra.mxu0 0.0
        %558 = vmatprep.subr.mxu0 0.0
        %559 = vmatpush1.msra.mxu0 0.0
        %560 = vmatprep.subr.mxu0 0.0
        %561 = vmatpush1.msra.mxu0 0.0
        %562 = vmatprep.subr.mxu0 0.0
        %563 = vmatpush1.msra.mxu0 0.0
        %564 = vmatprep.subr.mxu0 0.0
        %565 = vmatpush1.msra.mxu0 0.0
        %566 = vmatprep.subr.mxu0 0.0
        %567 = vmatpush1.msra.mxu0 0.0
        %568 = vmatprep.subr.mxu0 0.0
        %569 = vmatpush1.msra.mxu0 0.0
        %570 = vmatprep.subr.mxu0 0.0
        %571 = vmatpush1.msra.mxu0 0.0
        %572 = vmatprep.subr.mxu0 0.0
        %573 = vmatpush1.msra.mxu0 0.0
        %574 = vmatprep.subr.mxu0 0.0
        %575 = vmatpush1.msra.mxu0 0.0
        %576 = vmatprep.subr.mxu0 0.0
        %577 = vmatpush1.msra.mxu0 0.0
        %578 = vmatprep.subr.mxu0 0.0
        %579 = vmatpush1.msra.mxu0 0.0
        %580 = vmatprep.subr.mxu0 0.0
        %581 = vmatpush1.msra.mxu0 0.0
        %582 = vmatprep.subr.mxu0 0.0
        %583 = vmatpush1.msra.mxu0 0.0
        %584 = vmatprep.subr.mxu0 0.0
        %585 = vmatpush1.msra.mxu0 0.0
        %586 = vmatprep.subr.mxu0 0.0
        %587 = vmatpush1.msra.mxu0 0.0
        %588 = vmatprep.subr.mxu0 0.0
        %589 = vmatpush1.msra.mxu0 0.0
        %590 = vmatprep.mubr.f32.mxu0 0.0
        %v591 = vand.u32 %v219, 4294901760
        %v592 = vsub.f32 %v219, %v591
        %v593 = vand.u32 %v592, 4294901760
        %594 = vmatmul.mubr.f32.gmra.mrb[0].mxu0 %v593
        %v595 = vpop.f32.mrb[0].mxu0
        %v596 = vadd.f32 %v501, %v595
        %v597 = vpop.f32.mrb[0].mxu0
        %598 = vmatprep.mubr.f32.mxu0 0.0
        %v599 = vand.u32 %v222, 4294901760
        %v600 = vsub.f32 %v222, %v599
        %v601 = vand.u32 %v600, 4294901760
        %602 = vmatmul.mubr.f32.gmra.mrb[0].mxu0 %v601
        %v603 = vpop.f32.mrb[0].mxu0
        %v604 = vadd.f32 %v508, %v603
        %v605 = vpop.f32.mrb[0].mxu0
        %606 = vmatprep.mubr.f32.mxu0 0.0
        %v607 = vand.u32 %v225, 4294901760
        %v608 = vsub.f32 %v225, %v607
        %v609 = vand.u32 %v608, 4294901760
        %610 = vmatmul.mubr.f32.gmra.mrb[0].mxu0 %v609
        %v611 = vpop.f32.mrb[0].mxu0
        %v612 = vadd.f32 %v515, %v611
        %v613 = vpop.f32.mrb[0].mxu0
        %614 = vmatprep.mubr.f32.mxu0 0.0
        %v615 = vand.u32 %v228, 4294901760
        %v616 = vsub.f32 %v228, %v615
        %v617 = vand.u32 %v616, 4294901760
        %618 = vmatmul.mubr.f32.gmra.mrb[0].mxu0 %v617
        %v619 = vpop.f32.mrb[0].mxu0
        %v620 = vadd.f32 %v522, %v619
        %v621 = vpop.f32.mrb[0].mxu0
        %622 = vdwg.mxu0
        %623 = vmatprep.subr.mxu0 0.0
        %v624 = vand.u32 %v216, 4294901760
        %v625 = vsub.f32 %v216, %v624
        %v626 = vand.u32 %v625, 4294901760
        %627 = vmatpush1.msra.mxu0 %v626
        %628 = vmatprep.subr.mxu0 0.0
        %629 = vmatpush1.msra.mxu0 0.0
        %630 = vmatprep.subr.mxu0 0.0
        %631 = vmatpush1.msra.mxu0 0.0
        %632 = vmatprep.subr.mxu0 0.0
        %633 = vmatpush1.msra.mxu0 0.0
        %634 = vmatprep.subr.mxu0 0.0
        %635 = vmatpush1.msra.mxu0 0.0
        %636 = vmatprep.subr.mxu0 0.0
        %637 = vmatpush1.msra.mxu0 0.0
        %638 = vmatprep.subr.mxu0 0.0
        %639 = vmatpush1.msra.mxu0 0.0
        %640 = vmatprep.subr.mxu0 0.0
        %641 = vmatpush1.msra.mxu0 0.0
        %642 = vmatprep.subr.mxu0 0.0
        %643 = vmatpush1.msra.mxu0 0.0
        %644 = vmatprep.subr.mxu0 0.0
        %645 = vmatpush1.msra.mxu0 0.0
        %646 = vmatprep.subr.mxu0 0.0
        %647 = vmatpush1.msra.mxu0 0.0
        %648 = vmatprep.subr.mxu0 0.0
        %649 = vmatpush1.msra.mxu0 0.0
        %650 = vmatprep.subr.mxu0 0.0
        %651 = vmatpush1.msra.mxu0 0.0
        %652 = vmatprep.subr.mxu0 0.0
        %653 = vmatpush1.msra.mxu0 0.0
        %654 = vmatprep.subr.mxu0 0.0
        %655 = vmatpush1.msra.mxu0 0.0
        %656 = vmatprep.subr.mxu0 0.0
        %657 = vmatpush1.msra.mxu0 0.0
        %658 = vmatprep.subr.mxu0 0.0
        %659 = vmatpush1.msra.mxu0 0.0
        %660 = vmatprep.subr.mxu0 0.0
        %661 = vmatpush1.msra.mxu0 0.0
        %662 = vmatprep.subr.mxu0 0.0
        %663 = vmatpush1.msra.mxu0 0.0
        %664 = vmatprep.subr.mxu0 0.0
        %665 = vmatpush1.msra.mxu0 0.0
        %666 = vmatprep.subr.mxu0 0.0
        %667 = vmatpush1.msra.mxu0 0.0
        %668 = vmatprep.subr.mxu0 0.0
        %669 = vmatpush1.msra.mxu0 0.0
        %670 = vmatprep.subr.mxu0 0.0
        %671 = vmatpush1.msra.mxu0 0.0
        %672 = vmatprep.subr.mxu0 0.0
        %673 = vmatpush1.msra.mxu0 0.0
        %674 = vmatprep.subr.mxu0 0.0
        %675 = vmatpush1.msra.mxu0 0.0
        %676 = vmatprep.subr.mxu0 0.0
        %677 = vmatpush1.msra.mxu0 0.0
        %678 = vmatprep.subr.mxu0 0.0
        %679 = vmatpush1.msra.mxu0 0.0
        %680 = vmatprep.subr.mxu0 0.0
        %681 = vmatpush1.msra.mxu0 0.0
        %682 = vmatprep.subr.mxu0 0.0
        %683 = vmatpush1.msra.mxu0 0.0
        %684 = vmatprep.subr.mxu0 0.0
        %685 = vmatpush1.msra.mxu0 0.0
        %686 = vmatprep.subr.mxu0 0.0
        %687 = vmatpush1.msra.mxu0 0.0
        %688 = vmatprep.subr.mxu0 0.0
        %689 = vmatpush1.msra.mxu0 0.0
        %690 = vmatprep.mubr.f32.mxu0 0.0
        %v691 = vand.u32 %v219, 4294901760
        %692 = vmatmul.mubr.f32.gmra.mrb[0].mxu0 %v691
        %v693 = vpop.f32.mrb[0].mxu0
        %v694 = vadd.f32 %v596, %v693
        %v695 = vpop.f32.mrb[0].mxu0
        %696 = vmatprep.mubr.f32.mxu0 0.0
        %v697 = vand.u32 %v222, 4294901760
        %698 = vmatmul.mubr.f32.gmra.mrb[0].mxu0 %v697
        %v699 = vpop.f32.mrb[0].mxu0
        %v700 = vadd.f32 %v604, %v699
        %v701 = vpop.f32.mrb[0].mxu0
        %702 = vmatprep.mubr.f32.mxu0 0.0
        %v703 = vand.u32 %v225, 4294901760
        %704 = vmatmul.mubr.f32.gmra.mrb[0].mxu0 %v703
        %v705 = vpop.f32.mrb[0].mxu0
        %v706 = vadd.f32 %v612, %v705
        %v707 = vpop.f32.mrb[0].mxu0
        %708 = vmatprep.mubr.f32.mxu0 0.0
        %v709 = vand.u32 %v228, 4294901760
        %710 = vmatmul.mubr.f32.gmra.mrb[0].mxu0 %v709
        %v711 = vpop.f32.mrb[0].mxu0
        %v712 = vadd.f32 %v620, %v711
        %v713 = vpop.f32.mrb[0].mxu0
        %714 = vdwg.mxu0
        %715 = vmatprep.subr.mxu0 0.0
        %v716 = vand.u32 %v216, 4294901760
        %717 = vmatpush1.msra.mxu0 %v716
        %718 = vmatprep.subr.mxu0 0.0
        %719 = vmatpush1.msra.mxu0 0.0
        %720 = vmatprep.subr.mxu0 0.0
        %721 = vmatpush1.msra.mxu0 0.0
        %722 = vmatprep.subr.mxu0 0.0
        %723 = vmatpush1.msra.mxu0 0.0
        %724 = vmatprep.subr.mxu0 0.0
        %725 = vmatpush1.msra.mxu0 0.0
        %726 = vmatprep.subr.mxu0 0.0
        %727 = vmatpush1.msra.mxu0 0.0
        %728 = vmatprep.subr.mxu0 0.0
        %729 = vmatpush1.msra.mxu0 0.0
        %730 = vmatprep.subr.mxu0 0.0
        %731 = vmatpush1.msra.mxu0 0.0
        %732 = vmatprep.subr.mxu0 0.0
        %733 = vmatpush1.msra.mxu0 0.0
        %734 = vmatprep.subr.mxu0 0.0
        %735 = vmatpush1.msra.mxu0 0.0
        %736 = vmatprep.subr.mxu0 0.0
        %737 = vmatpush1.msra.mxu0 0.0
        %738 = vmatprep.subr.mxu0 0.0
        %739 = vmatpush1.msra.mxu0 0.0
        %740 = vmatprep.subr.mxu0 0.0
        %741 = vmatpush1.msra.mxu0 0.0
        %742 = vmatprep.subr.mxu0 0.0
        %743 = vmatpush1.msra.mxu0 0.0
        %744 = vmatprep.subr.mxu0 0.0
        %745 = vmatpush1.msra.mxu0 0.0
        %746 = vmatprep.subr.mxu0 0.0
        %747 = vmatpush1.msra.mxu0 0.0
        %748 = vmatprep.subr.mxu0 0.0
        %749 = vmatpush1.msra.mxu0 0.0
        %750 = vmatprep.subr.mxu0 0.0
        %751 = vmatpush1.msra.mxu0 0.0
        %752 = vmatprep.subr.mxu0 0.0
        %753 = vmatpush1.msra.mxu0 0.0
        %754 = vmatprep.subr.mxu0 0.0
        %755 = vmatpush1.msra.mxu0 0.0
        %756 = vmatprep.subr.mxu0 0.0
        %757 = vmatpush1.msra.mxu0 0.0
        %758 = vmatprep.subr.mxu0 0.0
        %759 = vmatpush1.msra.mxu0 0.0
        %760 = vmatprep.subr.mxu0 0.0
        %761 = vmatpush1.msra.mxu0 0.0
        %762 = vmatprep.subr.mxu0 0.0
        %763 = vmatpush1.msra.mxu0 0.0
        %764 = vmatprep.subr.mxu0 0.0
        %765 = vmatpush1.msra.mxu0 0.0
        %766 = vmatprep.subr.mxu0 0.0
        %767 = vmatpush1.msra.mxu0 0.0
        %768 = vmatprep.subr.mxu0 0.0
        %769 = vmatpush1.msra.mxu0 0.0
        %770 = vmatprep.subr.mxu0 0.0
        %771 = vmatpush1.msra.mxu0 0.0
        %772 = vmatprep.subr.mxu0 0.0
        %773 = vmatpush1.msra.mxu0 0.0
        %774 = vmatprep.subr.mxu0 0.0
        %775 = vmatpush1.msra.mxu0 0.0
        %776 = vmatprep.subr.mxu0 0.0
        %777 = vmatpush1.msra.mxu0 0.0
        %778 = vmatprep.subr.mxu0 0.0
        %779 = vmatpush1.msra.mxu0 0.0
        %780 = vmatprep.mubr.f32.mxu0 0.0
        %v781 = vand.u32 %v219, 4294901760
        %782 = vmatmul.mubr.f32.gmra.mrb[0].mxu0 %v781
        %v783 = vpop.f32.mrb[0].mxu0
        %v784 = vadd.f32 %v694, %v783
        %v785 = vpop.f32.mrb[0].mxu0
        %786 = vmatprep.mubr.f32.mxu0 0.0
        %v787 = vand.u32 %v222, 4294901760
        %788 = vmatmul.mubr.f32.gmra.mrb[0].mxu0 %v787
        %v789 = vpop.f32.mrb[0].mxu0
        %v790 = vadd.f32 %v700, %v789
        %v791 = vpop.f32.mrb[0].mxu0
        %792 = vmatprep.mubr.f32.mxu0 0.0
        %v793 = vand.u32 %v225, 4294901760
        %794 = vmatmul.mubr.f32.gmra.mrb[0].mxu0 %v793
        %v795 = vpop.f32.mrb[0].mxu0
        %v796 = vadd.f32 %v706, %v795
        %v797 = vpop.f32.mrb[0].mxu0
        %798 = vmatprep.mubr.f32.mxu0 0.0
        %v799 = vand.u32 %v228, 4294901760
        %800 = vmatmul.mubr.f32.gmra.mrb[0].mxu0 %v799
        %v801 = vpop.f32.mrb[0].mxu0
        %v802 = vadd.f32 %v712, %v801
        %v803 = vpop.f32.mrb[0].mxu0
        %804 = vdwg.mxu0
        %v805 = vsub.f32 0.0, %v784
        %v806 = vmul.f32 %v805, 1.442695
        %v807 = vpow.pop %v806
        %v808 = vadd.f32 %v807, 1.0
        %v809 = vrcp.pop %v808
        %v810 = vmul.f32 1.0, %v809
        %v811 = vsub.f32 0.0, %v790
        %v812 = vsub.f32 0.0, %v796
        %v813 = vmul.f32 %v811, 1.442695
        %v814 = vpow.pop %v813
        %v815 = vmul.f32 %v812, 1.442695
        %v816 = vpow.pop %v815
        %v817 = vadd.f32 %v814, 1.0
        %v818 = vadd.f32 %v816, 1.0
        %v819 = vrcp.pop %v817
        %v820 = vmul.f32 1.0, %v819
        %v821 = vrcp.pop %v818
        %v822 = vmul.f32 1.0, %v821
        %vm823 = vcmask 1024
        %v824 = vsel %vm823, %v802, -inf
        %v825 = vrot.slane %v824, 4
        %v826 = vmax.f32 %v824, %v825
        %v827 = vrot.slane %v826, 2
        %v828 = vmax.f32 %v826, %v827
        %v829 = vrot.slane %v828, 1
        %v830 = vmax.f32 %v828, %v829
        %v831 = vsub.f32 %v802, %v830
        %v832 = vmul.f32 %v831, 1.442695
        %v833 = vpow.pop %v832
        %v834 = vsel %vm823, %v833, 0.0
        %v835 = vrot.slane %v834, 4
        %v836 = vadd.f32 %v834, %v835
        %v837 = vrot.slane %v836, 2
        %v838 = vadd.f32 %v836, %v837
        %v839 = vrot.slane %v838, 1
        %v840 = vadd.f32 %v838, %v839
        %v841 = vrcp.pop %v840
        %v842 = vmul.f32 %v833, %v841
        %844 = vset.pattern.permute.xlu0 0
        %845 = vperm.xlu0 %844, %v810
        %v846 = vpop.permute.xlu0 %845
        %v848 = vmul.f32 %v209, %v846
        %v849 = vmul.f32 %v210, %v846
        %v850 = vmul.f32 %v211, %v846
        %s852 = vtos %v842
        %v853 = vstv %s852
        %v855 = vmul.f32 %v173, %v853
        %v856 = vmul.f32 %v174, %v853
        %v857 = vmul.f32 %v175, %v853
        %v858 = vmul.f32 %v176, %v853
        %v859 = vmul.f32 %v177, %v853
        %v860 = vmul.f32 %v178, %v853
        %v861 = vmul.f32 %v179, %v853
        %v862 = vmul.f32 %v180, %v853
        %v863 = vmul.f32 %v181, %v853
        %v864 = vmul.f32 %v182, %v853
        %v865 = vmul.f32 %v183, %v853
        %v866 = vmul.f32 %v184, %v853
        %v867 = vmul.f32 %v185, %v853
        %v868 = vmul.f32 %v186, %v853
        %v869 = vmul.f32 %v187, %v853
        %v870 = vmul.f32 %v188, %v853
        %v871 = vmul.f32 %v189, %v853
        %v872 = vmul.f32 %v190, %v853
        %v873 = vrot.slane %v842, 1
        %s874 = vtos %v873
        %v875 = vstv %s874
        %v877 = vmul.f32 %v191, %v875
        %v878 = vmul.f32 %v192, %v875
        %v879 = vmul.f32 %v193, %v875
        %v880 = vmul.f32 %v194, %v875
        %v881 = vmul.f32 %v195, %v875
        %v882 = vmul.f32 %v196, %v875
        %v883 = vmul.f32 %v197, %v875
        %v884 = vmul.f32 %v198, %v875
        %v885 = vmul.f32 %v199, %v875
        %v886 = vmul.f32 %v200, %v875
        %v887 = vmul.f32 %v201, %v875
        %v888 = vmul.f32 %v202, %v875
        %v889 = vmul.f32 %v203, %v875
        %v890 = vmul.f32 %v204, %v875
        %v891 = vmul.f32 %v205, %v875
        %v892 = vmul.f32 %v206, %v875
        %v893 = vmul.f32 %v207, %v875
        %v894 = vmul.f32 %v208, %v875
        %v895 = vadd.f32 %v855, %v877
        %v896 = vadd.f32 %v856, %v878
        %v897 = vadd.f32 %v857, %v879
        %v898 = vadd.f32 %v858, %v880
        %v899 = vadd.f32 %v859, %v881
        %v900 = vadd.f32 %v860, %v882
        %v901 = vadd.f32 %v861, %v883
        %v902 = vadd.f32 %v862, %v884
        %v903 = vadd.f32 %v863, %v885
        %v904 = vadd.f32 %v864, %v886
        %v905 = vadd.f32 %v865, %v887
        %v906 = vadd.f32 %v866, %v888
        %v907 = vadd.f32 %v867, %v889
        %v908 = vadd.f32 %v868, %v890
        %v909 = vadd.f32 %v869, %v891
        %v910 = vadd.f32 %v870, %v892
        %v911 = vadd.f32 %v871, %v893
        %v912 = vadd.f32 %v872, %v894
        %v914 = vsel %vm217, %v895, 0
        %v917 = vsel %vm217, %v896, 0
        %v920 = vsel %vm217, %v897, 0
        %v923 = vsel %vm217, %v898, 0
        %v926 = vsel %vm217, %v899, 0
        %v929 = vsel %vm217, %v900, 0
        %v932 = vsel %vm217, %v901, 0
        %v935 = vsel %vm217, %v902, 0
        %v938 = vsel %vm217, %v903, 0
        %v941 = vsel %vm217, %v904, 0
        %v944 = vsel %vm217, %v905, 0
        %v947 = vsel %vm217, %v906, 0
        %v950 = vsel %vm217, %v907, 0
        %v953 = vsel %vm217, %v908, 0
        %v956 = vsel %vm217, %v909, 0
        %v959 = vsel %vm217, %v910, 0
        %v962 = vsel %vm217, %v911, 0
        %v965 = vsel %vm217, %v912, 0
        %v967 = vand.u32 %v849, 4294901760
        %968 = vmatprep.subr.mxu0 %v967
        %v969 = vand.u32 %v848, 4294901760
        %970 = vmatpush1.msra.mxu0 %v969
        %971 = vmatprep.subr.mxu0 0.0
        %972 = vmatpush1.msra.mxu0 0.0
        %973 = vmatprep.subr.mxu0 0.0
        %974 = vmatpush1.msra.mxu0 0.0
        %975 = vmatprep.subr.mxu0 0.0
        %976 = vmatpush1.msra.mxu0 0.0
        %977 = vmatprep.subr.mxu0 0.0
        %978 = vmatpush1.msra.mxu0 0.0
        %979 = vmatprep.subr.mxu0 0.0
        %980 = vmatpush1.msra.mxu0 0.0
        %981 = vmatprep.subr.mxu0 0.0
        %982 = vmatpush1.msra.mxu0 0.0
        %983 = vmatprep.subr.mxu0 0.0
        %984 = vmatpush1.msra.mxu0 0.0
        %985 = vmatprep.subr.mxu0 0.0
        %986 = vmatpush1.msra.mxu0 0.0
        %987 = vmatprep.subr.mxu0 0.0
        %988 = vmatpush1.msra.mxu0 0.0
        %989 = vmatprep.subr.mxu0 0.0
        %990 = vmatpush1.msra.mxu0 0.0
        %991 = vmatprep.subr.mxu0 0.0
        %992 = vmatpush1.msra.mxu0 0.0
        %993 = vmatprep.subr.mxu0 0.0
        %994 = vmatpush1.msra.mxu0 0.0
        %995 = vmatprep.subr.mxu0 0.0
        %996 = vmatpush1.msra.mxu0 0.0
        %997 = vmatprep.subr.mxu0 0.0
        %998 = vmatpush1.msra.mxu0 0.0
        %999 = vmatprep.subr.mxu0 0.0
        %1000 = vmatpush1.msra.mxu0 0.0
        %1001 = vmatprep.subr.mxu0 0.0
        %1002 = vmatpush1.msra.mxu0 0.0
        %1003 = vmatprep.subr.mxu0 0.0
        %1004 = vmatpush1.msra.mxu0 0.0
        %1005 = vmatprep.subr.mxu0 0.0
        %1006 = vmatpush1.msra.mxu0 0.0
        %1007 = vmatprep.subr.mxu0 0.0
        %1008 = vmatpush1.msra.mxu0 0.0
        %1009 = vmatprep.subr.mxu0 0.0
        %1010 = vmatpush1.msra.mxu0 0.0
        %1011 = vmatprep.subr.mxu0 0.0
        %1012 = vmatpush1.msra.mxu0 0.0
        %1013 = vmatprep.subr.mxu0 0.0
        %1014 = vmatpush1.msra.mxu0 0.0
        %1015 = vmatprep.subr.mxu0 0.0
        %1016 = vmatpush1.msra.mxu0 0.0
        %1017 = vmatprep.subr.mxu0 0.0
        %1018 = vmatpush1.msra.mxu0 0.0
        %1019 = vmatprep.subr.mxu0 0.0
        %1020 = vmatpush1.msra.mxu0 0.0
        %1021 = vmatprep.subr.mxu0 0.0
        %1022 = vmatpush1.msra.mxu0 0.0
        %1023 = vmatprep.subr.mxu0 0.0
        %1024 = vmatpush1.msra.mxu0 0.0
        %1025 = vmatprep.subr.mxu0 0.0
        %1026 = vmatpush1.msra.mxu0 0.0
        %1027 = vmatprep.subr.mxu0 0.0
        %1028 = vmatpush1.msra.mxu0 0.0
        %1029 = vmatprep.subr.mxu0 0.0
        %1030 = vmatpush1.msra.mxu0 0.0
        %1031 = vmatprep.subr.mxu0 0.0
        %1032 = vmatpush1.msra.mxu0 0.0
        %1033 = vmatprep.mubr.f32.mxu0 0.0
        %v1034 = vand.u32 %v914, 4294901760
        %v1035 = vsub.f32 %v914, %v1034
        %v1036 = vand.u32 %v1035, 4294901760
        %v1037 = vsub.f32 %v1035, %v1036
        %v1038 = vand.u32 %v1037, 4294901760
        %1039 = vmatmul.mubr.f32.gmra.mrb[0].mxu0 %v1038
        %v1040 = vpop.f32.mrb[0].mxu0
        %v1041 = vadd.f32 0.0, %v1040
        %v1042 = vpop.f32.mrb[0].mxu0
        %v1043 = vadd.f32 0.0, %v1042
        %1044 = vmatprep.mubr.f32.mxu0 0.0
        %v1045 = vand.u32 %v917, 4294901760
        %v1046 = vsub.f32 %v917, %v1045
        %v1047 = vand.u32 %v1046, 4294901760
        %v1048 = vsub.f32 %v1046, %v1047
        %v1049 = vand.u32 %v1048, 4294901760
        %1050 = vmatmul.mubr.f32.gmra.mrb[0].mxu0 %v1049
        %v1051 = vpop.f32.mrb[0].mxu0
        %v1052 = vadd.f32 0.0, %v1051
        %v1053 = vpop.f32.mrb[0].mxu0
        %v1054 = vadd.f32 0.0, %v1053
        %1055 = vmatprep.mubr.f32.mxu0 0.0
        %v1056 = vand.u32 %v920, 4294901760
        %v1057 = vsub.f32 %v920, %v1056
        %v1058 = vand.u32 %v1057, 4294901760
        %v1059 = vsub.f32 %v1057, %v1058
        %v1060 = vand.u32 %v1059, 4294901760
        %1061 = vmatmul.mubr.f32.gmra.mrb[0].mxu0 %v1060
        %v1062 = vpop.f32.mrb[0].mxu0
        %v1063 = vadd.f32 0.0, %v1062
        %v1064 = vpop.f32.mrb[0].mxu0
        %v1065 = vadd.f32 0.0, %v1064
        %1066 = vmatprep.mubr.f32.mxu0 0.0
        %v1067 = vand.u32 %v923, 4294901760
        %v1068 = vsub.f32 %v923, %v1067
        %v1069 = vand.u32 %v1068, 4294901760
        %v1070 = vsub.f32 %v1068, %v1069
        %v1071 = vand.u32 %v1070, 4294901760
        %1072 = vmatmul.mubr.f32.gmra.mrb[0].mxu0 %v1071
        %v1073 = vpop.f32.mrb[0].mxu0
        %v1074 = vadd.f32 0.0, %v1073
        %v1075 = vpop.f32.mrb[0].mxu0
        %v1076 = vadd.f32 0.0, %v1075
        %1077 = vmatprep.mubr.f32.mxu0 0.0
        %v1078 = vand.u32 %v926, 4294901760
        %v1079 = vsub.f32 %v926, %v1078
        %v1080 = vand.u32 %v1079, 4294901760
        %v1081 = vsub.f32 %v1079, %v1080
        %v1082 = vand.u32 %v1081, 4294901760
        %1083 = vmatmul.mubr.f32.gmra.mrb[0].mxu0 %v1082
        %v1084 = vpop.f32.mrb[0].mxu0
        %v1085 = vadd.f32 0.0, %v1084
        %v1086 = vpop.f32.mrb[0].mxu0
        %v1087 = vadd.f32 0.0, %v1086
        %1088 = vmatprep.mubr.f32.mxu0 0.0
        %v1089 = vand.u32 %v929, 4294901760
        %v1090 = vsub.f32 %v929, %v1089
        %v1091 = vand.u32 %v1090, 4294901760
        %v1092 = vsub.f32 %v1090, %v1091
        %v1093 = vand.u32 %v1092, 4294901760
        %1094 = vmatmul.mubr.f32.gmra.mrb[0].mxu0 %v1093
        %v1095 = vpop.f32.mrb[0].mxu0
        %v1096 = vadd.f32 0.0, %v1095
        %v1097 = vpop.f32.mrb[0].mxu0
        %v1098 = vadd.f32 0.0, %v1097
        %1099 = vmatprep.mubr.f32.mxu0 0.0
        %v1100 = vand.u32 %v932, 4294901760
        %v1101 = vsub.f32 %v932, %v1100
        %v1102 = vand.u32 %v1101, 4294901760
        %v1103 = vsub.f32 %v1101, %v1102
        %v1104 = vand.u32 %v1103, 4294901760
        %1105 = vmatmul.mubr.f32.gmra.mrb[0].mxu0 %v1104
        %v1106 = vpop.f32.mrb[0].mxu0
        %v1107 = vadd.f32 0.0, %v1106
        %v1108 = vpop.f32.mrb[0].mxu0
        %v1109 = vadd.f32 0.0, %v1108
        %1110 = vmatprep.mubr.f32.mxu0 0.0
        %v1111 = vand.u32 %v935, 4294901760
        %v1112 = vsub.f32 %v935, %v1111
        %v1113 = vand.u32 %v1112, 4294901760
        %v1114 = vsub.f32 %v1112, %v1113
        %v1115 = vand.u32 %v1114, 4294901760
        %1116 = vmatmul.mubr.f32.gmra.mrb[0].mxu0 %v1115
        %v1117 = vpop.f32.mrb[0].mxu0
        %v1118 = vadd.f32 0.0, %v1117
        %v1119 = vpop.f32.mrb[0].mxu0
        %v1120 = vadd.f32 0.0, %v1119
        %1121 = vmatprep.mubr.f32.mxu0 0.0
        %v1122 = vand.u32 %v938, 4294901760
        %v1123 = vsub.f32 %v938, %v1122
        %v1124 = vand.u32 %v1123, 4294901760
        %v1125 = vsub.f32 %v1123, %v1124
        %v1126 = vand.u32 %v1125, 4294901760
        %1127 = vmatmul.mubr.f32.gmra.mrb[0].mxu0 %v1126
        %v1128 = vpop.f32.mrb[0].mxu0
        %v1129 = vadd.f32 0.0, %v1128
        %v1130 = vpop.f32.mrb[0].mxu0
        %v1131 = vadd.f32 0.0, %v1130
        %1132 = vmatprep.mubr.f32.mxu0 0.0
        %v1133 = vand.u32 %v941, 4294901760
        %v1134 = vsub.f32 %v941, %v1133
        %v1135 = vand.u32 %v1134, 4294901760
        %v1136 = vsub.f32 %v1134, %v1135
        %v1137 = vand.u32 %v1136, 4294901760
        %1138 = vmatmul.mubr.f32.gmra.mrb[0].mxu0 %v1137
        %v1139 = vpop.f32.mrb[0].mxu0
        %v1140 = vadd.f32 0.0, %v1139
        %v1141 = vpop.f32.mrb[0].mxu0
        %v1142 = vadd.f32 0.0, %v1141
        %1143 = vmatprep.mubr.f32.mxu0 0.0
        %v1144 = vand.u32 %v944, 4294901760
        %v1145 = vsub.f32 %v944, %v1144
        %v1146 = vand.u32 %v1145, 4294901760
        %v1147 = vsub.f32 %v1145, %v1146
        %v1148 = vand.u32 %v1147, 4294901760
        %1149 = vmatmul.mubr.f32.gmra.mrb[0].mxu0 %v1148
        %v1150 = vpop.f32.mrb[0].mxu0
        %v1151 = vadd.f32 0.0, %v1150
        %v1152 = vpop.f32.mrb[0].mxu0
        %v1153 = vadd.f32 0.0, %v1152
        %1154 = vmatprep.mubr.f32.mxu0 0.0
        %v1155 = vand.u32 %v947, 4294901760
        %v1156 = vsub.f32 %v947, %v1155
        %v1157 = vand.u32 %v1156, 4294901760
        %v1158 = vsub.f32 %v1156, %v1157
        %v1159 = vand.u32 %v1158, 4294901760
        %1160 = vmatmul.mubr.f32.gmra.mrb[0].mxu0 %v1159
        %v1161 = vpop.f32.mrb[0].mxu0
        %v1162 = vadd.f32 0.0, %v1161
        %v1163 = vpop.f32.mrb[0].mxu0
        %v1164 = vadd.f32 0.0, %v1163
        %1165 = vmatprep.mubr.f32.mxu0 0.0
        %v1166 = vand.u32 %v950, 4294901760
        %v1167 = vsub.f32 %v950, %v1166
        %v1168 = vand.u32 %v1167, 4294901760
        %v1169 = vsub.f32 %v1167, %v1168
        %v1170 = vand.u32 %v1169, 4294901760
        %1171 = vmatmul.mubr.f32.gmra.mrb[0].mxu0 %v1170
        %v1172 = vpop.f32.mrb[0].mxu0
        %v1173 = vadd.f32 0.0, %v1172
        %v1174 = vpop.f32.mrb[0].mxu0
        %v1175 = vadd.f32 0.0, %v1174
        %1176 = vmatprep.mubr.f32.mxu0 0.0
        %v1177 = vand.u32 %v953, 4294901760
        %v1178 = vsub.f32 %v953, %v1177
        %v1179 = vand.u32 %v1178, 4294901760
        %v1180 = vsub.f32 %v1178, %v1179
        %v1181 = vand.u32 %v1180, 4294901760
        %1182 = vmatmul.mubr.f32.gmra.mrb[0].mxu0 %v1181
        %v1183 = vpop.f32.mrb[0].mxu0
        %v1184 = vadd.f32 0.0, %v1183
        %v1185 = vpop.f32.mrb[0].mxu0
        %v1186 = vadd.f32 0.0, %v1185
        %1187 = vmatprep.mubr.f32.mxu0 0.0
        %v1188 = vand.u32 %v956, 4294901760
        %v1189 = vsub.f32 %v956, %v1188
        %v1190 = vand.u32 %v1189, 4294901760
        %v1191 = vsub.f32 %v1189, %v1190
        %v1192 = vand.u32 %v1191, 4294901760
        %1193 = vmatmul.mubr.f32.gmra.mrb[0].mxu0 %v1192
        %v1194 = vpop.f32.mrb[0].mxu0
        %v1195 = vadd.f32 0.0, %v1194
        %v1196 = vpop.f32.mrb[0].mxu0
        %v1197 = vadd.f32 0.0, %v1196
        %1198 = vmatprep.mubr.f32.mxu0 0.0
        %v1199 = vand.u32 %v959, 4294901760
        %v1200 = vsub.f32 %v959, %v1199
        %v1201 = vand.u32 %v1200, 4294901760
        %v1202 = vsub.f32 %v1200, %v1201
        %v1203 = vand.u32 %v1202, 4294901760
        %1204 = vmatmul.mubr.f32.gmra.mrb[0].mxu0 %v1203
        %v1205 = vpop.f32.mrb[0].mxu0
        %v1206 = vadd.f32 0.0, %v1205
        %v1207 = vpop.f32.mrb[0].mxu0
        %v1208 = vadd.f32 0.0, %v1207
        %1209 = vmatprep.mubr.f32.mxu0 0.0
        %v1210 = vand.u32 %v962, 4294901760
        %v1211 = vsub.f32 %v962, %v1210
        %v1212 = vand.u32 %v1211, 4294901760
        %v1213 = vsub.f32 %v1211, %v1212
        %v1214 = vand.u32 %v1213, 4294901760
        %1215 = vmatmul.mubr.f32.gmra.mrb[0].mxu0 %v1214
        %v1216 = vpop.f32.mrb[0].mxu0
        %v1217 = vadd.f32 0.0, %v1216
        %v1218 = vpop.f32.mrb[0].mxu0
        %v1219 = vadd.f32 0.0, %v1218
        %1220 = vmatprep.mubr.f32.mxu0 0.0
        %v1221 = vand.u32 %v965, 4294901760
        %v1222 = vsub.f32 %v965, %v1221
        %v1223 = vand.u32 %v1222, 4294901760
        %v1224 = vsub.f32 %v1222, %v1223
        %v1225 = vand.u32 %v1224, 4294901760
        %1226 = vmatmul.mubr.f32.gmra.mrb[0].mxu0 %v1225
        %v1227 = vpop.f32.mrb[0].mxu0
        %v1228 = vadd.f32 0.0, %v1227
        %v1229 = vpop.f32.mrb[0].mxu0
        %v1230 = vadd.f32 0.0, %v1229
        %1231 = vdwg.mxu0
        %v1232 = vand.u32 %v849, 4294901760
        %v1233 = vsub.f32 %v849, %v1232
        %v1234 = vand.u32 %v1233, 4294901760
        %v1235 = vsub.f32 %v1233, %v1234
        %v1236 = vand.u32 %v1235, 4294901760
        %1237 = vmatprep.subr.mxu0 %v1236
        %v1238 = vand.u32 %v848, 4294901760
        %v1239 = vsub.f32 %v848, %v1238
        %v1240 = vand.u32 %v1239, 4294901760
        %v1241 = vsub.f32 %v1239, %v1240
        %v1242 = vand.u32 %v1241, 4294901760
        %1243 = vmatpush1.msra.mxu0 %v1242
        %1244 = vmatprep.subr.mxu0 0.0
        %1245 = vmatpush1.msra.mxu0 0.0
        %1246 = vmatprep.subr.mxu0 0.0
        %1247 = vmatpush1.msra.mxu0 0.0
        %1248 = vmatprep.subr.mxu0 0.0
        %1249 = vmatpush1.msra.mxu0 0.0
        %1250 = vmatprep.subr.mxu0 0.0
        %1251 = vmatpush1.msra.mxu0 0.0
        %1252 = vmatprep.subr.mxu0 0.0
        %1253 = vmatpush1.msra.mxu0 0.0
        %1254 = vmatprep.subr.mxu0 0.0
        %1255 = vmatpush1.msra.mxu0 0.0
        %1256 = vmatprep.subr.mxu0 0.0
        %1257 = vmatpush1.msra.mxu0 0.0
        %1258 = vmatprep.subr.mxu0 0.0
        %1259 = vmatpush1.msra.mxu0 0.0
        %1260 = vmatprep.subr.mxu0 0.0
        %1261 = vmatpush1.msra.mxu0 0.0
        %1262 = vmatprep.subr.mxu0 0.0
        %1263 = vmatpush1.msra.mxu0 0.0
        %1264 = vmatprep.subr.mxu0 0.0
        %1265 = vmatpush1.msra.mxu0 0.0
        %1266 = vmatprep.subr.mxu0 0.0
        %1267 = vmatpush1.msra.mxu0 0.0
        %1268 = vmatprep.subr.mxu0 0.0
        %1269 = vmatpush1.msra.mxu0 0.0
        %1270 = vmatprep.subr.mxu0 0.0
        %1271 = vmatpush1.msra.mxu0 0.0
        %1272 = vmatprep.subr.mxu0 0.0
        %1273 = vmatpush1.msra.mxu0 0.0
        %1274 = vmatprep.subr.mxu0 0.0
        %1275 = vmatpush1.msra.mxu0 0.0
        %1276 = vmatprep.subr.mxu0 0.0
        %1277 = vmatpush1.msra.mxu0 0.0
        %1278 = vmatprep.subr.mxu0 0.0
        %1279 = vmatpush1.msra.mxu0 0.0
        %1280 = vmatprep.subr.mxu0 0.0
        %1281 = vmatpush1.msra.mxu0 0.0
        %1282 = vmatprep.subr.mxu0 0.0
        %1283 = vmatpush1.msra.mxu0 0.0
        %1284 = vmatprep.subr.mxu0 0.0
        %1285 = vmatpush1.msra.mxu0 0.0
        %1286 = vmatprep.subr.mxu0 0.0
        %1287 = vmatpush1.msra.mxu0 0.0
        %1288 = vmatprep.subr.mxu0 0.0
        %1289 = vmatpush1.msra.mxu0 0.0
        %1290 = vmatprep.subr.mxu0 0.0
        %1291 = vmatpush1.msra.mxu0 0.0
        %1292 = vmatprep.subr.mxu0 0.0
        %1293 = vmatpush1.msra.mxu0 0.0
        %1294 = vmatprep.subr.mxu0 0.0
        %1295 = vmatpush1.msra.mxu0 0.0
        %1296 = vmatprep.subr.mxu0 0.0
        %1297 = vmatpush1.msra.mxu0 0.0
        %1298 = vmatprep.subr.mxu0 0.0
        %1299 = vmatpush1.msra.mxu0 0.0
        %1300 = vmatprep.subr.mxu0 0.0
        %1301 = vmatpush1.msra.mxu0 0.0
        %1302 = vmatprep.subr.mxu0 0.0
        %1303 = vmatpush1.msra.mxu0 0.0
        %1304 = vmatprep.subr.mxu0 0.0
        %1305 = vmatpush1.msra.mxu0 0.0
        %1306 = vmatprep.mubr.f32.mxu0 0.0
        %v1307 = vand.u32 %v914, 4294901760
        %1308 = vmatmul.mubr.f32.gmra.mrb[0].mxu0 %v1307
        %v1309 = vpop.f32.mrb[0].mxu0
        %v1310 = vadd.f32 %v1041, %v1309
        %v1311 = vpop.f32.mrb[0].mxu0
        %v1312 = vadd.f32 %v1043, %v1311
        %1313 = vmatprep.mubr.f32.mxu0 0.0
        %v1314 = vand.u32 %v917, 4294901760
        %1315 = vmatmul.mubr.f32.gmra.mrb[0].mxu0 %v1314
        %v1316 = vpop.f32.mrb[0].mxu0
        %v1317 = vadd.f32 %v1052, %v1316
        %v1318 = vpop.f32.mrb[0].mxu0
        %v1319 = vadd.f32 %v1054, %v1318
        %1320 = vmatprep.mubr.f32.mxu0 0.0
        %v1321 = vand.u32 %v920, 4294901760
        %1322 = vmatmul.mubr.f32.gmra.mrb[0].mxu0 %v1321
        %v1323 = vpop.f32.mrb[0].mxu0
        %v1324 = vadd.f32 %v1063, %v1323
        %v1325 = vpop.f32.mrb[0].mxu0
        %v1326 = vadd.f32 %v1065, %v1325
        %1327 = vmatprep.mubr.f32.mxu0 0.0
        %v1328 = vand.u32 %v923, 4294901760
        %1329 = vmatmul.mubr.f32.gmra.mrb[0].mxu0 %v1328
        %v1330 = vpop.f32.mrb[0].mxu0
        %v1331 = vadd.f32 %v1074, %v1330
        %v1332 = vpop.f32.mrb[0].mxu0
        %v1333 = vadd.f32 %v1076, %v1332
        %1334 = vmatprep.mubr.f32.mxu0 0.0
        %v1335 = vand.u32 %v926, 4294901760
        %1336 = vmatmul.mubr.f32.gmra.mrb[0].mxu0 %v1335
        %v1337 = vpop.f32.mrb[0].mxu0
        %v1338 = vadd.f32 %v1085, %v1337
        %v1339 = vpop.f32.mrb[0].mxu0
        %v1340 = vadd.f32 %v1087, %v1339
        %1341 = vmatprep.mubr.f32.mxu0 0.0
        %v1342 = vand.u32 %v929, 4294901760
        %1343 = vmatmul.mubr.f32.gmra.mrb[0].mxu0 %v1342
        %v1344 = vpop.f32.mrb[0].mxu0
        %v1345 = vadd.f32 %v1096, %v1344
        %v1346 = vpop.f32.mrb[0].mxu0
        %v1347 = vadd.f32 %v1098, %v1346
        %1348 = vmatprep.mubr.f32.mxu0 0.0
        %v1349 = vand.u32 %v932, 4294901760
        %1350 = vmatmul.mubr.f32.gmra.mrb[0].mxu0 %v1349
        %v1351 = vpop.f32.mrb[0].mxu0
        %v1352 = vadd.f32 %v1107, %v1351
        %v1353 = vpop.f32.mrb[0].mxu0
        %v1354 = vadd.f32 %v1109, %v1353
        %1355 = vmatprep.mubr.f32.mxu0 0.0
        %v1356 = vand.u32 %v935, 4294901760
        %1357 = vmatmul.mubr.f32.gmra.mrb[0].mxu0 %v1356
        %v1358 = vpop.f32.mrb[0].mxu0
        %v1359 = vadd.f32 %v1118, %v1358
        %v1360 = vpop.f32.mrb[0].mxu0
        %v1361 = vadd.f32 %v1120, %v1360
        %1362 = vmatprep.mubr.f32.mxu0 0.0
        %v1363 = vand.u32 %v938, 4294901760
        %1364 = vmatmul.mubr.f32.gmra.mrb[0].mxu0 %v1363
        %v1365 = vpop.f32.mrb[0].mxu0
        %v1366 = vadd.f32 %v1129, %v1365
        %v1367 = vpop.f32.mrb[0].mxu0
        %v1368 = vadd.f32 %v1131, %v1367
        %1369 = vmatprep.mubr.f32.mxu0 0.0
        %v1370 = vand.u32 %v941, 4294901760
        %1371 = vmatmul.mubr.f32.gmra.mrb[0].mxu0 %v1370
        %v1372 = vpop.f32.mrb[0].mxu0
        %v1373 = vadd.f32 %v1140, %v1372
        %v1374 = vpop.f32.mrb[0].mxu0
        %v1375 = vadd.f32 %v1142, %v1374
        %1376 = vmatprep.mubr.f32.mxu0 0.0
        %v1377 = vand.u32 %v944, 4294901760
        %1378 = vmatmul.mubr.f32.gmra.mrb[0].mxu0 %v1377
        %v1379 = vpop.f32.mrb[0].mxu0
        %v1380 = vadd.f32 %v1151, %v1379
        %v1381 = vpop.f32.mrb[0].mxu0
        %v1382 = vadd.f32 %v1153, %v1381
        %1383 = vmatprep.mubr.f32.mxu0 0.0
        %v1384 = vand.u32 %v947, 4294901760
        %1385 = vmatmul.mubr.f32.gmra.mrb[0].mxu0 %v1384
        %v1386 = vpop.f32.mrb[0].mxu0
        %v1387 = vadd.f32 %v1162, %v1386
        %v1388 = vpop.f32.mrb[0].mxu0
        %v1389 = vadd.f32 %v1164, %v1388
        %1390 = vmatprep.mubr.f32.mxu0 0.0
        %v1391 = vand.u32 %v950, 4294901760
        %1392 = vmatmul.mubr.f32.gmra.mrb[0].mxu0 %v1391
        %v1393 = vpop.f32.mrb[0].mxu0
        %v1394 = vadd.f32 %v1173, %v1393
        %v1395 = vpop.f32.mrb[0].mxu0
        %v1396 = vadd.f32 %v1175, %v1395
        %1397 = vmatprep.mubr.f32.mxu0 0.0
        %v1398 = vand.u32 %v953, 4294901760
        %1399 = vmatmul.mubr.f32.gmra.mrb[0].mxu0 %v1398
        %v1400 = vpop.f32.mrb[0].mxu0
        %v1401 = vadd.f32 %v1184, %v1400
        %v1402 = vpop.f32.mrb[0].mxu0
        %v1403 = vadd.f32 %v1186, %v1402
        %1404 = vmatprep.mubr.f32.mxu0 0.0
        %v1405 = vand.u32 %v956, 4294901760
        %1406 = vmatmul.mubr.f32.gmra.mrb[0].mxu0 %v1405
        %v1407 = vpop.f32.mrb[0].mxu0
        %v1408 = vadd.f32 %v1195, %v1407
        %v1409 = vpop.f32.mrb[0].mxu0
        %v1410 = vadd.f32 %v1197, %v1409
        %1411 = vmatprep.mubr.f32.mxu0 0.0
        %v1412 = vand.u32 %v959, 4294901760
        %1413 = vmatmul.mubr.f32.gmra.mrb[0].mxu0 %v1412
        %v1414 = vpop.f32.mrb[0].mxu0
        %v1415 = vadd.f32 %v1206, %v1414
        %v1416 = vpop.f32.mrb[0].mxu0
        %v1417 = vadd.f32 %v1208, %v1416
        %1418 = vmatprep.mubr.f32.mxu0 0.0
        %v1419 = vand.u32 %v962, 4294901760
        %1420 = vmatmul.mubr.f32.gmra.mrb[0].mxu0 %v1419
        %v1421 = vpop.f32.mrb[0].mxu0
        %v1422 = vadd.f32 %v1217, %v1421
        %v1423 = vpop.f32.mrb[0].mxu0
        %v1424 = vadd.f32 %v1219, %v1423
        %1425 = vmatprep.mubr.f32.mxu0 0.0
        %v1426 = vand.u32 %v965, 4294901760
        %1427 = vmatmul.mubr.f32.gmra.mrb[0].mxu0 %v1426
        %v1428 = vpop.f32.mrb[0].mxu0
        %v1429 = vadd.f32 %v1228, %v1428
        %v1430 = vpop.f32.mrb[0].mxu0
        %v1431 = vadd.f32 %v1230, %v1430
        %1432 = vdwg.mxu0
        %v1433 = vand.u32 %v849, 4294901760
        %v1434 = vsub.f32 %v849, %v1433
        %1435 = vmatprep.subr.mxu0 %v1434
        %v1436 = vand.u32 %v848, 4294901760
        %v1437 = vsub.f32 %v848, %v1436
        %1438 = vmatpush1.msra.mxu0 %v1437
        %1439 = vmatprep.subr.mxu0 0.0
        %1440 = vmatpush1.msra.mxu0 0.0
        %1441 = vmatprep.subr.mxu0 0.0
        %1442 = vmatpush1.msra.mxu0 0.0
        %1443 = vmatprep.subr.mxu0 0.0
        %1444 = vmatpush1.msra.mxu0 0.0
        %1445 = vmatprep.subr.mxu0 0.0
        %1446 = vmatpush1.msra.mxu0 0.0
        %1447 = vmatprep.subr.mxu0 0.0
        %1448 = vmatpush1.msra.mxu0 0.0
        %1449 = vmatprep.subr.mxu0 0.0
        %1450 = vmatpush1.msra.mxu0 0.0
        %1451 = vmatprep.subr.mxu0 0.0
        %1452 = vmatpush1.msra.mxu0 0.0
        %1453 = vmatprep.subr.mxu0 0.0
        %1454 = vmatpush1.msra.mxu0 0.0
        %1455 = vmatprep.subr.mxu0 0.0
        %1456 = vmatpush1.msra.mxu0 0.0
        %1457 = vmatprep.subr.mxu0 0.0
        %1458 = vmatpush1.msra.mxu0 0.0
        %1459 = vmatprep.subr.mxu0 0.0
        %1460 = vmatpush1.msra.mxu0 0.0
        %1461 = vmatprep.subr.mxu0 0.0
        %1462 = vmatpush1.msra.mxu0 0.0
        %1463 = vmatprep.subr.mxu0 0.0
        %1464 = vmatpush1.msra.mxu0 0.0
        %1465 = vmatprep.subr.mxu0 0.0
        %1466 = vmatpush1.msra.mxu0 0.0
        %1467 = vmatprep.subr.mxu0 0.0
        %1468 = vmatpush1.msra.mxu0 0.0
        %1469 = vmatprep.subr.mxu0 0.0
        %1470 = vmatpush1.msra.mxu0 0.0
        %1471 = vmatprep.subr.mxu0 0.0
        %1472 = vmatpush1.msra.mxu0 0.0
        %1473 = vmatprep.subr.mxu0 0.0
        %1474 = vmatpush1.msra.mxu0 0.0
        %1475 = vmatprep.subr.mxu0 0.0
        %1476 = vmatpush1.msra.mxu0 0.0
        %1477 = vmatprep.subr.mxu0 0.0
        %1478 = vmatpush1.msra.mxu0 0.0
        %1479 = vmatprep.subr.mxu0 0.0
        %1480 = vmatpush1.msra.mxu0 0.0
        %1481 = vmatprep.subr.mxu0 0.0
        %1482 = vmatpush1.msra.mxu0 0.0
        %1483 = vmatprep.subr.mxu0 0.0
        %1484 = vmatpush1.msra.mxu0 0.0
        %1485 = vmatprep.subr.mxu0 0.0
        %1486 = vmatpush1.msra.mxu0 0.0
        %1487 = vmatprep.subr.mxu0 0.0
        %1488 = vmatpush1.msra.mxu0 0.0
        %1489 = vmatprep.subr.mxu0 0.0
        %1490 = vmatpush1.msra.mxu0 0.0
        %1491 = vmatprep.subr.mxu0 0.0
        %1492 = vmatpush1.msra.mxu0 0.0
        %1493 = vmatprep.subr.mxu0 0.0
        %1494 = vmatpush1.msra.mxu0 0.0
        %1495 = vmatprep.subr.mxu0 0.0
        %1496 = vmatpush1.msra.mxu0 0.0
        %1497 = vmatprep.subr.mxu0 0.0
        %1498 = vmatpush1.msra.mxu0 0.0
        %1499 = vmatprep.subr.mxu0 0.0
        %1500 = vmatpush1.msra.mxu0 0.0
        %1501 = vmatprep.mubr.f32.mxu0 0.0
        %v1502 = vand.u32 %v914, 4294901760
        %v1503 = vsub.f32 %v914, %v1502
        %1504 = vmatmul.mubr.f32.gmra.mrb[0].mxu0 %v1503
        %v1505 = vpop.f32.mrb[0].mxu0
        %v1506 = vadd.f32 %v1310, %v1505
        %v1507 = vpop.f32.mrb[0].mxu0
        %v1508 = vadd.f32 %v1312, %v1507
        %1509 = vmatprep.mubr.f32.mxu0 0.0
        %v1510 = vand.u32 %v917, 4294901760
        %v1511 = vsub.f32 %v917, %v1510
        %1512 = vmatmul.mubr.f32.gmra.mrb[0].mxu0 %v1511
        %v1513 = vpop.f32.mrb[0].mxu0
        %v1514 = vadd.f32 %v1317, %v1513
        %v1515 = vpop.f32.mrb[0].mxu0
        %v1516 = vadd.f32 %v1319, %v1515
        %1517 = vmatprep.mubr.f32.mxu0 0.0
        %v1518 = vand.u32 %v920, 4294901760
        %v1519 = vsub.f32 %v920, %v1518
        %1520 = vmatmul.mubr.f32.gmra.mrb[0].mxu0 %v1519
        %v1521 = vpop.f32.mrb[0].mxu0
        %v1522 = vadd.f32 %v1324, %v1521
        %v1523 = vpop.f32.mrb[0].mxu0
        %v1524 = vadd.f32 %v1326, %v1523
        %1525 = vmatprep.mubr.f32.mxu0 0.0
        %v1526 = vand.u32 %v923, 4294901760
        %v1527 = vsub.f32 %v923, %v1526
        %1528 = vmatmul.mubr.f32.gmra.mrb[0].mxu0 %v1527
        %v1529 = vpop.f32.mrb[0].mxu0
        %v1530 = vadd.f32 %v1331, %v1529
        %v1531 = vpop.f32.mrb[0].mxu0
        %v1532 = vadd.f32 %v1333, %v1531
        %1533 = vmatprep.mubr.f32.mxu0 0.0
        %v1534 = vand.u32 %v926, 4294901760
        %v1535 = vsub.f32 %v926, %v1534
        %1536 = vmatmul.mubr.f32.gmra.mrb[0].mxu0 %v1535
        %v1537 = vpop.f32.mrb[0].mxu0
        %v1538 = vadd.f32 %v1338, %v1537
        %v1539 = vpop.f32.mrb[0].mxu0
        %v1540 = vadd.f32 %v1340, %v1539
        %1541 = vmatprep.mubr.f32.mxu0 0.0
        %v1542 = vand.u32 %v929, 4294901760
        %v1543 = vsub.f32 %v929, %v1542
        %1544 = vmatmul.mubr.f32.gmra.mrb[0].mxu0 %v1543
        %v1545 = vpop.f32.mrb[0].mxu0
        %v1546 = vadd.f32 %v1345, %v1545
        %v1547 = vpop.f32.mrb[0].mxu0
        %v1548 = vadd.f32 %v1347, %v1547
        %1549 = vmatprep.mubr.f32.mxu0 0.0
        %v1550 = vand.u32 %v932, 4294901760
        %v1551 = vsub.f32 %v932, %v1550
        %1552 = vmatmul.mubr.f32.gmra.mrb[0].mxu0 %v1551
        %v1553 = vpop.f32.mrb[0].mxu0
        %v1554 = vadd.f32 %v1352, %v1553
        %v1555 = vpop.f32.mrb[0].mxu0
        %v1556 = vadd.f32 %v1354, %v1555
        %1557 = vmatprep.mubr.f32.mxu0 0.0
        %v1558 = vand.u32 %v935, 4294901760
        %v1559 = vsub.f32 %v935, %v1558
        %1560 = vmatmul.mubr.f32.gmra.mrb[0].mxu0 %v1559
        %v1561 = vpop.f32.mrb[0].mxu0
        %v1562 = vadd.f32 %v1359, %v1561
        %v1563 = vpop.f32.mrb[0].mxu0
        %v1564 = vadd.f32 %v1361, %v1563
        %1565 = vmatprep.mubr.f32.mxu0 0.0
        %v1566 = vand.u32 %v938, 4294901760
        %v1567 = vsub.f32 %v938, %v1566
        %1568 = vmatmul.mubr.f32.gmra.mrb[0].mxu0 %v1567
        %v1569 = vpop.f32.mrb[0].mxu0
        %v1570 = vadd.f32 %v1366, %v1569
        %v1571 = vpop.f32.mrb[0].mxu0
        %v1572 = vadd.f32 %v1368, %v1571
        %1573 = vmatprep.mubr.f32.mxu0 0.0
        %v1574 = vand.u32 %v941, 4294901760
        %v1575 = vsub.f32 %v941, %v1574
        %1576 = vmatmul.mubr.f32.gmra.mrb[0].mxu0 %v1575
        %v1577 = vpop.f32.mrb[0].mxu0
        %v1578 = vadd.f32 %v1373, %v1577
        %v1579 = vpop.f32.mrb[0].mxu0
        %v1580 = vadd.f32 %v1375, %v1579
        %1581 = vmatprep.mubr.f32.mxu0 0.0
        %v1582 = vand.u32 %v944, 4294901760
        %v1583 = vsub.f32 %v944, %v1582
        %1584 = vmatmul.mubr.f32.gmra.mrb[0].mxu0 %v1583
        %v1585 = vpop.f32.mrb[0].mxu0
        %v1586 = vadd.f32 %v1380, %v1585
        %v1587 = vpop.f32.mrb[0].mxu0
        %v1588 = vadd.f32 %v1382, %v1587
        %1589 = vmatprep.mubr.f32.mxu0 0.0
        %v1590 = vand.u32 %v947, 4294901760
        %v1591 = vsub.f32 %v947, %v1590
        %1592 = vmatmul.mubr.f32.gmra.mrb[0].mxu0 %v1591
        %v1593 = vpop.f32.mrb[0].mxu0
        %v1594 = vadd.f32 %v1387, %v1593
        %v1595 = vpop.f32.mrb[0].mxu0
        %v1596 = vadd.f32 %v1389, %v1595
        %1597 = vmatprep.mubr.f32.mxu0 0.0
        %v1598 = vand.u32 %v950, 4294901760
        %v1599 = vsub.f32 %v950, %v1598
        %1600 = vmatmul.mubr.f32.gmra.mrb[0].mxu0 %v1599
        %v1601 = vpop.f32.mrb[0].mxu0
        %v1602 = vadd.f32 %v1394, %v1601
        %v1603 = vpop.f32.mrb[0].mxu0
        %v1604 = vadd.f32 %v1396, %v1603
        %1605 = vmatprep.mubr.f32.mxu0 0.0
        %v1606 = vand.u32 %v953, 4294901760
        %v1607 = vsub.f32 %v953, %v1606
        %1608 = vmatmul.mubr.f32.gmra.mrb[0].mxu0 %v1607
        %v1609 = vpop.f32.mrb[0].mxu0
        %v1610 = vadd.f32 %v1401, %v1609
        %v1611 = vpop.f32.mrb[0].mxu0
        %v1612 = vadd.f32 %v1403, %v1611
        %1613 = vmatprep.mubr.f32.mxu0 0.0
        %v1614 = vand.u32 %v956, 4294901760
        %v1615 = vsub.f32 %v956, %v1614
        %1616 = vmatmul.mubr.f32.gmra.mrb[0].mxu0 %v1615
        %v1617 = vpop.f32.mrb[0].mxu0
        %v1618 = vadd.f32 %v1408, %v1617
        %v1619 = vpop.f32.mrb[0].mxu0
        %v1620 = vadd.f32 %v1410, %v1619
        %1621 = vmatprep.mubr.f32.mxu0 0.0
        %v1622 = vand.u32 %v959, 4294901760
        %v1623 = vsub.f32 %v959, %v1622
        %1624 = vmatmul.mubr.f32.gmra.mrb[0].mxu0 %v1623
        %v1625 = vpop.f32.mrb[0].mxu0
        %v1626 = vadd.f32 %v1415, %v1625
        %v1627 = vpop.f32.mrb[0].mxu0
        %v1628 = vadd.f32 %v1417, %v1627
        %1629 = vmatprep.mubr.f32.mxu0 0.0
        %v1630 = vand.u32 %v962, 4294901760
        %v1631 = vsub.f32 %v962, %v1630
        %1632 = vmatmul.mubr.f32.gmra.mrb[0].mxu0 %v1631
        %v1633 = vpop.f32.mrb[0].mxu0
        %v1634 = vadd.f32 %v1422, %v1633
        %v1635 = vpop.f32.mrb[0].mxu0
        %v1636 = vadd.f32 %v1424, %v1635
        %1637 = vmatprep.mubr.f32.mxu0 0.0
        %v1638 = vand.u32 %v965, 4294901760
        %v1639 = vsub.f32 %v965, %v1638
        %1640 = vmatmul.mubr.f32.gmra.mrb[0].mxu0 %v1639
        %v1641 = vpop.f32.mrb[0].mxu0
        %v1642 = vadd.f32 %v1429, %v1641
        %v1643 = vpop.f32.mrb[0].mxu0
        %v1644 = vadd.f32 %v1431, %v1643
        %1645 = vdwg.mxu0
        %v1646 = vand.u32 %v849, 4294901760
        %1647 = vmatprep.subr.mxu0 %v1646
        %v1648 = vand.u32 %v848, 4294901760
        %1649 = vmatpush1.msra.mxu0 %v1648
        %1650 = vmatprep.subr.mxu0 0.0
        %1651 = vmatpush1.msra.mxu0 0.0
        %1652 = vmatprep.subr.mxu0 0.0
        %1653 = vmatpush1.msra.mxu0 0.0
        %1654 = vmatprep.subr.mxu0 0.0
        %1655 = vmatpush1.msra.mxu0 0.0
        %1656 = vmatprep.subr.mxu0 0.0
        %1657 = vmatpush1.msra.mxu0 0.0
        %1658 = vmatprep.subr.mxu0 0.0
        %1659 = vmatpush1.msra.mxu0 0.0
        %1660 = vmatprep.subr.mxu0 0.0
        %1661 = vmatpush1.msra.mxu0 0.0
        %1662 = vmatprep.subr.mxu0 0.0
        %1663 = vmatpush1.msra.mxu0 0.0
        %1664 = vmatprep.subr.mxu0 0.0
        %1665 = vmatpush1.msra.mxu0 0.0
        %1666 = vmatprep.subr.mxu0 0.0
        %1667 = vmatpush1.msra.mxu0 0.0
        %1668 = vmatprep.subr.mxu0 0.0
        %1669 = vmatpush1.msra.mxu0 0.0
        %1670 = vmatprep.subr.mxu0 0.0
        %1671 = vmatpush1.msra.mxu0 0.0
        %1672 = vmatprep.subr.mxu0 0.0
        %1673 = vmatpush1.msra.mxu0 0.0
        %1674 = vmatprep.subr.mxu0 0.0
        %1675 = vmatpush1.msra.mxu0 0.0
        %1676 = vmatprep.subr.mxu0 0.0
        %1677 = vmatpush1.msra.mxu0 0.0
        %1678 = vmatprep.subr.mxu0 0.0
        %1679 = vmatpush1.msra.mxu0 0.0
        %1680 = vmatprep.subr.mxu0 0.0
        %1681 = vmatpush1.msra.mxu0 0.0
        %1682 = vmatprep.subr.mxu0 0.0
        %1683 = vmatpush1.msra.mxu0 0.0
        %1684 = vmatprep.subr.mxu0 0.0
        %1685 = vmatpush1.msra.mxu0 0.0
        %1686 = vmatprep.subr.mxu0 0.0
        %1687 = vmatpush1.msra.mxu0 0.0
        %1688 = vmatprep.subr.mxu0 0.0
        %1689 = vmatpush1.msra.mxu0 0.0
        %1690 = vmatprep.subr.mxu0 0.0
        %1691 = vmatpush1.msra.mxu0 0.0
        %1692 = vmatprep.subr.mxu0 0.0
        %1693 = vmatpush1.msra.mxu0 0.0
        %1694 = vmatprep.subr.mxu0 0.0
        %1695 = vmatpush1.msra.mxu0 0.0
        %1696 = vmatprep.subr.mxu0 0.0
        %1697 = vmatpush1.msra.mxu0 0.0
        %1698 = vmatprep.subr.mxu0 0.0
        %1699 = vmatpush1.msra.mxu0 0.0
        %1700 = vmatprep.subr.mxu0 0.0
        %1701 = vmatpush1.msra.mxu0 0.0
        %1702 = vmatprep.subr.mxu0 0.0
        %1703 = vmatpush1.msra.mxu0 0.0
        %1704 = vmatprep.subr.mxu0 0.0
        %1705 = vmatpush1.msra.mxu0 0.0
        %1706 = vmatprep.subr.mxu0 0.0
        %1707 = vmatpush1.msra.mxu0 0.0
        %1708 = vmatprep.subr.mxu0 0.0
        %1709 = vmatpush1.msra.mxu0 0.0
        %1710 = vmatprep.subr.mxu0 0.0
        %1711 = vmatpush1.msra.mxu0 0.0
        %1712 = vmatprep.mubr.f32.mxu0 0.0
        %v1713 = vand.u32 %v914, 4294901760
        %v1714 = vsub.f32 %v914, %v1713
        %v1715 = vand.u32 %v1714, 4294901760
        %1716 = vmatmul.mubr.f32.gmra.mrb[0].mxu0 %v1715
        %v1717 = vpop.f32.mrb[0].mxu0
        %v1718 = vadd.f32 %v1506, %v1717
        %v1719 = vpop.f32.mrb[0].mxu0
        %v1720 = vadd.f32 %v1508, %v1719
        %1721 = vmatprep.mubr.f32.mxu0 0.0
        %v1722 = vand.u32 %v917, 4294901760
        %v1723 = vsub.f32 %v917, %v1722
        %v1724 = vand.u32 %v1723, 4294901760
        %1725 = vmatmul.mubr.f32.gmra.mrb[0].mxu0 %v1724
        %v1726 = vpop.f32.mrb[0].mxu0
        %v1727 = vadd.f32 %v1514, %v1726
        %v1728 = vpop.f32.mrb[0].mxu0
        %v1729 = vadd.f32 %v1516, %v1728
        %1730 = vmatprep.mubr.f32.mxu0 0.0
        %v1731 = vand.u32 %v920, 4294901760
        %v1732 = vsub.f32 %v920, %v1731
        %v1733 = vand.u32 %v1732, 4294901760
        %1734 = vmatmul.mubr.f32.gmra.mrb[0].mxu0 %v1733
        %v1735 = vpop.f32.mrb[0].mxu0
        %v1736 = vadd.f32 %v1522, %v1735
        %v1737 = vpop.f32.mrb[0].mxu0
        %v1738 = vadd.f32 %v1524, %v1737
        %1739 = vmatprep.mubr.f32.mxu0 0.0
        %v1740 = vand.u32 %v923, 4294901760
        %v1741 = vsub.f32 %v923, %v1740
        %v1742 = vand.u32 %v1741, 4294901760
        %1743 = vmatmul.mubr.f32.gmra.mrb[0].mxu0 %v1742
        %v1744 = vpop.f32.mrb[0].mxu0
        %v1745 = vadd.f32 %v1530, %v1744
        %v1746 = vpop.f32.mrb[0].mxu0
        %v1747 = vadd.f32 %v1532, %v1746
        %1748 = vmatprep.mubr.f32.mxu0 0.0
        %v1749 = vand.u32 %v926, 4294901760
        %v1750 = vsub.f32 %v926, %v1749
        %v1751 = vand.u32 %v1750, 4294901760
        %1752 = vmatmul.mubr.f32.gmra.mrb[0].mxu0 %v1751
        %v1753 = vpop.f32.mrb[0].mxu0
        %v1754 = vadd.f32 %v1538, %v1753
        %v1755 = vpop.f32.mrb[0].mxu0
        %v1756 = vadd.f32 %v1540, %v1755
        %1757 = vmatprep.mubr.f32.mxu0 0.0
        %v1758 = vand.u32 %v929, 4294901760
        %v1759 = vsub.f32 %v929, %v1758
        %v1760 = vand.u32 %v1759, 4294901760
        %1761 = vmatmul.mubr.f32.gmra.mrb[0].mxu0 %v1760
        %v1762 = vpop.f32.mrb[0].mxu0
        %v1763 = vadd.f32 %v1546, %v1762
        %v1764 = vpop.f32.mrb[0].mxu0
        %v1765 = vadd.f32 %v1548, %v1764
        %1766 = vmatprep.mubr.f32.mxu0 0.0
        %v1767 = vand.u32 %v932, 4294901760
        %v1768 = vsub.f32 %v932, %v1767
        %v1769 = vand.u32 %v1768, 4294901760
        %1770 = vmatmul.mubr.f32.gmra.mrb[0].mxu0 %v1769
        %v1771 = vpop.f32.mrb[0].mxu0
        %v1772 = vadd.f32 %v1554, %v1771
        %v1773 = vpop.f32.mrb[0].mxu0
        %v1774 = vadd.f32 %v1556, %v1773
        %1775 = vmatprep.mubr.f32.mxu0 0.0
        %v1776 = vand.u32 %v935, 4294901760
        %v1777 = vsub.f32 %v935, %v1776
        %v1778 = vand.u32 %v1777, 4294901760
        %1779 = vmatmul.mubr.f32.gmra.mrb[0].mxu0 %v1778
        %v1780 = vpop.f32.mrb[0].mxu0
        %v1781 = vadd.f32 %v1562, %v1780
        %v1782 = vpop.f32.mrb[0].mxu0
        %v1783 = vadd.f32 %v1564, %v1782
        %1784 = vmatprep.mubr.f32.mxu0 0.0
        %v1785 = vand.u32 %v938, 4294901760
        %v1786 = vsub.f32 %v938, %v1785
        %v1787 = vand.u32 %v1786, 4294901760
        %1788 = vmatmul.mubr.f32.gmra.mrb[0].mxu0 %v1787
        %v1789 = vpop.f32.mrb[0].mxu0
        %v1790 = vadd.f32 %v1570, %v1789
        %v1791 = vpop.f32.mrb[0].mxu0
        %v1792 = vadd.f32 %v1572, %v1791
        %1793 = vmatprep.mubr.f32.mxu0 0.0
        %v1794 = vand.u32 %v941, 4294901760
        %v1795 = vsub.f32 %v941, %v1794
        %v1796 = vand.u32 %v1795, 4294901760
        %1797 = vmatmul.mubr.f32.gmra.mrb[0].mxu0 %v1796
        %v1798 = vpop.f32.mrb[0].mxu0
        %v1799 = vadd.f32 %v1578, %v1798
        %v1800 = vpop.f32.mrb[0].mxu0
        %v1801 = vadd.f32 %v1580, %v1800
        %1802 = vmatprep.mubr.f32.mxu0 0.0
        %v1803 = vand.u32 %v944, 4294901760
        %v1804 = vsub.f32 %v944, %v1803
        %v1805 = vand.u32 %v1804, 4294901760
        %1806 = vmatmul.mubr.f32.gmra.mrb[0].mxu0 %v1805
        %v1807 = vpop.f32.mrb[0].mxu0
        %v1808 = vadd.f32 %v1586, %v1807
        %v1809 = vpop.f32.mrb[0].mxu0
        %v1810 = vadd.f32 %v1588, %v1809
        %1811 = vmatprep.mubr.f32.mxu0 0.0
        %v1812 = vand.u32 %v947, 4294901760
        %v1813 = vsub.f32 %v947, %v1812
        %v1814 = vand.u32 %v1813, 4294901760
        %1815 = vmatmul.mubr.f32.gmra.mrb[0].mxu0 %v1814
        %v1816 = vpop.f32.mrb[0].mxu0
        %v1817 = vadd.f32 %v1594, %v1816
        %v1818 = vpop.f32.mrb[0].mxu0
        %v1819 = vadd.f32 %v1596, %v1818
        %1820 = vmatprep.mubr.f32.mxu0 0.0
        %v1821 = vand.u32 %v950, 4294901760
        %v1822 = vsub.f32 %v950, %v1821
        %v1823 = vand.u32 %v1822, 4294901760
        %1824 = vmatmul.mubr.f32.gmra.mrb[0].mxu0 %v1823
        %v1825 = vpop.f32.mrb[0].mxu0
        %v1826 = vadd.f32 %v1602, %v1825
        %v1827 = vpop.f32.mrb[0].mxu0
        %v1828 = vadd.f32 %v1604, %v1827
        %1829 = vmatprep.mubr.f32.mxu0 0.0
        %v1830 = vand.u32 %v953, 4294901760
        %v1831 = vsub.f32 %v953, %v1830
        %v1832 = vand.u32 %v1831, 4294901760
        %1833 = vmatmul.mubr.f32.gmra.mrb[0].mxu0 %v1832
        %v1834 = vpop.f32.mrb[0].mxu0
        %v1835 = vadd.f32 %v1610, %v1834
        %v1836 = vpop.f32.mrb[0].mxu0
        %v1837 = vadd.f32 %v1612, %v1836
        %1838 = vmatprep.mubr.f32.mxu0 0.0
        %v1839 = vand.u32 %v956, 4294901760
        %v1840 = vsub.f32 %v956, %v1839
        %v1841 = vand.u32 %v1840, 4294901760
        %1842 = vmatmul.mubr.f32.gmra.mrb[0].mxu0 %v1841
        %v1843 = vpop.f32.mrb[0].mxu0
        %v1844 = vadd.f32 %v1618, %v1843
        %v1845 = vpop.f32.mrb[0].mxu0
        %v1846 = vadd.f32 %v1620, %v1845
        %1847 = vmatprep.mubr.f32.mxu0 0.0
        %v1848 = vand.u32 %v959, 4294901760
        %v1849 = vsub.f32 %v959, %v1848
        %v1850 = vand.u32 %v1849, 4294901760
        %1851 = vmatmul.mubr.f32.gmra.mrb[0].mxu0 %v1850
        %v1852 = vpop.f32.mrb[0].mxu0
        %v1853 = vadd.f32 %v1626, %v1852
        %v1854 = vpop.f32.mrb[0].mxu0
        %v1855 = vadd.f32 %v1628, %v1854
        %1856 = vmatprep.mubr.f32.mxu0 0.0
        %v1857 = vand.u32 %v962, 4294901760
        %v1858 = vsub.f32 %v962, %v1857
        %v1859 = vand.u32 %v1858, 4294901760
        %1860 = vmatmul.mubr.f32.gmra.mrb[0].mxu0 %v1859
        %v1861 = vpop.f32.mrb[0].mxu0
        %v1862 = vadd.f32 %v1634, %v1861
        %v1863 = vpop.f32.mrb[0].mxu0
        %v1864 = vadd.f32 %v1636, %v1863
        %1865 = vmatprep.mubr.f32.mxu0 0.0
        %v1866 = vand.u32 %v965, 4294901760
        %v1867 = vsub.f32 %v965, %v1866
        %v1868 = vand.u32 %v1867, 4294901760
        %1869 = vmatmul.mubr.f32.gmra.mrb[0].mxu0 %v1868
        %v1870 = vpop.f32.mrb[0].mxu0
        %v1871 = vadd.f32 %v1642, %v1870
        %v1872 = vpop.f32.mrb[0].mxu0
        %v1873 = vadd.f32 %v1644, %v1872
        %1874 = vdwg.mxu0
        %v1875 = vand.u32 %v849, 4294901760
        %v1876 = vsub.f32 %v849, %v1875
        %v1877 = vand.u32 %v1876, 4294901760
        %1878 = vmatprep.subr.mxu0 %v1877
        %v1879 = vand.u32 %v848, 4294901760
        %v1880 = vsub.f32 %v848, %v1879
        %v1881 = vand.u32 %v1880, 4294901760
        %1882 = vmatpush1.msra.mxu0 %v1881
        %1883 = vmatprep.subr.mxu0 0.0
        %1884 = vmatpush1.msra.mxu0 0.0
        %1885 = vmatprep.subr.mxu0 0.0
        %1886 = vmatpush1.msra.mxu0 0.0
        %1887 = vmatprep.subr.mxu0 0.0
        %1888 = vmatpush1.msra.mxu0 0.0
        %1889 = vmatprep.subr.mxu0 0.0
        %1890 = vmatpush1.msra.mxu0 0.0
        %1891 = vmatprep.subr.mxu0 0.0
        %1892 = vmatpush1.msra.mxu0 0.0
        %1893 = vmatprep.subr.mxu0 0.0
        %1894 = vmatpush1.msra.mxu0 0.0
        %1895 = vmatprep.subr.mxu0 0.0
        %1896 = vmatpush1.msra.mxu0 0.0
        %1897 = vmatprep.subr.mxu0 0.0
        %1898 = vmatpush1.msra.mxu0 0.0
        %1899 = vmatprep.subr.mxu0 0.0
        %1900 = vmatpush1.msra.mxu0 0.0
        %1901 = vmatprep.subr.mxu0 0.0
        %1902 = vmatpush1.msra.mxu0 0.0
        %1903 = vmatprep.subr.mxu0 0.0
        %1904 = vmatpush1.msra.mxu0 0.0
        %1905 = vmatprep.subr.mxu0 0.0
        %1906 = vmatpush1.msra.mxu0 0.0
        %1907 = vmatprep.subr.mxu0 0.0
        %1908 = vmatpush1.msra.mxu0 0.0
        %1909 = vmatprep.subr.mxu0 0.0
        %1910 = vmatpush1.msra.mxu0 0.0
        %1911 = vmatprep.subr.mxu0 0.0
        %1912 = vmatpush1.msra.mxu0 0.0
        %1913 = vmatprep.subr.mxu0 0.0
        %1914 = vmatpush1.msra.mxu0 0.0
        %1915 = vmatprep.subr.mxu0 0.0
        %1916 = vmatpush1.msra.mxu0 0.0
        %1917 = vmatprep.subr.mxu0 0.0
        %1918 = vmatpush1.msra.mxu0 0.0
        %1919 = vmatprep.subr.mxu0 0.0
        %1920 = vmatpush1.msra.mxu0 0.0
        %1921 = vmatprep.subr.mxu0 0.0
        %1922 = vmatpush1.msra.mxu0 0.0
        %1923 = vmatprep.subr.mxu0 0.0
        %1924 = vmatpush1.msra.mxu0 0.0
        %1925 = vmatprep.subr.mxu0 0.0
        %1926 = vmatpush1.msra.mxu0 0.0
        %1927 = vmatprep.subr.mxu0 0.0
        %1928 = vmatpush1.msra.mxu0 0.0
        %1929 = vmatprep.subr.mxu0 0.0
        %1930 = vmatpush1.msra.mxu0 0.0
        %1931 = vmatprep.subr.mxu0 0.0
        %1932 = vmatpush1.msra.mxu0 0.0
        %1933 = vmatprep.subr.mxu0 0.0
        %1934 = vmatpush1.msra.mxu0 0.0
        %1935 = vmatprep.subr.mxu0 0.0
        %1936 = vmatpush1.msra.mxu0 0.0
        %1937 = vmatprep.subr.mxu0 0.0
        %1938 = vmatpush1.msra.mxu0 0.0
        %1939 = vmatprep.subr.mxu0 0.0
        %1940 = vmatpush1.msra.mxu0 0.0
        %1941 = vmatprep.subr.mxu0 0.0
        %1942 = vmatpush1.msra.mxu0 0.0
        %1943 = vmatprep.subr.mxu0 0.0
        %1944 = vmatpush1.msra.mxu0 0.0
        %1945 = vmatprep.mubr.f32.mxu0 0.0
        %v1946 = vand.u32 %v914, 4294901760
        %1947 = vmatmul.mubr.f32.gmra.mrb[0].mxu0 %v1946
        %v1948 = vpop.f32.mrb[0].mxu0
        %v1949 = vadd.f32 %v1718, %v1948
        %v1950 = vpop.f32.mrb[0].mxu0
        %v1951 = vadd.f32 %v1720, %v1950
        %1952 = vmatprep.mubr.f32.mxu0 0.0
        %v1953 = vand.u32 %v917, 4294901760
        %1954 = vmatmul.mubr.f32.gmra.mrb[0].mxu0 %v1953
        %v1955 = vpop.f32.mrb[0].mxu0
        %v1956 = vadd.f32 %v1727, %v1955
        %v1957 = vpop.f32.mrb[0].mxu0
        %v1958 = vadd.f32 %v1729, %v1957
        %1959 = vmatprep.mubr.f32.mxu0 0.0
        %v1960 = vand.u32 %v920, 4294901760
        %1961 = vmatmul.mubr.f32.gmra.mrb[0].mxu0 %v1960
        %v1962 = vpop.f32.mrb[0].mxu0
        %v1963 = vadd.f32 %v1736, %v1962
        %v1964 = vpop.f32.mrb[0].mxu0
        %v1965 = vadd.f32 %v1738, %v1964
        %1966 = vmatprep.mubr.f32.mxu0 0.0
        %v1967 = vand.u32 %v923, 4294901760
        %1968 = vmatmul.mubr.f32.gmra.mrb[0].mxu0 %v1967
        %v1969 = vpop.f32.mrb[0].mxu0
        %v1970 = vadd.f32 %v1745, %v1969
        %v1971 = vpop.f32.mrb[0].mxu0
        %v1972 = vadd.f32 %v1747, %v1971
        %1973 = vmatprep.mubr.f32.mxu0 0.0
        %v1974 = vand.u32 %v926, 4294901760
        %1975 = vmatmul.mubr.f32.gmra.mrb[0].mxu0 %v1974
        %v1976 = vpop.f32.mrb[0].mxu0
        %v1977 = vadd.f32 %v1754, %v1976
        %v1978 = vpop.f32.mrb[0].mxu0
        %v1979 = vadd.f32 %v1756, %v1978
        %1980 = vmatprep.mubr.f32.mxu0 0.0
        %v1981 = vand.u32 %v929, 4294901760
        %1982 = vmatmul.mubr.f32.gmra.mrb[0].mxu0 %v1981
        %v1983 = vpop.f32.mrb[0].mxu0
        %v1984 = vadd.f32 %v1763, %v1983
        %v1985 = vpop.f32.mrb[0].mxu0
        %v1986 = vadd.f32 %v1765, %v1985
        %1987 = vmatprep.mubr.f32.mxu0 0.0
        %v1988 = vand.u32 %v932, 4294901760
        %1989 = vmatmul.mubr.f32.gmra.mrb[0].mxu0 %v1988
        %v1990 = vpop.f32.mrb[0].mxu0
        %v1991 = vadd.f32 %v1772, %v1990
        %v1992 = vpop.f32.mrb[0].mxu0
        %v1993 = vadd.f32 %v1774, %v1992
        %1994 = vmatprep.mubr.f32.mxu0 0.0
        %v1995 = vand.u32 %v935, 4294901760
        %1996 = vmatmul.mubr.f32.gmra.mrb[0].mxu0 %v1995
        %v1997 = vpop.f32.mrb[0].mxu0
        %v1998 = vadd.f32 %v1781, %v1997
        %v1999 = vpop.f32.mrb[0].mxu0
        %v2000 = vadd.f32 %v1783, %v1999
        %2001 = vmatprep.mubr.f32.mxu0 0.0
        %v2002 = vand.u32 %v938, 4294901760
        %2003 = vmatmul.mubr.f32.gmra.mrb[0].mxu0 %v2002
        %v2004 = vpop.f32.mrb[0].mxu0
        %v2005 = vadd.f32 %v1790, %v2004
        %v2006 = vpop.f32.mrb[0].mxu0
        %v2007 = vadd.f32 %v1792, %v2006
        %2008 = vmatprep.mubr.f32.mxu0 0.0
        %v2009 = vand.u32 %v941, 4294901760
        %2010 = vmatmul.mubr.f32.gmra.mrb[0].mxu0 %v2009
        %v2011 = vpop.f32.mrb[0].mxu0
        %v2012 = vadd.f32 %v1799, %v2011
        %v2013 = vpop.f32.mrb[0].mxu0
        %v2014 = vadd.f32 %v1801, %v2013
        %2015 = vmatprep.mubr.f32.mxu0 0.0
        %v2016 = vand.u32 %v944, 4294901760
        %2017 = vmatmul.mubr.f32.gmra.mrb[0].mxu0 %v2016
        %v2018 = vpop.f32.mrb[0].mxu0
        %v2019 = vadd.f32 %v1808, %v2018
        %v2020 = vpop.f32.mrb[0].mxu0
        %v2021 = vadd.f32 %v1810, %v2020
        %2022 = vmatprep.mubr.f32.mxu0 0.0
        %v2023 = vand.u32 %v947, 4294901760
        %2024 = vmatmul.mubr.f32.gmra.mrb[0].mxu0 %v2023
        %v2025 = vpop.f32.mrb[0].mxu0
        %v2026 = vadd.f32 %v1817, %v2025
        %v2027 = vpop.f32.mrb[0].mxu0
        %v2028 = vadd.f32 %v1819, %v2027
        %2029 = vmatprep.mubr.f32.mxu0 0.0
        %v2030 = vand.u32 %v950, 4294901760
        %2031 = vmatmul.mubr.f32.gmra.mrb[0].mxu0 %v2030
        %v2032 = vpop.f32.mrb[0].mxu0
        %v2033 = vadd.f32 %v1826, %v2032
        %v2034 = vpop.f32.mrb[0].mxu0
        %v2035 = vadd.f32 %v1828, %v2034
        %2036 = vmatprep.mubr.f32.mxu0 0.0
        %v2037 = vand.u32 %v953, 4294901760
        %2038 = vmatmul.mubr.f32.gmra.mrb[0].mxu0 %v2037
        %v2039 = vpop.f32.mrb[0].mxu0
        %v2040 = vadd.f32 %v1835, %v2039
        %v2041 = vpop.f32.mrb[0].mxu0
        %v2042 = vadd.f32 %v1837, %v2041
        %2043 = vmatprep.mubr.f32.mxu0 0.0
        %v2044 = vand.u32 %v956, 4294901760
        %2045 = vmatmul.mubr.f32.gmra.mrb[0].mxu0 %v2044
        %v2046 = vpop.f32.mrb[0].mxu0
        %v2047 = vadd.f32 %v1844, %v2046
        %v2048 = vpop.f32.mrb[0].mxu0
        %v2049 = vadd.f32 %v1846, %v2048
        %2050 = vmatprep.mubr.f32.mxu0 0.0
        %v2051 = vand.u32 %v959, 4294901760
        %2052 = vmatmul.mubr.f32.gmra.mrb[0].mxu0 %v2051
        %v2053 = vpop.f32.mrb[0].mxu0
        %v2054 = vadd.f32 %v1853, %v2053
        %v2055 = vpop.f32.mrb[0].mxu0
        %v2056 = vadd.f32 %v1855, %v2055
        %2057 = vmatprep.mubr.f32.mxu0 0.0
        %v2058 = vand.u32 %v962, 4294901760
        %2059 = vmatmul.mubr.f32.gmra.mrb[0].mxu0 %v2058
        %v2060 = vpop.f32.mrb[0].mxu0
        %v2061 = vadd.f32 %v1862, %v2060
        %v2062 = vpop.f32.mrb[0].mxu0
        %v2063 = vadd.f32 %v1864, %v2062
        %2064 = vmatprep.mubr.f32.mxu0 0.0
        %v2065 = vand.u32 %v965, 4294901760
        %2066 = vmatmul.mubr.f32.gmra.mrb[0].mxu0 %v2065
        %v2067 = vpop.f32.mrb[0].mxu0
        %v2068 = vadd.f32 %v1871, %v2067
        %v2069 = vpop.f32.mrb[0].mxu0
        %v2070 = vadd.f32 %v1873, %v2069
        %2071 = vdwg.mxu0
        %v2072 = vand.u32 %v849, 4294901760
        %2073 = vmatprep.subr.mxu0 %v2072
        %v2074 = vand.u32 %v848, 4294901760
        %2075 = vmatpush1.msra.mxu0 %v2074
        %2076 = vmatprep.subr.mxu0 0.0
        %2077 = vmatpush1.msra.mxu0 0.0
        %2078 = vmatprep.subr.mxu0 0.0
        %2079 = vmatpush1.msra.mxu0 0.0
        %2080 = vmatprep.subr.mxu0 0.0
        %2081 = vmatpush1.msra.mxu0 0.0
        %2082 = vmatprep.subr.mxu0 0.0
        %2083 = vmatpush1.msra.mxu0 0.0
        %2084 = vmatprep.subr.mxu0 0.0
        %2085 = vmatpush1.msra.mxu0 0.0
        %2086 = vmatprep.subr.mxu0 0.0
        %2087 = vmatpush1.msra.mxu0 0.0
        %2088 = vmatprep.subr.mxu0 0.0
        %2089 = vmatpush1.msra.mxu0 0.0
        %2090 = vmatprep.subr.mxu0 0.0
        %2091 = vmatpush1.msra.mxu0 0.0
        %2092 = vmatprep.subr.mxu0 0.0
        %2093 = vmatpush1.msra.mxu0 0.0
        %2094 = vmatprep.subr.mxu0 0.0
        %2095 = vmatpush1.msra.mxu0 0.0
        %2096 = vmatprep.subr.mxu0 0.0
        %2097 = vmatpush1.msra.mxu0 0.0
        %2098 = vmatprep.subr.mxu0 0.0
        %2099 = vmatpush1.msra.mxu0 0.0
        %2100 = vmatprep.subr.mxu0 0.0
        %2101 = vmatpush1.msra.mxu0 0.0
        %2102 = vmatprep.subr.mxu0 0.0
        %2103 = vmatpush1.msra.mxu0 0.0
        %2104 = vmatprep.subr.mxu0 0.0
        %2105 = vmatpush1.msra.mxu0 0.0
        %2106 = vmatprep.subr.mxu0 0.0
        %2107 = vmatpush1.msra.mxu0 0.0
        %2108 = vmatprep.subr.mxu0 0.0
        %2109 = vmatpush1.msra.mxu0 0.0
        %2110 = vmatprep.subr.mxu0 0.0
        %2111 = vmatpush1.msra.mxu0 0.0
        %2112 = vmatprep.subr.mxu0 0.0
        %2113 = vmatpush1.msra.mxu0 0.0
        %2114 = vmatprep.subr.mxu0 0.0
        %2115 = vmatpush1.msra.mxu0 0.0
        %2116 = vmatprep.subr.mxu0 0.0
        %2117 = vmatpush1.msra.mxu0 0.0
        %2118 = vmatprep.subr.mxu0 0.0
        %2119 = vmatpush1.msra.mxu0 0.0
        %2120 = vmatprep.subr.mxu0 0.0
        %2121 = vmatpush1.msra.mxu0 0.0
        %2122 = vmatprep.subr.mxu0 0.0
        %2123 = vmatpush1.msra.mxu0 0.0
        %2124 = vmatprep.subr.mxu0 0.0
        %2125 = vmatpush1.msra.mxu0 0.0
        %2126 = vmatprep.subr.mxu0 0.0
        %2127 = vmatpush1.msra.mxu0 0.0
        %2128 = vmatprep.subr.mxu0 0.0
        %2129 = vmatpush1.msra.mxu0 0.0
        %2130 = vmatprep.subr.mxu0 0.0
        %2131 = vmatpush1.msra.mxu0 0.0
        %2132 = vmatprep.subr.mxu0 0.0
        %2133 = vmatpush1.msra.mxu0 0.0
        %2134 = vmatprep.subr.mxu0 0.0
        %2135 = vmatpush1.msra.mxu0 0.0
        %2136 = vmatprep.subr.mxu0 0.0
        %2137 = vmatpush1.msra.mxu0 0.0
        %2138 = vmatprep.mubr.f32.mxu0 0.0
        %v2139 = vand.u32 %v914, 4294901760
        %2140 = vmatmul.mubr.f32.gmra.mrb[0].mxu0 %v2139
        %v2141 = vpop.f32.mrb[0].mxu0
        %v2142 = vadd.f32 %v1949, %v2141
        %v2143 = vpop.f32.mrb[0].mxu0
        %v2144 = vadd.f32 %v1951, %v2143
        %2145 = vmatprep.mubr.f32.mxu0 0.0
        %v2146 = vand.u32 %v917, 4294901760
        %2147 = vmatmul.mubr.f32.gmra.mrb[0].mxu0 %v2146
        %v2148 = vpop.f32.mrb[0].mxu0
        %v2149 = vadd.f32 %v1956, %v2148
        %v2150 = vpop.f32.mrb[0].mxu0
        %v2151 = vadd.f32 %v1958, %v2150
        %2152 = vmatprep.mubr.f32.mxu0 0.0
        %v2153 = vand.u32 %v920, 4294901760
        %2154 = vmatmul.mubr.f32.gmra.mrb[0].mxu0 %v2153
        %v2155 = vpop.f32.mrb[0].mxu0
        %v2156 = vadd.f32 %v1963, %v2155
        %v2157 = vpop.f32.mrb[0].mxu0
        %v2158 = vadd.f32 %v1965, %v2157
        %2159 = vmatprep.mubr.f32.mxu0 0.0
        %v2160 = vand.u32 %v923, 4294901760
        %2161 = vmatmul.mubr.f32.gmra.mrb[0].mxu0 %v2160
        %v2162 = vpop.f32.mrb[0].mxu0
        %v2163 = vadd.f32 %v1970, %v2162
        %v2164 = vpop.f32.mrb[0].mxu0
        %v2165 = vadd.f32 %v1972, %v2164
        %2166 = vmatprep.mubr.f32.mxu0 0.0
        %v2167 = vand.u32 %v926, 4294901760
        %2168 = vmatmul.mubr.f32.gmra.mrb[0].mxu0 %v2167
        %v2169 = vpop.f32.mrb[0].mxu0
        %v2170 = vadd.f32 %v1977, %v2169
        %v2171 = vpop.f32.mrb[0].mxu0
        %v2172 = vadd.f32 %v1979, %v2171
        %2173 = vmatprep.mubr.f32.mxu0 0.0
        %v2174 = vand.u32 %v929, 4294901760
        %2175 = vmatmul.mubr.f32.gmra.mrb[0].mxu0 %v2174
        %v2176 = vpop.f32.mrb[0].mxu0
        %v2177 = vadd.f32 %v1984, %v2176
        %v2178 = vpop.f32.mrb[0].mxu0
        %v2179 = vadd.f32 %v1986, %v2178
        %2180 = vmatprep.mubr.f32.mxu0 0.0
        %v2181 = vand.u32 %v932, 4294901760
        %2182 = vmatmul.mubr.f32.gmra.mrb[0].mxu0 %v2181
        %v2183 = vpop.f32.mrb[0].mxu0
        %v2184 = vadd.f32 %v1991, %v2183
        %v2185 = vpop.f32.mrb[0].mxu0
        %v2186 = vadd.f32 %v1993, %v2185
        %2187 = vmatprep.mubr.f32.mxu0 0.0
        %v2188 = vand.u32 %v935, 4294901760
        %2189 = vmatmul.mubr.f32.gmra.mrb[0].mxu0 %v2188
        %v2190 = vpop.f32.mrb[0].mxu0
        %v2191 = vadd.f32 %v1998, %v2190
        %v2192 = vpop.f32.mrb[0].mxu0
        %v2193 = vadd.f32 %v2000, %v2192
        %2194 = vmatprep.mubr.f32.mxu0 0.0
        %v2195 = vand.u32 %v938, 4294901760
        %2196 = vmatmul.mubr.f32.gmra.mrb[0].mxu0 %v2195
        %v2197 = vpop.f32.mrb[0].mxu0
        %v2198 = vadd.f32 %v2005, %v2197
        %v2199 = vpop.f32.mrb[0].mxu0
        %v2200 = vadd.f32 %v2007, %v2199
        %2201 = vmatprep.mubr.f32.mxu0 0.0
        %v2202 = vand.u32 %v941, 4294901760
        %2203 = vmatmul.mubr.f32.gmra.mrb[0].mxu0 %v2202
        %v2204 = vpop.f32.mrb[0].mxu0
        %v2205 = vadd.f32 %v2012, %v2204
        %v2206 = vpop.f32.mrb[0].mxu0
        %v2207 = vadd.f32 %v2014, %v2206
        %2208 = vmatprep.mubr.f32.mxu0 0.0
        %v2209 = vand.u32 %v944, 4294901760
        %2210 = vmatmul.mubr.f32.gmra.mrb[0].mxu0 %v2209
        %v2211 = vpop.f32.mrb[0].mxu0
        %v2212 = vadd.f32 %v2019, %v2211
        %v2213 = vpop.f32.mrb[0].mxu0
        %v2214 = vadd.f32 %v2021, %v2213
        %2215 = vmatprep.mubr.f32.mxu0 0.0
        %v2216 = vand.u32 %v947, 4294901760
        %2217 = vmatmul.mubr.f32.gmra.mrb[0].mxu0 %v2216
        %v2218 = vpop.f32.mrb[0].mxu0
        %v2219 = vadd.f32 %v2026, %v2218
        %v2220 = vpop.f32.mrb[0].mxu0
        %v2221 = vadd.f32 %v2028, %v2220
        %2222 = vmatprep.mubr.f32.mxu0 0.0
        %v2223 = vand.u32 %v950, 4294901760
        %2224 = vmatmul.mubr.f32.gmra.mrb[0].mxu0 %v2223
        %v2225 = vpop.f32.mrb[0].mxu0
        %v2226 = vadd.f32 %v2033, %v2225
        %v2227 = vpop.f32.mrb[0].mxu0
        %v2228 = vadd.f32 %v2035, %v2227
        %2229 = vmatprep.mubr.f32.mxu0 0.0
        %v2230 = vand.u32 %v953, 4294901760
        %2231 = vmatmul.mubr.f32.gmra.mrb[0].mxu0 %v2230
        %v2232 = vpop.f32.mrb[0].mxu0
        %v2233 = vadd.f32 %v2040, %v2232
        %v2234 = vpop.f32.mrb[0].mxu0
        %v2235 = vadd.f32 %v2042, %v2234
        %2236 = vmatprep.mubr.f32.mxu0 0.0
        %v2237 = vand.u32 %v956, 4294901760
        %2238 = vmatmul.mubr.f32.gmra.mrb[0].mxu0 %v2237
        %v2239 = vpop.f32.mrb[0].mxu0
        %v2240 = vadd.f32 %v2047, %v2239
        %v2241 = vpop.f32.mrb[0].mxu0
        %v2242 = vadd.f32 %v2049, %v2241
        %2243 = vmatprep.mubr.f32.mxu0 0.0
        %v2244 = vand.u32 %v959, 4294901760
        %2245 = vmatmul.mubr.f32.gmra.mrb[0].mxu0 %v2244
        %v2246 = vpop.f32.mrb[0].mxu0
        %v2247 = vadd.f32 %v2054, %v2246
        %v2248 = vpop.f32.mrb[0].mxu0
        %v2249 = vadd.f32 %v2056, %v2248
        %2250 = vmatprep.mubr.f32.mxu0 0.0
        %v2251 = vand.u32 %v962, 4294901760
        %2252 = vmatmul.mubr.f32.gmra.mrb[0].mxu0 %v2251
        %v2253 = vpop.f32.mrb[0].mxu0
        %v2254 = vadd.f32 %v2061, %v2253
        %v2255 = vpop.f32.mrb[0].mxu0
        %v2256 = vadd.f32 %v2063, %v2255
        %2257 = vmatprep.mubr.f32.mxu0 0.0
        %v2258 = vand.u32 %v965, 4294901760
        %2259 = vmatmul.mubr.f32.gmra.mrb[0].mxu0 %v2258
        %v2260 = vpop.f32.mrb[0].mxu0
        %v2261 = vadd.f32 %v2068, %v2260
        %v2262 = vpop.f32.mrb[0].mxu0
        %v2263 = vadd.f32 %v2070, %v2262
        %2264 = vdwg.mxu0
        %2265 = vmatprep.subr.mxu0 0.0
        %v2266 = vand.u32 %v850, 4294901760
        %2267 = vmatpush1.msra.mxu0 %v2266
        %2268 = vmatprep.subr.mxu0 0.0
        %2269 = vmatpush1.msra.mxu0 0.0
        %2270 = vmatprep.subr.mxu0 0.0
        %2271 = vmatpush1.msra.mxu0 0.0
        %2272 = vmatprep.subr.mxu0 0.0
        %2273 = vmatpush1.msra.mxu0 0.0
        %2274 = vmatprep.subr.mxu0 0.0
        %2275 = vmatpush1.msra.mxu0 0.0
        %2276 = vmatprep.subr.mxu0 0.0
        %2277 = vmatpush1.msra.mxu0 0.0
        %2278 = vmatprep.subr.mxu0 0.0
        %2279 = vmatpush1.msra.mxu0 0.0
        %2280 = vmatprep.subr.mxu0 0.0
        %2281 = vmatpush1.msra.mxu0 0.0
        %2282 = vmatprep.subr.mxu0 0.0
        %2283 = vmatpush1.msra.mxu0 0.0
        %2284 = vmatprep.subr.mxu0 0.0
        %2285 = vmatpush1.msra.mxu0 0.0
        %2286 = vmatprep.subr.mxu0 0.0
        %2287 = vmatpush1.msra.mxu0 0.0
        %2288 = vmatprep.subr.mxu0 0.0
        %2289 = vmatpush1.msra.mxu0 0.0
        %2290 = vmatprep.subr.mxu0 0.0
        %2291 = vmatpush1.msra.mxu0 0.0
        %2292 = vmatprep.subr.mxu0 0.0
        %2293 = vmatpush1.msra.mxu0 0.0
        %2294 = vmatprep.subr.mxu0 0.0
        %2295 = vmatpush1.msra.mxu0 0.0
        %2296 = vmatprep.subr.mxu0 0.0
        %2297 = vmatpush1.msra.mxu0 0.0
        %2298 = vmatprep.subr.mxu0 0.0
        %2299 = vmatpush1.msra.mxu0 0.0
        %2300 = vmatprep.subr.mxu0 0.0
        %2301 = vmatpush1.msra.mxu0 0.0
        %2302 = vmatprep.subr.mxu0 0.0
        %2303 = vmatpush1.msra.mxu0 0.0
        %2304 = vmatprep.subr.mxu0 0.0
        %2305 = vmatpush1.msra.mxu0 0.0
        %2306 = vmatprep.subr.mxu0 0.0
        %2307 = vmatpush1.msra.mxu0 0.0
        %2308 = vmatprep.subr.mxu0 0.0
        %2309 = vmatpush1.msra.mxu0 0.0
        %2310 = vmatprep.subr.mxu0 0.0
        %2311 = vmatpush1.msra.mxu0 0.0
        %2312 = vmatprep.subr.mxu0 0.0
        %2313 = vmatpush1.msra.mxu0 0.0
        %2314 = vmatprep.subr.mxu0 0.0
        %2315 = vmatpush1.msra.mxu0 0.0
        %2316 = vmatprep.subr.mxu0 0.0
        %2317 = vmatpush1.msra.mxu0 0.0
        %2318 = vmatprep.subr.mxu0 0.0
        %2319 = vmatpush1.msra.mxu0 0.0
        %2320 = vmatprep.subr.mxu0 0.0
        %2321 = vmatpush1.msra.mxu0 0.0
        %2322 = vmatprep.subr.mxu0 0.0
        %2323 = vmatpush1.msra.mxu0 0.0
        %2324 = vmatprep.subr.mxu0 0.0
        %2325 = vmatpush1.msra.mxu0 0.0
        %2326 = vmatprep.subr.mxu0 0.0
        %2327 = vmatpush1.msra.mxu0 0.0
        %2328 = vmatprep.subr.mxu0 0.0
        %2329 = vmatpush1.msra.mxu0 0.0
        %2330 = vmatprep.mubr.f32.mxu0 0.0
        %v2331 = vand.u32 %v914, 4294901760
        %v2332 = vsub.f32 %v914, %v2331
        %v2333 = vand.u32 %v2332, 4294901760
        %v2334 = vsub.f32 %v2332, %v2333
        %v2335 = vand.u32 %v2334, 4294901760
        %2336 = vmatmul.mubr.f32.gmra.mrb[0].mxu0 %v2335
        %v2337 = vpop.f32.mrb[0].mxu0
        %v2338 = vadd.f32 0.0, %v2337
        %v2339 = vpop.f32.mrb[0].mxu0
        %2340 = vmatprep.mubr.f32.mxu0 0.0
        %v2341 = vand.u32 %v917, 4294901760
        %v2342 = vsub.f32 %v917, %v2341
        %v2343 = vand.u32 %v2342, 4294901760
        %v2344 = vsub.f32 %v2342, %v2343
        %v2345 = vand.u32 %v2344, 4294901760
        %2346 = vmatmul.mubr.f32.gmra.mrb[0].mxu0 %v2345
        %v2347 = vpop.f32.mrb[0].mxu0
        %v2348 = vadd.f32 0.0, %v2347
        %v2349 = vpop.f32.mrb[0].mxu0
        %2350 = vmatprep.mubr.f32.mxu0 0.0
        %v2351 = vand.u32 %v920, 4294901760
        %v2352 = vsub.f32 %v920, %v2351
        %v2353 = vand.u32 %v2352, 4294901760
        %v2354 = vsub.f32 %v2352, %v2353
        %v2355 = vand.u32 %v2354, 4294901760
        %2356 = vmatmul.mubr.f32.gmra.mrb[0].mxu0 %v2355
        %v2357 = vpop.f32.mrb[0].mxu0
        %v2358 = vadd.f32 0.0, %v2357
        %v2359 = vpop.f32.mrb[0].mxu0
        %2360 = vmatprep.mubr.f32.mxu0 0.0
        %v2361 = vand.u32 %v923, 4294901760
        %v2362 = vsub.f32 %v923, %v2361
        %v2363 = vand.u32 %v2362, 4294901760
        %v2364 = vsub.f32 %v2362, %v2363
        %v2365 = vand.u32 %v2364, 4294901760
        %2366 = vmatmul.mubr.f32.gmra.mrb[0].mxu0 %v2365
        %v2367 = vpop.f32.mrb[0].mxu0
        %v2368 = vadd.f32 0.0, %v2367
        %v2369 = vpop.f32.mrb[0].mxu0
        %2370 = vmatprep.mubr.f32.mxu0 0.0
        %v2371 = vand.u32 %v926, 4294901760
        %v2372 = vsub.f32 %v926, %v2371
        %v2373 = vand.u32 %v2372, 4294901760
        %v2374 = vsub.f32 %v2372, %v2373
        %v2375 = vand.u32 %v2374, 4294901760
        %2376 = vmatmul.mubr.f32.gmra.mrb[0].mxu0 %v2375
        %v2377 = vpop.f32.mrb[0].mxu0
        %v2378 = vadd.f32 0.0, %v2377
        %v2379 = vpop.f32.mrb[0].mxu0
        %2380 = vmatprep.mubr.f32.mxu0 0.0
        %v2381 = vand.u32 %v929, 4294901760
        %v2382 = vsub.f32 %v929, %v2381
        %v2383 = vand.u32 %v2382, 4294901760
        %v2384 = vsub.f32 %v2382, %v2383
        %v2385 = vand.u32 %v2384, 4294901760
        %2386 = vmatmul.mubr.f32.gmra.mrb[0].mxu0 %v2385
        %v2387 = vpop.f32.mrb[0].mxu0
        %v2388 = vadd.f32 0.0, %v2387
        %v2389 = vpop.f32.mrb[0].mxu0
        %2390 = vmatprep.mubr.f32.mxu0 0.0
        %v2391 = vand.u32 %v932, 4294901760
        %v2392 = vsub.f32 %v932, %v2391
        %v2393 = vand.u32 %v2392, 4294901760
        %v2394 = vsub.f32 %v2392, %v2393
        %v2395 = vand.u32 %v2394, 4294901760
        %2396 = vmatmul.mubr.f32.gmra.mrb[0].mxu0 %v2395
        %v2397 = vpop.f32.mrb[0].mxu0
        %v2398 = vadd.f32 0.0, %v2397
        %v2399 = vpop.f32.mrb[0].mxu0
        %2400 = vmatprep.mubr.f32.mxu0 0.0
        %v2401 = vand.u32 %v935, 4294901760
        %v2402 = vsub.f32 %v935, %v2401
        %v2403 = vand.u32 %v2402, 4294901760
        %v2404 = vsub.f32 %v2402, %v2403
        %v2405 = vand.u32 %v2404, 4294901760
        %2406 = vmatmul.mubr.f32.gmra.mrb[0].mxu0 %v2405
        %v2407 = vpop.f32.mrb[0].mxu0
        %v2408 = vadd.f32 0.0, %v2407
        %v2409 = vpop.f32.mrb[0].mxu0
        %2410 = vmatprep.mubr.f32.mxu0 0.0
        %v2411 = vand.u32 %v938, 4294901760
        %v2412 = vsub.f32 %v938, %v2411
        %v2413 = vand.u32 %v2412, 4294901760
        %v2414 = vsub.f32 %v2412, %v2413
        %v2415 = vand.u32 %v2414, 4294901760
        %2416 = vmatmul.mubr.f32.gmra.mrb[0].mxu0 %v2415
        %v2417 = vpop.f32.mrb[0].mxu0
        %v2418 = vadd.f32 0.0, %v2417
        %v2419 = vpop.f32.mrb[0].mxu0
        %2420 = vmatprep.mubr.f32.mxu0 0.0
        %v2421 = vand.u32 %v941, 4294901760
        %v2422 = vsub.f32 %v941, %v2421
        %v2423 = vand.u32 %v2422, 4294901760
        %v2424 = vsub.f32 %v2422, %v2423
        %v2425 = vand.u32 %v2424, 4294901760
        %2426 = vmatmul.mubr.f32.gmra.mrb[0].mxu0 %v2425
        %v2427 = vpop.f32.mrb[0].mxu0
        %v2428 = vadd.f32 0.0, %v2427
        %v2429 = vpop.f32.mrb[0].mxu0
        %2430 = vmatprep.mubr.f32.mxu0 0.0
        %v2431 = vand.u32 %v944, 4294901760
        %v2432 = vsub.f32 %v944, %v2431
        %v2433 = vand.u32 %v2432, 4294901760
        %v2434 = vsub.f32 %v2432, %v2433
        %v2435 = vand.u32 %v2434, 4294901760
        %2436 = vmatmul.mubr.f32.gmra.mrb[0].mxu0 %v2435
        %v2437 = vpop.f32.mrb[0].mxu0
        %v2438 = vadd.f32 0.0, %v2437
        %v2439 = vpop.f32.mrb[0].mxu0
        %2440 = vmatprep.mubr.f32.mxu0 0.0
        %v2441 = vand.u32 %v947, 4294901760
        %v2442 = vsub.f32 %v947, %v2441
        %v2443 = vand.u32 %v2442, 4294901760
        %v2444 = vsub.f32 %v2442, %v2443
        %v2445 = vand.u32 %v2444, 4294901760
        %2446 = vmatmul.mubr.f32.gmra.mrb[0].mxu0 %v2445
        %v2447 = vpop.f32.mrb[0].mxu0
        %v2448 = vadd.f32 0.0, %v2447
        %v2449 = vpop.f32.mrb[0].mxu0
        %2450 = vmatprep.mubr.f32.mxu0 0.0
        %v2451 = vand.u32 %v950, 4294901760
        %v2452 = vsub.f32 %v950, %v2451
        %v2453 = vand.u32 %v2452, 4294901760
        %v2454 = vsub.f32 %v2452, %v2453
        %v2455 = vand.u32 %v2454, 4294901760
        %2456 = vmatmul.mubr.f32.gmra.mrb[0].mxu0 %v2455
        %v2457 = vpop.f32.mrb[0].mxu0
        %v2458 = vadd.f32 0.0, %v2457
        %v2459 = vpop.f32.mrb[0].mxu0
        %2460 = vmatprep.mubr.f32.mxu0 0.0
        %v2461 = vand.u32 %v953, 4294901760
        %v2462 = vsub.f32 %v953, %v2461
        %v2463 = vand.u32 %v2462, 4294901760
        %v2464 = vsub.f32 %v2462, %v2463
        %v2465 = vand.u32 %v2464, 4294901760
        %2466 = vmatmul.mubr.f32.gmra.mrb[0].mxu0 %v2465
        %v2467 = vpop.f32.mrb[0].mxu0
        %v2468 = vadd.f32 0.0, %v2467
        %v2469 = vpop.f32.mrb[0].mxu0
        %2470 = vmatprep.mubr.f32.mxu0 0.0
        %v2471 = vand.u32 %v956, 4294901760
        %v2472 = vsub.f32 %v956, %v2471
        %v2473 = vand.u32 %v2472, 4294901760
        %v2474 = vsub.f32 %v2472, %v2473
        %v2475 = vand.u32 %v2474, 4294901760
        %2476 = vmatmul.mubr.f32.gmra.mrb[0].mxu0 %v2475
        %v2477 = vpop.f32.mrb[0].mxu0
        %v2478 = vadd.f32 0.0, %v2477
        %v2479 = vpop.f32.mrb[0].mxu0
        %2480 = vmatprep.mubr.f32.mxu0 0.0
        %v2481 = vand.u32 %v959, 4294901760
        %v2482 = vsub.f32 %v959, %v2481
        %v2483 = vand.u32 %v2482, 4294901760
        %v2484 = vsub.f32 %v2482, %v2483
        %v2485 = vand.u32 %v2484, 4294901760
        %2486 = vmatmul.mubr.f32.gmra.mrb[0].mxu0 %v2485
        %v2487 = vpop.f32.mrb[0].mxu0
        %v2488 = vadd.f32 0.0, %v2487
        %v2489 = vpop.f32.mrb[0].mxu0
        %2490 = vmatprep.mubr.f32.mxu0 0.0
        %v2491 = vand.u32 %v962, 4294901760
        %v2492 = vsub.f32 %v962, %v2491
        %v2493 = vand.u32 %v2492, 4294901760
        %v2494 = vsub.f32 %v2492, %v2493
        %v2495 = vand.u32 %v2494, 4294901760
        %2496 = vmatmul.mubr.f32.gmra.mrb[0].mxu0 %v2495
        %v2497 = vpop.f32.mrb[0].mxu0
        %v2498 = vadd.f32 0.0, %v2497
        %v2499 = vpop.f32.mrb[0].mxu0
        %2500 = vmatprep.mubr.f32.mxu0 0.0
        %v2501 = vand.u32 %v965, 4294901760
        %v2502 = vsub.f32 %v965, %v2501
        %v2503 = vand.u32 %v2502, 4294901760
        %v2504 = vsub.f32 %v2502, %v2503
        %v2505 = vand.u32 %v2504, 4294901760
        %2506 = vmatmul.mubr.f32.gmra.mrb[0].mxu0 %v2505
        %v2507 = vpop.f32.mrb[0].mxu0
        %v2508 = vadd.f32 0.0, %v2507
        %v2509 = vpop.f32.mrb[0].mxu0
        %2510 = vdwg.mxu0
        %2511 = vmatprep.subr.mxu0 0.0
        %v2512 = vand.u32 %v850, 4294901760
        %v2513 = vsub.f32 %v850, %v2512
        %v2514 = vand.u32 %v2513, 4294901760
        %v2515 = vsub.f32 %v2513, %v2514
        %v2516 = vand.u32 %v2515, 4294901760
        %2517 = vmatpush1.msra.mxu0 %v2516
        %2518 = vmatprep.subr.mxu0 0.0
        %2519 = vmatpush1.msra.mxu0 0.0
        %2520 = vmatprep.subr.mxu0 0.0
        %2521 = vmatpush1.msra.mxu0 0.0
        %2522 = vmatprep.subr.mxu0 0.0
        %2523 = vmatpush1.msra.mxu0 0.0
        %2524 = vmatprep.subr.mxu0 0.0
        %2525 = vmatpush1.msra.mxu0 0.0
        %2526 = vmatprep.subr.mxu0 0.0
        %2527 = vmatpush1.msra.mxu0 0.0
        %2528 = vmatprep.subr.mxu0 0.0
        %2529 = vmatpush1.msra.mxu0 0.0
        %2530 = vmatprep.subr.mxu0 0.0
        %2531 = vmatpush1.msra.mxu0 0.0
        %2532 = vmatprep.subr.mxu0 0.0
        %2533 = vmatpush1.msra.mxu0 0.0
        %2534 = vmatprep.subr.mxu0 0.0
        %2535 = vmatpush1.msra.mxu0 0.0
        %2536 = vmatprep.subr.mxu0 0.0
        %2537 = vmatpush1.msra.mxu0 0.0
        %2538 = vmatprep.subr.mxu0 0.0
        %2539 = vmatpush1.msra.mxu0 0.0
        %2540 = vmatprep.subr.mxu0 0.0
        %2541 = vmatpush1.msra.mxu0 0.0
        %2542 = vmatprep.subr.mxu0 0.0
        %2543 = vmatpush1.msra.mxu0 0.0
        %2544 = vmatprep.subr.mxu0 0.0
        %2545 = vmatpush1.msra.mxu0 0.0
        %2546 = vmatprep.subr.mxu0 0.0
        %2547 = vmatpush1.msra.mxu0 0.0
        %2548 = vmatprep.subr.mxu0 0.0
        %2549 = vmatpush1.msra.mxu0 0.0
        %2550 = vmatprep.subr.mxu0 0.0
        %2551 = vmatpush1.msra.mxu0 0.0
        %2552 = vmatprep.subr.mxu0 0.0
        %2553 = vmatpush1.msra.mxu0 0.0
        %2554 = vmatprep.subr.mxu0 0.0
        %2555 = vmatpush1.msra.mxu0 0.0
        %2556 = vmatprep.subr.mxu0 0.0
        %2557 = vmatpush1.msra.mxu0 0.0
        %2558 = vmatprep.subr.mxu0 0.0
        %2559 = vmatpush1.msra.mxu0 0.0
        %2560 = vmatprep.subr.mxu0 0.0
        %2561 = vmatpush1.msra.mxu0 0.0
        %2562 = vmatprep.subr.mxu0 0.0
        %2563 = vmatpush1.msra.mxu0 0.0
        %2564 = vmatprep.subr.mxu0 0.0
        %2565 = vmatpush1.msra.mxu0 0.0
        %2566 = vmatprep.subr.mxu0 0.0
        %2567 = vmatpush1.msra.mxu0 0.0
        %2568 = vmatprep.subr.mxu0 0.0
        %2569 = vmatpush1.msra.mxu0 0.0
        %2570 = vmatprep.subr.mxu0 0.0
        %2571 = vmatpush1.msra.mxu0 0.0
        %2572 = vmatprep.subr.mxu0 0.0
        %2573 = vmatpush1.msra.mxu0 0.0
        %2574 = vmatprep.subr.mxu0 0.0
        %2575 = vmatpush1.msra.mxu0 0.0
        %2576 = vmatprep.subr.mxu0 0.0
        %2577 = vmatpush1.msra.mxu0 0.0
        %2578 = vmatprep.subr.mxu0 0.0
        %2579 = vmatpush1.msra.mxu0 0.0
        %2580 = vmatprep.mubr.f32.mxu0 0.0
        %v2581 = vand.u32 %v914, 4294901760
        %2582 = vmatmul.mubr.f32.gmra.mrb[0].mxu0 %v2581
        %v2583 = vpop.f32.mrb[0].mxu0
        %v2584 = vadd.f32 %v2338, %v2583
        %v2585 = vpop.f32.mrb[0].mxu0
        %2586 = vmatprep.mubr.f32.mxu0 0.0
        %v2587 = vand.u32 %v917, 4294901760
        %2588 = vmatmul.mubr.f32.gmra.mrb[0].mxu0 %v2587
        %v2589 = vpop.f32.mrb[0].mxu0
        %v2590 = vadd.f32 %v2348, %v2589
        %v2591 = vpop.f32.mrb[0].mxu0
        %2592 = vmatprep.mubr.f32.mxu0 0.0
        %v2593 = vand.u32 %v920, 4294901760
        %2594 = vmatmul.mubr.f32.gmra.mrb[0].mxu0 %v2593
        %v2595 = vpop.f32.mrb[0].mxu0
        %v2596 = vadd.f32 %v2358, %v2595
        %v2597 = vpop.f32.mrb[0].mxu0
        %2598 = vmatprep.mubr.f32.mxu0 0.0
        %v2599 = vand.u32 %v923, 4294901760
        %2600 = vmatmul.mubr.f32.gmra.mrb[0].mxu0 %v2599
        %v2601 = vpop.f32.mrb[0].mxu0
        %v2602 = vadd.f32 %v2368, %v2601
        %v2603 = vpop.f32.mrb[0].mxu0
        %2604 = vmatprep.mubr.f32.mxu0 0.0
        %v2605 = vand.u32 %v926, 4294901760
        %2606 = vmatmul.mubr.f32.gmra.mrb[0].mxu0 %v2605
        %v2607 = vpop.f32.mrb[0].mxu0
        %v2608 = vadd.f32 %v2378, %v2607
        %v2609 = vpop.f32.mrb[0].mxu0
        %2610 = vmatprep.mubr.f32.mxu0 0.0
        %v2611 = vand.u32 %v929, 4294901760
        %2612 = vmatmul.mubr.f32.gmra.mrb[0].mxu0 %v2611
        %v2613 = vpop.f32.mrb[0].mxu0
        %v2614 = vadd.f32 %v2388, %v2613
        %v2615 = vpop.f32.mrb[0].mxu0
        %2616 = vmatprep.mubr.f32.mxu0 0.0
        %v2617 = vand.u32 %v932, 4294901760
        %2618 = vmatmul.mubr.f32.gmra.mrb[0].mxu0 %v2617
        %v2619 = vpop.f32.mrb[0].mxu0
        %v2620 = vadd.f32 %v2398, %v2619
        %v2621 = vpop.f32.mrb[0].mxu0
        %2622 = vmatprep.mubr.f32.mxu0 0.0
        %v2623 = vand.u32 %v935, 4294901760
        %2624 = vmatmul.mubr.f32.gmra.mrb[0].mxu0 %v2623
        %v2625 = vpop.f32.mrb[0].mxu0
        %v2626 = vadd.f32 %v2408, %v2625
        %v2627 = vpop.f32.mrb[0].mxu0
        %2628 = vmatprep.mubr.f32.mxu0 0.0
        %v2629 = vand.u32 %v938, 4294901760
        %2630 = vmatmul.mubr.f32.gmra.mrb[0].mxu0 %v2629
        %v2631 = vpop.f32.mrb[0].mxu0
        %v2632 = vadd.f32 %v2418, %v2631
        %v2633 = vpop.f32.mrb[0].mxu0
        %2634 = vmatprep.mubr.f32.mxu0 0.0
        %v2635 = vand.u32 %v941, 4294901760
        %2636 = vmatmul.mubr.f32.gmra.mrb[0].mxu0 %v2635
        %v2637 = vpop.f32.mrb[0].mxu0
        %v2638 = vadd.f32 %v2428, %v2637
        %v2639 = vpop.f32.mrb[0].mxu0
        %2640 = vmatprep.mubr.f32.mxu0 0.0
        %v2641 = vand.u32 %v944, 4294901760
        %2642 = vmatmul.mubr.f32.gmra.mrb[0].mxu0 %v2641
        %v2643 = vpop.f32.mrb[0].mxu0
        %v2644 = vadd.f32 %v2438, %v2643
        %v2645 = vpop.f32.mrb[0].mxu0
        %2646 = vmatprep.mubr.f32.mxu0 0.0
        %v2647 = vand.u32 %v947, 4294901760
        %2648 = vmatmul.mubr.f32.gmra.mrb[0].mxu0 %v2647
        %v2649 = vpop.f32.mrb[0].mxu0
        %v2650 = vadd.f32 %v2448, %v2649
        %v2651 = vpop.f32.mrb[0].mxu0
        %2652 = vmatprep.mubr.f32.mxu0 0.0
        %v2653 = vand.u32 %v950, 4294901760
        %2654 = vmatmul.mubr.f32.gmra.mrb[0].mxu0 %v2653
        %v2655 = vpop.f32.mrb[0].mxu0
        %v2656 = vadd.f32 %v2458, %v2655
        %v2657 = vpop.f32.mrb[0].mxu0
        %2658 = vmatprep.mubr.f32.mxu0 0.0
        %v2659 = vand.u32 %v953, 4294901760
        %2660 = vmatmul.mubr.f32.gmra.mrb[0].mxu0 %v2659
        %v2661 = vpop.f32.mrb[0].mxu0
        %v2662 = vadd.f32 %v2468, %v2661
        %v2663 = vpop.f32.mrb[0].mxu0
        %2664 = vmatprep.mubr.f32.mxu0 0.0
        %v2665 = vand.u32 %v956, 4294901760
        %2666 = vmatmul.mubr.f32.gmra.mrb[0].mxu0 %v2665
        %v2667 = vpop.f32.mrb[0].mxu0
        %v2668 = vadd.f32 %v2478, %v2667
        %v2669 = vpop.f32.mrb[0].mxu0
        %2670 = vmatprep.mubr.f32.mxu0 0.0
        %v2671 = vand.u32 %v959, 4294901760
        %2672 = vmatmul.mubr.f32.gmra.mrb[0].mxu0 %v2671
        %v2673 = vpop.f32.mrb[0].mxu0
        %v2674 = vadd.f32 %v2488, %v2673
        %v2675 = vpop.f32.mrb[0].mxu0
        %2676 = vmatprep.mubr.f32.mxu0 0.0
        %v2677 = vand.u32 %v962, 4294901760
        %2678 = vmatmul.mubr.f32.gmra.mrb[0].mxu0 %v2677
        %v2679 = vpop.f32.mrb[0].mxu0
        %v2680 = vadd.f32 %v2498, %v2679
        %v2681 = vpop.f32.mrb[0].mxu0
        %2682 = vmatprep.mubr.f32.mxu0 0.0
        %v2683 = vand.u32 %v965, 4294901760
        %2684 = vmatmul.mubr.f32.gmra.mrb[0].mxu0 %v2683
        %v2685 = vpop.f32.mrb[0].mxu0
        %v2686 = vadd.f32 %v2508, %v2685
        %v2687 = vpop.f32.mrb[0].mxu0
        %2688 = vdwg.mxu0
        %2689 = vmatprep.subr.mxu0 0.0
        %v2690 = vand.u32 %v850, 4294901760
        %v2691 = vsub.f32 %v850, %v2690
        %2692 = vmatpush1.msra.mxu0 %v2691
        %2693 = vmatprep.subr.mxu0 0.0
        %2694 = vmatpush1.msra.mxu0 0.0
        %2695 = vmatprep.subr.mxu0 0.0
        %2696 = vmatpush1.msra.mxu0 0.0
        %2697 = vmatprep.subr.mxu0 0.0
        %2698 = vmatpush1.msra.mxu0 0.0
        %2699 = vmatprep.subr.mxu0 0.0
        %2700 = vmatpush1.msra.mxu0 0.0
        %2701 = vmatprep.subr.mxu0 0.0
        %2702 = vmatpush1.msra.mxu0 0.0
        %2703 = vmatprep.subr.mxu0 0.0
        %2704 = vmatpush1.msra.mxu0 0.0
        %2705 = vmatprep.subr.mxu0 0.0
        %2706 = vmatpush1.msra.mxu0 0.0
        %2707 = vmatprep.subr.mxu0 0.0
        %2708 = vmatpush1.msra.mxu0 0.0
        %2709 = vmatprep.subr.mxu0 0.0
        %2710 = vmatpush1.msra.mxu0 0.0
        %2711 = vmatprep.subr.mxu0 0.0
        %2712 = vmatpush1.msra.mxu0 0.0
        %2713 = vmatprep.subr.mxu0 0.0
        %2714 = vmatpush1.msra.mxu0 0.0
        %2715 = vmatprep.subr.mxu0 0.0
        %2716 = vmatpush1.msra.mxu0 0.0
        %2717 = vmatprep.subr.mxu0 0.0
        %2718 = vmatpush1.msra.mxu0 0.0
        %2719 = vmatprep.subr.mxu0 0.0
        %2720 = vmatpush1.msra.mxu0 0.0
        %2721 = vmatprep.subr.mxu0 0.0
        %2722 = vmatpush1.msra.mxu0 0.0
        %2723 = vmatprep.subr.mxu0 0.0
        %2724 = vmatpush1.msra.mxu0 0.0
        %2725 = vmatprep.subr.mxu0 0.0
        %2726 = vmatpush1.msra.mxu0 0.0
        %2727 = vmatprep.subr.mxu0 0.0
        %2728 = vmatpush1.msra.mxu0 0.0
        %2729 = vmatprep.subr.mxu0 0.0
        %2730 = vmatpush1.msra.mxu0 0.0
        %2731 = vmatprep.subr.mxu0 0.0
        %2732 = vmatpush1.msra.mxu0 0.0
        %2733 = vmatprep.subr.mxu0 0.0
        %2734 = vmatpush1.msra.mxu0 0.0
        %2735 = vmatprep.subr.mxu0 0.0
        %2736 = vmatpush1.msra.mxu0 0.0
        %2737 = vmatprep.subr.mxu0 0.0
        %2738 = vmatpush1.msra.mxu0 0.0
        %2739 = vmatprep.subr.mxu0 0.0
        %2740 = vmatpush1.msra.mxu0 0.0
        %2741 = vmatprep.subr.mxu0 0.0
        %2742 = vmatpush1.msra.mxu0 0.0
        %2743 = vmatprep.subr.mxu0 0.0
        %2744 = vmatpush1.msra.mxu0 0.0
        %2745 = vmatprep.subr.mxu0 0.0
        %2746 = vmatpush1.msra.mxu0 0.0
        %2747 = vmatprep.subr.mxu0 0.0
        %2748 = vmatpush1.msra.mxu0 0.0
        %2749 = vmatprep.subr.mxu0 0.0
        %2750 = vmatpush1.msra.mxu0 0.0
        %2751 = vmatprep.subr.mxu0 0.0
        %2752 = vmatpush1.msra.mxu0 0.0
        %2753 = vmatprep.subr.mxu0 0.0
        %2754 = vmatpush1.msra.mxu0 0.0
        %2755 = vmatprep.mubr.f32.mxu0 0.0
        %v2756 = vand.u32 %v914, 4294901760
        %v2757 = vsub.f32 %v914, %v2756
        %2758 = vmatmul.mubr.f32.gmra.mrb[0].mxu0 %v2757
        %v2759 = vpop.f32.mrb[0].mxu0
        %v2760 = vadd.f32 %v2584, %v2759
        %v2761 = vpop.f32.mrb[0].mxu0
        %2762 = vmatprep.mubr.f32.mxu0 0.0
        %v2763 = vand.u32 %v917, 4294901760
        %v2764 = vsub.f32 %v917, %v2763
        %2765 = vmatmul.mubr.f32.gmra.mrb[0].mxu0 %v2764
        %v2766 = vpop.f32.mrb[0].mxu0
        %v2767 = vadd.f32 %v2590, %v2766
        %v2768 = vpop.f32.mrb[0].mxu0
        %2769 = vmatprep.mubr.f32.mxu0 0.0
        %v2770 = vand.u32 %v920, 4294901760
        %v2771 = vsub.f32 %v920, %v2770
        %2772 = vmatmul.mubr.f32.gmra.mrb[0].mxu0 %v2771
        %v2773 = vpop.f32.mrb[0].mxu0
        %v2774 = vadd.f32 %v2596, %v2773
        %v2775 = vpop.f32.mrb[0].mxu0
        %2776 = vmatprep.mubr.f32.mxu0 0.0
        %v2777 = vand.u32 %v923, 4294901760
        %v2778 = vsub.f32 %v923, %v2777
        %2779 = vmatmul.mubr.f32.gmra.mrb[0].mxu0 %v2778
        %v2780 = vpop.f32.mrb[0].mxu0
        %v2781 = vadd.f32 %v2602, %v2780
        %v2782 = vpop.f32.mrb[0].mxu0
        %2783 = vmatprep.mubr.f32.mxu0 0.0
        %v2784 = vand.u32 %v926, 4294901760
        %v2785 = vsub.f32 %v926, %v2784
        %2786 = vmatmul.mubr.f32.gmra.mrb[0].mxu0 %v2785
        %v2787 = vpop.f32.mrb[0].mxu0
        %v2788 = vadd.f32 %v2608, %v2787
        %v2789 = vpop.f32.mrb[0].mxu0
        %2790 = vmatprep.mubr.f32.mxu0 0.0
        %v2791 = vand.u32 %v929, 4294901760
        %v2792 = vsub.f32 %v929, %v2791
        %2793 = vmatmul.mubr.f32.gmra.mrb[0].mxu0 %v2792
        %v2794 = vpop.f32.mrb[0].mxu0
        %v2795 = vadd.f32 %v2614, %v2794
        %v2796 = vpop.f32.mrb[0].mxu0
        %2797 = vmatprep.mubr.f32.mxu0 0.0
        %v2798 = vand.u32 %v932, 4294901760
        %v2799 = vsub.f32 %v932, %v2798
        %2800 = vmatmul.mubr.f32.gmra.mrb[0].mxu0 %v2799
        %v2801 = vpop.f32.mrb[0].mxu0
        %v2802 = vadd.f32 %v2620, %v2801
        %v2803 = vpop.f32.mrb[0].mxu0
        %2804 = vmatprep.mubr.f32.mxu0 0.0
        %v2805 = vand.u32 %v935, 4294901760
        %v2806 = vsub.f32 %v935, %v2805
        %2807 = vmatmul.mubr.f32.gmra.mrb[0].mxu0 %v2806
        %v2808 = vpop.f32.mrb[0].mxu0
        %v2809 = vadd.f32 %v2626, %v2808
        %v2810 = vpop.f32.mrb[0].mxu0
        %2811 = vmatprep.mubr.f32.mxu0 0.0
        %v2812 = vand.u32 %v938, 4294901760
        %v2813 = vsub.f32 %v938, %v2812
        %2814 = vmatmul.mubr.f32.gmra.mrb[0].mxu0 %v2813
        %v2815 = vpop.f32.mrb[0].mxu0
        %v2816 = vadd.f32 %v2632, %v2815
        %v2817 = vpop.f32.mrb[0].mxu0
        %2818 = vmatprep.mubr.f32.mxu0 0.0
        %v2819 = vand.u32 %v941, 4294901760
        %v2820 = vsub.f32 %v941, %v2819
        %2821 = vmatmul.mubr.f32.gmra.mrb[0].mxu0 %v2820
        %v2822 = vpop.f32.mrb[0].mxu0
        %v2823 = vadd.f32 %v2638, %v2822
        %v2824 = vpop.f32.mrb[0].mxu0
        %2825 = vmatprep.mubr.f32.mxu0 0.0
        %v2826 = vand.u32 %v944, 4294901760
        %v2827 = vsub.f32 %v944, %v2826
        %2828 = vmatmul.mubr.f32.gmra.mrb[0].mxu0 %v2827
        %v2829 = vpop.f32.mrb[0].mxu0
        %v2830 = vadd.f32 %v2644, %v2829
        %v2831 = vpop.f32.mrb[0].mxu0
        %2832 = vmatprep.mubr.f32.mxu0 0.0
        %v2833 = vand.u32 %v947, 4294901760
        %v2834 = vsub.f32 %v947, %v2833
        %2835 = vmatmul.mubr.f32.gmra.mrb[0].mxu0 %v2834
        %v2836 = vpop.f32.mrb[0].mxu0
        %v2837 = vadd.f32 %v2650, %v2836
        %v2838 = vpop.f32.mrb[0].mxu0
        %2839 = vmatprep.mubr.f32.mxu0 0.0
        %v2840 = vand.u32 %v950, 4294901760
        %v2841 = vsub.f32 %v950, %v2840
        %2842 = vmatmul.mubr.f32.gmra.mrb[0].mxu0 %v2841
        %v2843 = vpop.f32.mrb[0].mxu0
        %v2844 = vadd.f32 %v2656, %v2843
        %v2845 = vpop.f32.mrb[0].mxu0
        %2846 = vmatprep.mubr.f32.mxu0 0.0
        %v2847 = vand.u32 %v953, 4294901760
        %v2848 = vsub.f32 %v953, %v2847
        %2849 = vmatmul.mubr.f32.gmra.mrb[0].mxu0 %v2848
        %v2850 = vpop.f32.mrb[0].mxu0
        %v2851 = vadd.f32 %v2662, %v2850
        %v2852 = vpop.f32.mrb[0].mxu0
        %2853 = vmatprep.mubr.f32.mxu0 0.0
        %v2854 = vand.u32 %v956, 4294901760
        %v2855 = vsub.f32 %v956, %v2854
        %2856 = vmatmul.mubr.f32.gmra.mrb[0].mxu0 %v2855
        %v2857 = vpop.f32.mrb[0].mxu0
        %v2858 = vadd.f32 %v2668, %v2857
        %v2859 = vpop.f32.mrb[0].mxu0
        %2860 = vmatprep.mubr.f32.mxu0 0.0
        %v2861 = vand.u32 %v959, 4294901760
        %v2862 = vsub.f32 %v959, %v2861
        %2863 = vmatmul.mubr.f32.gmra.mrb[0].mxu0 %v2862
        %v2864 = vpop.f32.mrb[0].mxu0
        %v2865 = vadd.f32 %v2674, %v2864
        %v2866 = vpop.f32.mrb[0].mxu0
        %2867 = vmatprep.mubr.f32.mxu0 0.0
        %v2868 = vand.u32 %v962, 4294901760
        %v2869 = vsub.f32 %v962, %v2868
        %2870 = vmatmul.mubr.f32.gmra.mrb[0].mxu0 %v2869
        %v2871 = vpop.f32.mrb[0].mxu0
        %v2872 = vadd.f32 %v2680, %v2871
        %v2873 = vpop.f32.mrb[0].mxu0
        %2874 = vmatprep.mubr.f32.mxu0 0.0
        %v2875 = vand.u32 %v965, 4294901760
        %v2876 = vsub.f32 %v965, %v2875
        %2877 = vmatmul.mubr.f32.gmra.mrb[0].mxu0 %v2876
        %v2878 = vpop.f32.mrb[0].mxu0
        %v2879 = vadd.f32 %v2686, %v2878
        %v2880 = vpop.f32.mrb[0].mxu0
        %2881 = vdwg.mxu0
        %2882 = vmatprep.subr.mxu0 0.0
        %v2883 = vand.u32 %v850, 4294901760
        %2884 = vmatpush1.msra.mxu0 %v2883
        %2885 = vmatprep.subr.mxu0 0.0
        %2886 = vmatpush1.msra.mxu0 0.0
        %2887 = vmatprep.subr.mxu0 0.0
        %2888 = vmatpush1.msra.mxu0 0.0
        %2889 = vmatprep.subr.mxu0 0.0
        %2890 = vmatpush1.msra.mxu0 0.0
        %2891 = vmatprep.subr.mxu0 0.0
        %2892 = vmatpush1.msra.mxu0 0.0
        %2893 = vmatprep.subr.mxu0 0.0
        %2894 = vmatpush1.msra.mxu0 0.0
        %2895 = vmatprep.subr.mxu0 0.0
        %2896 = vmatpush1.msra.mxu0 0.0
        %2897 = vmatprep.subr.mxu0 0.0
        %2898 = vmatpush1.msra.mxu0 0.0
        %2899 = vmatprep.subr.mxu0 0.0
        %2900 = vmatpush1.msra.mxu0 0.0
        %2901 = vmatprep.subr.mxu0 0.0
        %2902 = vmatpush1.msra.mxu0 0.0
        %2903 = vmatprep.subr.mxu0 0.0
        %2904 = vmatpush1.msra.mxu0 0.0
        %2905 = vmatprep.subr.mxu0 0.0
        %2906 = vmatpush1.msra.mxu0 0.0
        %2907 = vmatprep.subr.mxu0 0.0
        %2908 = vmatpush1.msra.mxu0 0.0
        %2909 = vmatprep.subr.mxu0 0.0
        %2910 = vmatpush1.msra.mxu0 0.0
        %2911 = vmatprep.subr.mxu0 0.0
        %2912 = vmatpush1.msra.mxu0 0.0
        %2913 = vmatprep.subr.mxu0 0.0
        %2914 = vmatpush1.msra.mxu0 0.0
        %2915 = vmatprep.subr.mxu0 0.0
        %2916 = vmatpush1.msra.mxu0 0.0
        %2917 = vmatprep.subr.mxu0 0.0
        %2918 = vmatpush1.msra.mxu0 0.0
        %2919 = vmatprep.subr.mxu0 0.0
        %2920 = vmatpush1.msra.mxu0 0.0
        %2921 = vmatprep.subr.mxu0 0.0
        %2922 = vmatpush1.msra.mxu0 0.0
        %2923 = vmatprep.subr.mxu0 0.0
        %2924 = vmatpush1.msra.mxu0 0.0
        %2925 = vmatprep.subr.mxu0 0.0
        %2926 = vmatpush1.msra.mxu0 0.0
        %2927 = vmatprep.subr.mxu0 0.0
        %2928 = vmatpush1.msra.mxu0 0.0
        %2929 = vmatprep.subr.mxu0 0.0
        %2930 = vmatpush1.msra.mxu0 0.0
        %2931 = vmatprep.subr.mxu0 0.0
        %2932 = vmatpush1.msra.mxu0 0.0
        %2933 = vmatprep.subr.mxu0 0.0
        %2934 = vmatpush1.msra.mxu0 0.0
        %2935 = vmatprep.subr.mxu0 0.0
        %2936 = vmatpush1.msra.mxu0 0.0
        %2937 = vmatprep.subr.mxu0 0.0
        %2938 = vmatpush1.msra.mxu0 0.0
        %2939 = vmatprep.subr.mxu0 0.0
        %2940 = vmatpush1.msra.mxu0 0.0
        %2941 = vmatprep.subr.mxu0 0.0
        %2942 = vmatpush1.msra.mxu0 0.0
        %2943 = vmatprep.subr.mxu0 0.0
        %2944 = vmatpush1.msra.mxu0 0.0
        %2945 = vmatprep.subr.mxu0 0.0
        %2946 = vmatpush1.msra.mxu0 0.0
        %2947 = vmatprep.mubr.f32.mxu0 0.0
        %v2948 = vand.u32 %v914, 4294901760
        %v2949 = vsub.f32 %v914, %v2948
        %v2950 = vand.u32 %v2949, 4294901760
        %2951 = vmatmul.mubr.f32.gmra.mrb[0].mxu0 %v2950
        %v2952 = vpop.f32.mrb[0].mxu0
        %v2953 = vadd.f32 %v2760, %v2952
        %v2954 = vpop.f32.mrb[0].mxu0
        %2955 = vmatprep.mubr.f32.mxu0 0.0
        %v2956 = vand.u32 %v917, 4294901760
        %v2957 = vsub.f32 %v917, %v2956
        %v2958 = vand.u32 %v2957, 4294901760
        %2959 = vmatmul.mubr.f32.gmra.mrb[0].mxu0 %v2958
        %v2960 = vpop.f32.mrb[0].mxu0
        %v2961 = vadd.f32 %v2767, %v2960
        %v2962 = vpop.f32.mrb[0].mxu0
        %2963 = vmatprep.mubr.f32.mxu0 0.0
        %v2964 = vand.u32 %v920, 4294901760
        %v2965 = vsub.f32 %v920, %v2964
        %v2966 = vand.u32 %v2965, 4294901760
        %2967 = vmatmul.mubr.f32.gmra.mrb[0].mxu0 %v2966
        %v2968 = vpop.f32.mrb[0].mxu0
        %v2969 = vadd.f32 %v2774, %v2968
        %v2970 = vpop.f32.mrb[0].mxu0
        %2971 = vmatprep.mubr.f32.mxu0 0.0
        %v2972 = vand.u32 %v923, 4294901760
        %v2973 = vsub.f32 %v923, %v2972
        %v2974 = vand.u32 %v2973, 4294901760
        %2975 = vmatmul.mubr.f32.gmra.mrb[0].mxu0 %v2974
        %v2976 = vpop.f32.mrb[0].mxu0
        %v2977 = vadd.f32 %v2781, %v2976
        %v2978 = vpop.f32.mrb[0].mxu0
        %2979 = vmatprep.mubr.f32.mxu0 0.0
        %v2980 = vand.u32 %v926, 4294901760
        %v2981 = vsub.f32 %v926, %v2980
        %v2982 = vand.u32 %v2981, 4294901760
        %2983 = vmatmul.mubr.f32.gmra.mrb[0].mxu0 %v2982
        %v2984 = vpop.f32.mrb[0].mxu0
        %v2985 = vadd.f32 %v2788, %v2984
        %v2986 = vpop.f32.mrb[0].mxu0
        %2987 = vmatprep.mubr.f32.mxu0 0.0
        %v2988 = vand.u32 %v929, 4294901760
        %v2989 = vsub.f32 %v929, %v2988
        %v2990 = vand.u32 %v2989, 4294901760
        %2991 = vmatmul.mubr.f32.gmra.mrb[0].mxu0 %v2990
        %v2992 = vpop.f32.mrb[0].mxu0
        %v2993 = vadd.f32 %v2795, %v2992
        %v2994 = vpop.f32.mrb[0].mxu0
        %2995 = vmatprep.mubr.f32.mxu0 0.0
        %v2996 = vand.u32 %v932, 4294901760
        %v2997 = vsub.f32 %v932, %v2996
        %v2998 = vand.u32 %v2997, 4294901760
        %2999 = vmatmul.mubr.f32.gmra.mrb[0].mxu0 %v2998
        %v3000 = vpop.f32.mrb[0].mxu0
        %v3001 = vadd.f32 %v2802, %v3000
        %v3002 = vpop.f32.mrb[0].mxu0
        %3003 = vmatprep.mubr.f32.mxu0 0.0
        %v3004 = vand.u32 %v935, 4294901760
        %v3005 = vsub.f32 %v935, %v3004
        %v3006 = vand.u32 %v3005, 4294901760
        %3007 = vmatmul.mubr.f32.gmra.mrb[0].mxu0 %v3006
        %v3008 = vpop.f32.mrb[0].mxu0
        %v3009 = vadd.f32 %v2809, %v3008
        %v3010 = vpop.f32.mrb[0].mxu0
        %3011 = vmatprep.mubr.f32.mxu0 0.0
        %v3012 = vand.u32 %v938, 4294901760
        %v3013 = vsub.f32 %v938, %v3012
        %v3014 = vand.u32 %v3013, 4294901760
        %3015 = vmatmul.mubr.f32.gmra.mrb[0].mxu0 %v3014
        %v3016 = vpop.f32.mrb[0].mxu0
        %v3017 = vadd.f32 %v2816, %v3016
        %v3018 = vpop.f32.mrb[0].mxu0
        %3019 = vmatprep.mubr.f32.mxu0 0.0
        %v3020 = vand.u32 %v941, 4294901760
        %v3021 = vsub.f32 %v941, %v3020
        %v3022 = vand.u32 %v3021, 4294901760
        %3023 = vmatmul.mubr.f32.gmra.mrb[0].mxu0 %v3022
        %v3024 = vpop.f32.mrb[0].mxu0
        %v3025 = vadd.f32 %v2823, %v3024
        %v3026 = vpop.f32.mrb[0].mxu0
        %3027 = vmatprep.mubr.f32.mxu0 0.0
        %v3028 = vand.u32 %v944, 4294901760
        %v3029 = vsub.f32 %v944, %v3028
        %v3030 = vand.u32 %v3029, 4294901760
        %3031 = vmatmul.mubr.f32.gmra.mrb[0].mxu0 %v3030
        %v3032 = vpop.f32.mrb[0].mxu0
        %v3033 = vadd.f32 %v2830, %v3032
        %v3034 = vpop.f32.mrb[0].mxu0
        %3035 = vmatprep.mubr.f32.mxu0 0.0
        %v3036 = vand.u32 %v947, 4294901760
        %v3037 = vsub.f32 %v947, %v3036
        %v3038 = vand.u32 %v3037, 4294901760
        %3039 = vmatmul.mubr.f32.gmra.mrb[0].mxu0 %v3038
        %v3040 = vpop.f32.mrb[0].mxu0
        %v3041 = vadd.f32 %v2837, %v3040
        %v3042 = vpop.f32.mrb[0].mxu0
        %3043 = vmatprep.mubr.f32.mxu0 0.0
        %v3044 = vand.u32 %v950, 4294901760
        %v3045 = vsub.f32 %v950, %v3044
        %v3046 = vand.u32 %v3045, 4294901760
        %3047 = vmatmul.mubr.f32.gmra.mrb[0].mxu0 %v3046
        %v3048 = vpop.f32.mrb[0].mxu0
        %v3049 = vadd.f32 %v2844, %v3048
        %v3050 = vpop.f32.mrb[0].mxu0
        %3051 = vmatprep.mubr.f32.mxu0 0.0
        %v3052 = vand.u32 %v953, 4294901760
        %v3053 = vsub.f32 %v953, %v3052
        %v3054 = vand.u32 %v3053, 4294901760
        %3055 = vmatmul.mubr.f32.gmra.mrb[0].mxu0 %v3054
        %v3056 = vpop.f32.mrb[0].mxu0
        %v3057 = vadd.f32 %v2851, %v3056
        %v3058 = vpop.f32.mrb[0].mxu0
        %3059 = vmatprep.mubr.f32.mxu0 0.0
        %v3060 = vand.u32 %v956, 4294901760
        %v3061 = vsub.f32 %v956, %v3060
        %v3062 = vand.u32 %v3061, 4294901760
        %3063 = vmatmul.mubr.f32.gmra.mrb[0].mxu0 %v3062
        %v3064 = vpop.f32.mrb[0].mxu0
        %v3065 = vadd.f32 %v2858, %v3064
        %v3066 = vpop.f32.mrb[0].mxu0
        %3067 = vmatprep.mubr.f32.mxu0 0.0
        %v3068 = vand.u32 %v959, 4294901760
        %v3069 = vsub.f32 %v959, %v3068
        %v3070 = vand.u32 %v3069, 4294901760
        %3071 = vmatmul.mubr.f32.gmra.mrb[0].mxu0 %v3070
        %v3072 = vpop.f32.mrb[0].mxu0
        %v3073 = vadd.f32 %v2865, %v3072
        %v3074 = vpop.f32.mrb[0].mxu0
        %3075 = vmatprep.mubr.f32.mxu0 0.0
        %v3076 = vand.u32 %v962, 4294901760
        %v3077 = vsub.f32 %v962, %v3076
        %v3078 = vand.u32 %v3077, 4294901760
        %3079 = vmatmul.mubr.f32.gmra.mrb[0].mxu0 %v3078
        %v3080 = vpop.f32.mrb[0].mxu0
        %v3081 = vadd.f32 %v2872, %v3080
        %v3082 = vpop.f32.mrb[0].mxu0
        %3083 = vmatprep.mubr.f32.mxu0 0.0
        %v3084 = vand.u32 %v965, 4294901760
        %v3085 = vsub.f32 %v965, %v3084
        %v3086 = vand.u32 %v3085, 4294901760
        %3087 = vmatmul.mubr.f32.gmra.mrb[0].mxu0 %v3086
        %v3088 = vpop.f32.mrb[0].mxu0
        %v3089 = vadd.f32 %v2879, %v3088
        %v3090 = vpop.f32.mrb[0].mxu0
        %3091 = vdwg.mxu0
        %3092 = vmatprep.subr.mxu0 0.0
        %v3093 = vand.u32 %v850, 4294901760
        %v3094 = vsub.f32 %v850, %v3093
        %v3095 = vand.u32 %v3094, 4294901760
        %3096 = vmatpush1.msra.mxu0 %v3095
        %3097 = vmatprep.subr.mxu0 0.0
        %3098 = vmatpush1.msra.mxu0 0.0
        %3099 = vmatprep.subr.mxu0 0.0
        %3100 = vmatpush1.msra.mxu0 0.0
        %3101 = vmatprep.subr.mxu0 0.0
        %3102 = vmatpush1.msra.mxu0 0.0
        %3103 = vmatprep.subr.mxu0 0.0
        %3104 = vmatpush1.msra.mxu0 0.0
        %3105 = vmatprep.subr.mxu0 0.0
        %3106 = vmatpush1.msra.mxu0 0.0
        %3107 = vmatprep.subr.mxu0 0.0
        %3108 = vmatpush1.msra.mxu0 0.0
        %3109 = vmatprep.subr.mxu0 0.0
        %3110 = vmatpush1.msra.mxu0 0.0
        %3111 = vmatprep.subr.mxu0 0.0
        %3112 = vmatpush1.msra.mxu0 0.0
        %3113 = vmatprep.subr.mxu0 0.0
        %3114 = vmatpush1.msra.mxu0 0.0
        %3115 = vmatprep.subr.mxu0 0.0
        %3116 = vmatpush1.msra.mxu0 0.0
        %3117 = vmatprep.subr.mxu0 0.0
        %3118 = vmatpush1.msra.mxu0 0.0
        %3119 = vmatprep.subr.mxu0 0.0
        %3120 = vmatpush1.msra.mxu0 0.0
        %3121 = vmatprep.subr.mxu0 0.0
        %3122 = vmatpush1.msra.mxu0 0.0
        %3123 = vmatprep.subr.mxu0 0.0
        %3124 = vmatpush1.msra.mxu0 0.0
        %3125 = vmatprep.subr.mxu0 0.0
        %3126 = vmatpush1.msra.mxu0 0.0
        %3127 = vmatprep.subr.mxu0 0.0
        %3128 = vmatpush1.msra.mxu0 0.0
        %3129 = vmatprep.subr.mxu0 0.0
        %3130 = vmatpush1.msra.mxu0 0.0
        %3131 = vmatprep.subr.mxu0 0.0
        %3132 = vmatpush1.msra.mxu0 0.0
        %3133 = vmatprep.subr.mxu0 0.0
        %3134 = vmatpush1.msra.mxu0 0.0
        %3135 = vmatprep.subr.mxu0 0.0
        %3136 = vmatpush1.msra.mxu0 0.0
        %3137 = vmatprep.subr.mxu0 0.0
        %3138 = vmatpush1.msra.mxu0 0.0
        %3139 = vmatprep.subr.mxu0 0.0
        %3140 = vmatpush1.msra.mxu0 0.0
        %3141 = vmatprep.subr.mxu0 0.0
        %3142 = vmatpush1.msra.mxu0 0.0
        %3143 = vmatprep.subr.mxu0 0.0
        %3144 = vmatpush1.msra.mxu0 0.0
        %3145 = vmatprep.subr.mxu0 0.0
        %3146 = vmatpush1.msra.mxu0 0.0
        %3147 = vmatprep.subr.mxu0 0.0
        %3148 = vmatpush1.msra.mxu0 0.0
        %3149 = vmatprep.subr.mxu0 0.0
        %3150 = vmatpush1.msra.mxu0 0.0
        %3151 = vmatprep.subr.mxu0 0.0
        %3152 = vmatpush1.msra.mxu0 0.0
        %3153 = vmatprep.subr.mxu0 0.0
        %3154 = vmatpush1.msra.mxu0 0.0
        %3155 = vmatprep.subr.mxu0 0.0
        %3156 = vmatpush1.msra.mxu0 0.0
        %3157 = vmatprep.subr.mxu0 0.0
        %3158 = vmatpush1.msra.mxu0 0.0
        %3159 = vmatprep.mubr.f32.mxu0 0.0
        %v3160 = vand.u32 %v914, 4294901760
        %3161 = vmatmul.mubr.f32.gmra.mrb[0].mxu0 %v3160
        %v3162 = vpop.f32.mrb[0].mxu0
        %v3163 = vadd.f32 %v2953, %v3162
        %v3164 = vpop.f32.mrb[0].mxu0
        %3165 = vmatprep.mubr.f32.mxu0 0.0
        %v3166 = vand.u32 %v917, 4294901760
        %3167 = vmatmul.mubr.f32.gmra.mrb[0].mxu0 %v3166
        %v3168 = vpop.f32.mrb[0].mxu0
        %v3169 = vadd.f32 %v2961, %v3168
        %v3170 = vpop.f32.mrb[0].mxu0
        %3171 = vmatprep.mubr.f32.mxu0 0.0
        %v3172 = vand.u32 %v920, 4294901760
        %3173 = vmatmul.mubr.f32.gmra.mrb[0].mxu0 %v3172
        %v3174 = vpop.f32.mrb[0].mxu0
        %v3175 = vadd.f32 %v2969, %v3174
        %v3176 = vpop.f32.mrb[0].mxu0
        %3177 = vmatprep.mubr.f32.mxu0 0.0
        %v3178 = vand.u32 %v923, 4294901760
        %3179 = vmatmul.mubr.f32.gmra.mrb[0].mxu0 %v3178
        %v3180 = vpop.f32.mrb[0].mxu0
        %v3181 = vadd.f32 %v2977, %v3180
        %v3182 = vpop.f32.mrb[0].mxu0
        %3183 = vmatprep.mubr.f32.mxu0 0.0
        %v3184 = vand.u32 %v926, 4294901760
        %3185 = vmatmul.mubr.f32.gmra.mrb[0].mxu0 %v3184
        %v3186 = vpop.f32.mrb[0].mxu0
        %v3187 = vadd.f32 %v2985, %v3186
        %v3188 = vpop.f32.mrb[0].mxu0
        %3189 = vmatprep.mubr.f32.mxu0 0.0
        %v3190 = vand.u32 %v929, 4294901760
        %3191 = vmatmul.mubr.f32.gmra.mrb[0].mxu0 %v3190
        %v3192 = vpop.f32.mrb[0].mxu0
        %v3193 = vadd.f32 %v2993, %v3192
        %v3194 = vpop.f32.mrb[0].mxu0
        %3195 = vmatprep.mubr.f32.mxu0 0.0
        %v3196 = vand.u32 %v932, 4294901760
        %3197 = vmatmul.mubr.f32.gmra.mrb[0].mxu0 %v3196
        %v3198 = vpop.f32.mrb[0].mxu0
        %v3199 = vadd.f32 %v3001, %v3198
        %v3200 = vpop.f32.mrb[0].mxu0
        %3201 = vmatprep.mubr.f32.mxu0 0.0
        %v3202 = vand.u32 %v935, 4294901760
        %3203 = vmatmul.mubr.f32.gmra.mrb[0].mxu0 %v3202
        %v3204 = vpop.f32.mrb[0].mxu0
        %v3205 = vadd.f32 %v3009, %v3204
        %v3206 = vpop.f32.mrb[0].mxu0
        %3207 = vmatprep.mubr.f32.mxu0 0.0
        %v3208 = vand.u32 %v938, 4294901760
        %3209 = vmatmul.mubr.f32.gmra.mrb[0].mxu0 %v3208
        %v3210 = vpop.f32.mrb[0].mxu0
        %v3211 = vadd.f32 %v3017, %v3210
        %v3212 = vpop.f32.mrb[0].mxu0
        %3213 = vmatprep.mubr.f32.mxu0 0.0
        %v3214 = vand.u32 %v941, 4294901760
        %3215 = vmatmul.mubr.f32.gmra.mrb[0].mxu0 %v3214
        %v3216 = vpop.f32.mrb[0].mxu0
        %v3217 = vadd.f32 %v3025, %v3216
        %v3218 = vpop.f32.mrb[0].mxu0
        %3219 = vmatprep.mubr.f32.mxu0 0.0
        %v3220 = vand.u32 %v944, 4294901760
        %3221 = vmatmul.mubr.f32.gmra.mrb[0].mxu0 %v3220
        %v3222 = vpop.f32.mrb[0].mxu0
        %v3223 = vadd.f32 %v3033, %v3222
        %v3224 = vpop.f32.mrb[0].mxu0
        %3225 = vmatprep.mubr.f32.mxu0 0.0
        %v3226 = vand.u32 %v947, 4294901760
        %3227 = vmatmul.mubr.f32.gmra.mrb[0].mxu0 %v3226
        %v3228 = vpop.f32.mrb[0].mxu0
        %v3229 = vadd.f32 %v3041, %v3228
        %v3230 = vpop.f32.mrb[0].mxu0
        %3231 = vmatprep.mubr.f32.mxu0 0.0
        %v3232 = vand.u32 %v950, 4294901760
        %3233 = vmatmul.mubr.f32.gmra.mrb[0].mxu0 %v3232
        %v3234 = vpop.f32.mrb[0].mxu0
        %v3235 = vadd.f32 %v3049, %v3234
        %v3236 = vpop.f32.mrb[0].mxu0
        %3237 = vmatprep.mubr.f32.mxu0 0.0
        %v3238 = vand.u32 %v953, 4294901760
        %3239 = vmatmul.mubr.f32.gmra.mrb[0].mxu0 %v3238
        %v3240 = vpop.f32.mrb[0].mxu0
        %v3241 = vadd.f32 %v3057, %v3240
        %v3242 = vpop.f32.mrb[0].mxu0
        %3243 = vmatprep.mubr.f32.mxu0 0.0
        %v3244 = vand.u32 %v956, 4294901760
        %3245 = vmatmul.mubr.f32.gmra.mrb[0].mxu0 %v3244
        %v3246 = vpop.f32.mrb[0].mxu0
        %v3247 = vadd.f32 %v3065, %v3246
        %v3248 = vpop.f32.mrb[0].mxu0
        %3249 = vmatprep.mubr.f32.mxu0 0.0
        %v3250 = vand.u32 %v959, 4294901760
        %3251 = vmatmul.mubr.f32.gmra.mrb[0].mxu0 %v3250
        %v3252 = vpop.f32.mrb[0].mxu0
        %v3253 = vadd.f32 %v3073, %v3252
        %v3254 = vpop.f32.mrb[0].mxu0
        %3255 = vmatprep.mubr.f32.mxu0 0.0
        %v3256 = vand.u32 %v962, 4294901760
        %3257 = vmatmul.mubr.f32.gmra.mrb[0].mxu0 %v3256
        %v3258 = vpop.f32.mrb[0].mxu0
        %v3259 = vadd.f32 %v3081, %v3258
        %v3260 = vpop.f32.mrb[0].mxu0
        %3261 = vmatprep.mubr.f32.mxu0 0.0
        %v3262 = vand.u32 %v965, 4294901760
        %3263 = vmatmul.mubr.f32.gmra.mrb[0].mxu0 %v3262
        %v3264 = vpop.f32.mrb[0].mxu0
        %v3265 = vadd.f32 %v3089, %v3264
        %v3266 = vpop.f32.mrb[0].mxu0
        %3267 = vdwg.mxu0
        %3268 = vmatprep.subr.mxu0 0.0
        %v3269 = vand.u32 %v850, 4294901760
        %3270 = vmatpush1.msra.mxu0 %v3269
        %3271 = vmatprep.subr.mxu0 0.0
        %3272 = vmatpush1.msra.mxu0 0.0
        %3273 = vmatprep.subr.mxu0 0.0
        %3274 = vmatpush1.msra.mxu0 0.0
        %3275 = vmatprep.subr.mxu0 0.0
        %3276 = vmatpush1.msra.mxu0 0.0
        %3277 = vmatprep.subr.mxu0 0.0
        %3278 = vmatpush1.msra.mxu0 0.0
        %3279 = vmatprep.subr.mxu0 0.0
        %3280 = vmatpush1.msra.mxu0 0.0
        %3281 = vmatprep.subr.mxu0 0.0
        %3282 = vmatpush1.msra.mxu0 0.0
        %3283 = vmatprep.subr.mxu0 0.0
        %3284 = vmatpush1.msra.mxu0 0.0
        %3285 = vmatprep.subr.mxu0 0.0
        %3286 = vmatpush1.msra.mxu0 0.0
        %3287 = vmatprep.subr.mxu0 0.0
        %3288 = vmatpush1.msra.mxu0 0.0
        %3289 = vmatprep.subr.mxu0 0.0
        %3290 = vmatpush1.msra.mxu0 0.0
        %3291 = vmatprep.subr.mxu0 0.0
        %3292 = vmatpush1.msra.mxu0 0.0
        %3293 = vmatprep.subr.mxu0 0.0
        %3294 = vmatpush1.msra.mxu0 0.0
        %3295 = vmatprep.subr.mxu0 0.0
        %3296 = vmatpush1.msra.mxu0 0.0
        %3297 = vmatprep.subr.mxu0 0.0
        %3298 = vmatpush1.msra.mxu0 0.0
        %3299 = vmatprep.subr.mxu0 0.0
        %3300 = vmatpush1.msra.mxu0 0.0
        %3301 = vmatprep.subr.mxu0 0.0
        %3302 = vmatpush1.msra.mxu0 0.0
        %3303 = vmatprep.subr.mxu0 0.0
        %3304 = vmatpush1.msra.mxu0 0.0
        %3305 = vmatprep.subr.mxu0 0.0
        %3306 = vmatpush1.msra.mxu0 0.0
        %3307 = vmatprep.subr.mxu0 0.0
        %3308 = vmatpush1.msra.mxu0 0.0
        %3309 = vmatprep.subr.mxu0 0.0
        %3310 = vmatpush1.msra.mxu0 0.0
        %3311 = vmatprep.subr.mxu0 0.0
        %3312 = vmatpush1.msra.mxu0 0.0
        %3313 = vmatprep.subr.mxu0 0.0
        %3314 = vmatpush1.msra.mxu0 0.0
        %3315 = vmatprep.subr.mxu0 0.0
        %3316 = vmatpush1.msra.mxu0 0.0
        %3317 = vmatprep.subr.mxu0 0.0
        %3318 = vmatpush1.msra.mxu0 0.0
        %3319 = vmatprep.subr.mxu0 0.0
        %3320 = vmatpush1.msra.mxu0 0.0
        %3321 = vmatprep.subr.mxu0 0.0
        %3322 = vmatpush1.msra.mxu0 0.0
        %3323 = vmatprep.subr.mxu0 0.0
        %3324 = vmatpush1.msra.mxu0 0.0
        %3325 = vmatprep.subr.mxu0 0.0
        %3326 = vmatpush1.msra.mxu0 0.0
        %3327 = vmatprep.subr.mxu0 0.0
        %3328 = vmatpush1.msra.mxu0 0.0
        %3329 = vmatprep.subr.mxu0 0.0
        %3330 = vmatpush1.msra.mxu0 0.0
        %3331 = vmatprep.subr.mxu0 0.0
        %3332 = vmatpush1.msra.mxu0 0.0
        %3333 = vmatprep.mubr.f32.mxu0 0.0
        %v3334 = vand.u32 %v914, 4294901760
        %3335 = vmatmul.mubr.f32.gmra.mrb[0].mxu0 %v3334
        %v3336 = vpop.f32.mrb[0].mxu0
        %v3337 = vadd.f32 %v3163, %v3336
        %v3338 = vpop.f32.mrb[0].mxu0
        %3339 = vmatprep.mubr.f32.mxu0 0.0
        %v3340 = vand.u32 %v917, 4294901760
        %3341 = vmatmul.mubr.f32.gmra.mrb[0].mxu0 %v3340
        %v3342 = vpop.f32.mrb[0].mxu0
        %v3343 = vadd.f32 %v3169, %v3342
        %v3344 = vpop.f32.mrb[0].mxu0
        %3345 = vmatprep.mubr.f32.mxu0 0.0
        %v3346 = vand.u32 %v920, 4294901760
        %3347 = vmatmul.mubr.f32.gmra.mrb[0].mxu0 %v3346
        %v3348 = vpop.f32.mrb[0].mxu0
        %v3349 = vadd.f32 %v3175, %v3348
        %v3350 = vpop.f32.mrb[0].mxu0
        %3351 = vmatprep.mubr.f32.mxu0 0.0
        %v3352 = vand.u32 %v923, 4294901760
        %3353 = vmatmul.mubr.f32.gmra.mrb[0].mxu0 %v3352
        %v3354 = vpop.f32.mrb[0].mxu0
        %v3355 = vadd.f32 %v3181, %v3354
        %v3356 = vpop.f32.mrb[0].mxu0
        %3357 = vmatprep.mubr.f32.mxu0 0.0
        %v3358 = vand.u32 %v926, 4294901760
        %3359 = vmatmul.mubr.f32.gmra.mrb[0].mxu0 %v3358
        %v3360 = vpop.f32.mrb[0].mxu0
        %v3361 = vadd.f32 %v3187, %v3360
        %v3362 = vpop.f32.mrb[0].mxu0
        %3363 = vmatprep.mubr.f32.mxu0 0.0
        %v3364 = vand.u32 %v929, 4294901760
        %3365 = vmatmul.mubr.f32.gmra.mrb[0].mxu0 %v3364
        %v3366 = vpop.f32.mrb[0].mxu0
        %v3367 = vadd.f32 %v3193, %v3366
        %v3368 = vpop.f32.mrb[0].mxu0
        %3369 = vmatprep.mubr.f32.mxu0 0.0
        %v3370 = vand.u32 %v932, 4294901760
        %3371 = vmatmul.mubr.f32.gmra.mrb[0].mxu0 %v3370
        %v3372 = vpop.f32.mrb[0].mxu0
        %v3373 = vadd.f32 %v3199, %v3372
        %v3374 = vpop.f32.mrb[0].mxu0
        %3375 = vmatprep.mubr.f32.mxu0 0.0
        %v3376 = vand.u32 %v935, 4294901760
        %3377 = vmatmul.mubr.f32.gmra.mrb[0].mxu0 %v3376
        %v3378 = vpop.f32.mrb[0].mxu0
        %v3379 = vadd.f32 %v3205, %v3378
        %v3380 = vpop.f32.mrb[0].mxu0
        %3381 = vmatprep.mubr.f32.mxu0 0.0
        %v3382 = vand.u32 %v938, 4294901760
        %3383 = vmatmul.mubr.f32.gmra.mrb[0].mxu0 %v3382
        %v3384 = vpop.f32.mrb[0].mxu0
        %v3385 = vadd.f32 %v3211, %v3384
        %v3386 = vpop.f32.mrb[0].mxu0
        %3387 = vmatprep.mubr.f32.mxu0 0.0
        %v3388 = vand.u32 %v941, 4294901760
        %3389 = vmatmul.mubr.f32.gmra.mrb[0].mxu0 %v3388
        %v3390 = vpop.f32.mrb[0].mxu0
        %v3391 = vadd.f32 %v3217, %v3390
        %v3392 = vpop.f32.mrb[0].mxu0
        %3393 = vmatprep.mubr.f32.mxu0 0.0
        %v3394 = vand.u32 %v944, 4294901760
        %3395 = vmatmul.mubr.f32.gmra.mrb[0].mxu0 %v3394
        %v3396 = vpop.f32.mrb[0].mxu0
        %v3397 = vadd.f32 %v3223, %v3396
        %v3398 = vpop.f32.mrb[0].mxu0
        %3399 = vmatprep.mubr.f32.mxu0 0.0
        %v3400 = vand.u32 %v947, 4294901760
        %3401 = vmatmul.mubr.f32.gmra.mrb[0].mxu0 %v3400
        %v3402 = vpop.f32.mrb[0].mxu0
        %v3403 = vadd.f32 %v3229, %v3402
        %v3404 = vpop.f32.mrb[0].mxu0
        %3405 = vmatprep.mubr.f32.mxu0 0.0
        %v3406 = vand.u32 %v950, 4294901760
        %3407 = vmatmul.mubr.f32.gmra.mrb[0].mxu0 %v3406
        %v3408 = vpop.f32.mrb[0].mxu0
        %v3409 = vadd.f32 %v3235, %v3408
        %v3410 = vpop.f32.mrb[0].mxu0
        %3411 = vmatprep.mubr.f32.mxu0 0.0
        %v3412 = vand.u32 %v953, 4294901760
        %3413 = vmatmul.mubr.f32.gmra.mrb[0].mxu0 %v3412
        %v3414 = vpop.f32.mrb[0].mxu0
        %v3415 = vadd.f32 %v3241, %v3414
        %v3416 = vpop.f32.mrb[0].mxu0
        %3417 = vmatprep.mubr.f32.mxu0 0.0
        %v3418 = vand.u32 %v956, 4294901760
        %3419 = vmatmul.mubr.f32.gmra.mrb[0].mxu0 %v3418
        %v3420 = vpop.f32.mrb[0].mxu0
        %v3421 = vadd.f32 %v3247, %v3420
        %v3422 = vpop.f32.mrb[0].mxu0
        %3423 = vmatprep.mubr.f32.mxu0 0.0
        %v3424 = vand.u32 %v959, 4294901760
        %3425 = vmatmul.mubr.f32.gmra.mrb[0].mxu0 %v3424
        %v3426 = vpop.f32.mrb[0].mxu0
        %v3427 = vadd.f32 %v3253, %v3426
        %v3428 = vpop.f32.mrb[0].mxu0
        %3429 = vmatprep.mubr.f32.mxu0 0.0
        %v3430 = vand.u32 %v962, 4294901760
        %3431 = vmatmul.mubr.f32.gmra.mrb[0].mxu0 %v3430
        %v3432 = vpop.f32.mrb[0].mxu0
        %v3433 = vadd.f32 %v3259, %v3432
        %v3434 = vpop.f32.mrb[0].mxu0
        %3435 = vmatprep.mubr.f32.mxu0 0.0
        %v3436 = vand.u32 %v965, 4294901760
        %3437 = vmatmul.mubr.f32.gmra.mrb[0].mxu0 %v3436
        %v3438 = vpop.f32.mrb[0].mxu0
        %v3439 = vadd.f32 %v3265, %v3438
        %v3440 = vpop.f32.mrb[0].mxu0
        %3441 = vdwg.mxu0
        %3442 = vrot.lane.b32.xlu0 %v2156, 127
        %v3443 = vpop.permute.xlu0 %3442
        %3444 = vrot.lane.b32.xlu0 %v2163, 127
        %v3445 = vpop.permute.xlu0 %3444
        %3446 = vrot.lane.b32.xlu0 %v2158, 127
        %v3447 = vpop.permute.xlu0 %3446
        %3448 = vrot.lane.b32.xlu0 %v2165, 127
        %v3449 = vpop.permute.xlu0 %3448
        %3450 = vrot.lane.b32.xlu0 %v3349, 127
        %v3451 = vpop.permute.xlu0 %3450
        %3452 = vrot.lane.b32.xlu0 %v3355, 127
        %v3453 = vpop.permute.xlu0 %3452
        %v3454 = vlaneseq
        %v3455 = vand.u32 %v3454, 127
        %vm3456 = vcmp.lt.s32.totalorder %v3455, 127
        %v3457 = vsel %vm3456, %v3447, %v3451
        %v3458 = vsel %vm3456, %v3449, %v3453
        %v3459 = vsel %vm3456, %v3443, %v3447
        %v3460 = vsel %vm3456, %v3445, %v3449
        %v3461 = vsel %vm3456, %v3451, %v3443
        %v3462 = vsel %vm3456, %v3453, %v3445
        %v3463 = vadd.f32 %v2142, %v3459
        %v3464 = vadd.f32 %v2144, %v3457
        %v3465 = vadd.f32 %v3337, %v3461
        %v3466 = vadd.f32 %v2149, %v3460
        %v3467 = vadd.f32 %v2151, %v3458
        %v3468 = vadd.f32 %v3343, %v3462
        %3469 = vrot.lane.b32.xlu0 %v2170, 126
        %v3470 = vpop.permute.xlu0 %3469
        %3471 = vrot.lane.b32.xlu0 %v2177, 126
        %v3472 = vpop.permute.xlu0 %3471
        %3473 = vrot.lane.b32.xlu0 %v2172, 126
        %v3474 = vpop.permute.xlu0 %3473
        %3475 = vrot.lane.b32.xlu0 %v2179, 126
        %v3476 = vpop.permute.xlu0 %3475
        %3477 = vrot.lane.b32.xlu0 %v3361, 126
        %v3478 = vpop.permute.xlu0 %3477
        %3479 = vrot.lane.b32.xlu0 %v3367, 126
        %v3480 = vpop.permute.xlu0 %3479
        %vm3481 = vcmp.lt.s32.totalorder %v3455, 126
        %v3482 = vsel %vm3481, %v3474, %v3478
        %v3483 = vsel %vm3481, %v3476, %v3480
        %v3484 = vsel %vm3481, %v3470, %v3474
        %v3485 = vsel %vm3481, %v3472, %v3476
        %v3486 = vsel %vm3481, %v3478, %v3470
        %v3487 = vsel %vm3481, %v3480, %v3472
        %v3488 = vadd.f32 %v3463, %v3484
        %v3489 = vadd.f32 %v3464, %v3482
        %v3490 = vadd.f32 %v3465, %v3486
        %v3491 = vadd.f32 %v3466, %v3485
        %v3492 = vadd.f32 %v3467, %v3483
        %v3493 = vadd.f32 %v3468, %v3487
        %3494 = vrot.lane.b32.xlu0 %v2184, 110
        %v3495 = vpop.permute.xlu0 %3494
        %3496 = vrot.lane.b32.xlu0 %v2191, 110
        %v3497 = vpop.permute.xlu0 %3496
        %3498 = vrot.lane.b32.xlu0 %v2186, 110
        %v3499 = vpop.permute.xlu0 %3498
        %3500 = vrot.lane.b32.xlu0 %v2193, 110
        %v3501 = vpop.permute.xlu0 %3500
        %3502 = vrot.lane.b32.xlu0 %v3373, 110
        %v3503 = vpop.permute.xlu0 %3502
        %3504 = vrot.lane.b32.xlu0 %v3379, 110
        %v3505 = vpop.permute.xlu0 %3504
        %vm3506 = vcmp.lt.s32.totalorder %v3455, 110
        %v3507 = vsel %vm3506, %v3499, %v3503
        %v3508 = vsel %vm3506, %v3501, %v3505
        %v3509 = vsel %vm3506, %v3495, %v3499
        %v3510 = vsel %vm3506, %v3497, %v3501
        %v3511 = vsel %vm3506, %v3503, %v3495
        %v3512 = vsel %vm3506, %v3505, %v3497
        %v3513 = vadd.f32 %v3488, %v3509
        %v3514 = vadd.f32 %v3489, %v3507
        %v3515 = vadd.f32 %v3490, %v3511
        %v3516 = vadd.f32 %v3491, %v3510
        %v3517 = vadd.f32 %v3492, %v3508
        %v3518 = vadd.f32 %v3493, %v3512
        %3519 = vrot.lane.b32.xlu0 %v2198, 109
        %v3520 = vpop.permute.xlu0 %3519
        %3521 = vrot.lane.b32.xlu0 %v2205, 109
        %v3522 = vpop.permute.xlu0 %3521
        %3523 = vrot.lane.b32.xlu0 %v2200, 109
        %v3524 = vpop.permute.xlu0 %3523
        %3525 = vrot.lane.b32.xlu0 %v2207, 109
        %v3526 = vpop.permute.xlu0 %3525
        %3527 = vrot.lane.b32.xlu0 %v3385, 109
        %v3528 = vpop.permute.xlu0 %3527
        %3529 = vrot.lane.b32.xlu0 %v3391, 109
        %v3530 = vpop.permute.xlu0 %3529
        %vm3531 = vcmp.lt.s32.totalorder %v3455, 109
        %v3532 = vsel %vm3531, %v3524, %v3528
        %v3533 = vsel %vm3531, %v3526, %v3530
        %v3534 = vsel %vm3531, %v3520, %v3524
        %v3535 = vsel %vm3531, %v3522, %v3526
        %v3536 = vsel %vm3531, %v3528, %v3520
        %v3537 = vsel %vm3531, %v3530, %v3522
        %v3538 = vadd.f32 %v3513, %v3534
        %v3539 = vadd.f32 %v3514, %v3532
        %v3540 = vadd.f32 %v3515, %v3536
        %v3541 = vadd.f32 %v3516, %v3535
        %v3542 = vadd.f32 %v3517, %v3533
        %v3543 = vadd.f32 %v3518, %v3537
        %3544 = vrot.lane.b32.xlu0 %v2212, 108
        %v3545 = vpop.permute.xlu0 %3544
        %3546 = vrot.lane.b32.xlu0 %v2219, 108
        %v3547 = vpop.permute.xlu0 %3546
        %3548 = vrot.lane.b32.xlu0 %v2214, 108
        %v3549 = vpop.permute.xlu0 %3548
        %3550 = vrot.lane.b32.xlu0 %v2221, 108
        %v3551 = vpop.permute.xlu0 %3550
        %3552 = vrot.lane.b32.xlu0 %v3397, 108
        %v3553 = vpop.permute.xlu0 %3552
        %3554 = vrot.lane.b32.xlu0 %v3403, 108
        %v3555 = vpop.permute.xlu0 %3554
        %vm3556 = vcmp.lt.s32.totalorder %v3455, 108
        %v3557 = vsel %vm3556, %v3549, %v3553
        %v3558 = vsel %vm3556, %v3551, %v3555
        %v3559 = vsel %vm3556, %v3545, %v3549
        %v3560 = vsel %vm3556, %v3547, %v3551
        %v3561 = vsel %vm3556, %v3553, %v3545
        %v3562 = vsel %vm3556, %v3555, %v3547
        %v3563 = vadd.f32 %v3538, %v3559
        %v3564 = vadd.f32 %v3539, %v3557
        %v3565 = vadd.f32 %v3540, %v3561
        %v3566 = vadd.f32 %v3541, %v3560
        %v3567 = vadd.f32 %v3542, %v3558
        %v3568 = vadd.f32 %v3543, %v3562
        %3569 = vrot.lane.b32.xlu0 %v2226, 92
        %v3570 = vpop.permute.xlu0 %3569
        %3571 = vrot.lane.b32.xlu0 %v2233, 92
        %v3572 = vpop.permute.xlu0 %3571
        %3573 = vrot.lane.b32.xlu0 %v2228, 92
        %v3574 = vpop.permute.xlu0 %3573
        %3575 = vrot.lane.b32.xlu0 %v2235, 92
        %v3576 = vpop.permute.xlu0 %3575
        %3577 = vrot.lane.b32.xlu0 %v3409, 92
        %v3578 = vpop.permute.xlu0 %3577
        %3579 = vrot.lane.b32.xlu0 %v3415, 92
        %v3580 = vpop.permute.xlu0 %3579
        %vm3581 = vcmp.lt.s32.totalorder %v3455, 92
        %v3582 = vsel %vm3581, %v3574, %v3578
        %v3583 = vsel %vm3581, %v3576, %v3580
        %v3584 = vsel %vm3581, %v3570, %v3574
        %v3585 = vsel %vm3581, %v3572, %v3576
        %v3586 = vsel %vm3581, %v3578, %v3570
        %v3587 = vsel %vm3581, %v3580, %v3572
        %v3588 = vadd.f32 %v3563, %v3584
        %v3589 = vadd.f32 %v3564, %v3582
        %v3590 = vadd.f32 %v3565, %v3586
        %v3591 = vadd.f32 %v3566, %v3585
        %v3592 = vadd.f32 %v3567, %v3583
        %v3593 = vadd.f32 %v3568, %v3587
        %3594 = vrot.lane.b32.xlu0 %v2240, 91
        %v3595 = vpop.permute.xlu0 %3594
        %3596 = vrot.lane.b32.xlu0 %v2247, 91
        %v3597 = vpop.permute.xlu0 %3596
        %3598 = vrot.lane.b32.xlu0 %v2242, 91
        %v3599 = vpop.permute.xlu0 %3598
        %3600 = vrot.lane.b32.xlu0 %v2249, 91
        %v3601 = vpop.permute.xlu0 %3600
        %3602 = vrot.lane.b32.xlu0 %v3421, 91
        %v3603 = vpop.permute.xlu0 %3602
        %3604 = vrot.lane.b32.xlu0 %v3427, 91
        %v3605 = vpop.permute.xlu0 %3604
        %vm3606 = vcmp.lt.s32.totalorder %v3455, 91
        %v3607 = vsel %vm3606, %v3599, %v3603
        %v3608 = vsel %vm3606, %v3601, %v3605
        %v3609 = vsel %vm3606, %v3595, %v3599
        %v3610 = vsel %vm3606, %v3597, %v3601
        %v3611 = vsel %vm3606, %v3603, %v3595
        %v3612 = vsel %vm3606, %v3605, %v3597
        %v3613 = vadd.f32 %v3588, %v3609
        %v3614 = vadd.f32 %v3589, %v3607
        %v3615 = vadd.f32 %v3590, %v3611
        %v3616 = vadd.f32 %v3591, %v3610
        %v3617 = vadd.f32 %v3592, %v3608
        %v3618 = vadd.f32 %v3593, %v3612
        %3619 = vrot.lane.b32.xlu0 %v2254, 90
        %v3620 = vpop.permute.xlu0 %3619
        %3621 = vrot.lane.b32.xlu0 %v2261, 90
        %v3622 = vpop.permute.xlu0 %3621
        %3623 = vrot.lane.b32.xlu0 %v2256, 90
        %v3624 = vpop.permute.xlu0 %3623
        %3625 = vrot.lane.b32.xlu0 %v2263, 90
        %v3626 = vpop.permute.xlu0 %3625
        %3627 = vrot.lane.b32.xlu0 %v3433, 90
        %v3628 = vpop.permute.xlu0 %3627
        %3629 = vrot.lane.b32.xlu0 %v3439, 90
        %v3630 = vpop.permute.xlu0 %3629
        %vm3631 = vcmp.lt.s32.totalorder %v3455, 90
        %v3632 = vsel %vm3631, %v3624, %v3628
        %v3633 = vsel %vm3631, %v3626, %v3630
        %v3634 = vsel %vm3631, %v3620, %v3624
        %v3635 = vsel %vm3631, %v3622, %v3626
        %v3636 = vsel %vm3631, %v3628, %v3620
        %v3637 = vsel %vm3631, %v3630, %v3622
        %v3638 = vadd.f32 %v3613, %v3634
        %v3639 = vadd.f32 %v3614, %v3632
        %v3640 = vadd.f32 %v3615, %v3636
        %v3641 = vadd.f32 %v3616, %v3635
        %v3642 = vadd.f32 %v3617, %v3633
        %v3643 = vadd.f32 %v3618, %v3637
        %3645 = vset.pattern.permute.xlu0 0
        %3646 = vperm.xlu0 %3645, %v820
        %v3647 = vpop.permute.xlu0 %3646
        %3650 = vset.pattern.permute.xlu0 0
        %3651 = vperm.xlu0 %3650, %v822
        %v3652 = vpop.permute.xlu0 %3651
        %v3654 = vmul.f32 %v3638, %v3647
        %v3655 = vmul.f32 %v3639, %v3647
        %v3656 = vmul.f32 %v3640, %v3647
        %v3657 = vmul.f32 %v3641, %v3652
        %v3658 = vmul.f32 %v3642, %v3652
        %v3659 = vmul.f32 %v3643, %v3652
        %3660 = vst [vmem:[%s163] sm:$0xff] %v3654
        %3661 = vst [vmem:[%s163 + $0x8] sm:$0xff] %v3655
        %3662 = vst [vmem:[%s163 + $0x10] sm:$0xff] %v3656
        %3663 = vst [vmem:[%s163 + $0x18] sm:$0xff] %v3657
        %3664 = vst [vmem:[%s163 + $0x20] sm:$0xff] %v3658
        %3665 = vst [vmem:[%s163 + $0x28] sm:$0xff] %v3659
        %s3666 = sand.u32 %s93, 1
        %s3667 = scalar_lea.sflag [#allocation3], %s3666
        %s3668 = sand.u32 %s93, 1
        %s3669 = smul.addr %s3668, 48
        %s3670 = scalar_lea.vmem [#allocation2], %s3669
        // Predicated region
        $region33: #{tpu_custom_call.1} parent=31 // pred_check
          %p3671 = pneg %p103
        $region34: #{tpu_custom_call.1} parent=31 // pred_check_branch
          %3673 = sbr.rel (%p3671) target = $region36
        $region35: #{tpu_custom_call.1} parent=31 // pred_region
          %s3675 = ssub.s32 768, 768
          %3676 = vsyncadd %s3667, %s3675
          %s3677 = smul.addr %s17, 6
          %s3678 = smul.addr %s3677, 128
          %s3679 = scalar_lea.hbm %s3, %s3678
          %s3680 = sshll.u32 %s3670, 4
          %s3681 = int_to_ptr.vmem [resolvable:$true] %s3680
          %3686 = dma.vmem_to_hbm [thread:$0]  %s3681, 768, %s3679, %s3667, 384, 384, 24
        $region36: #{tpu_custom_call.1} parent=31 // pred_fallthru
          _
      $region32: #{tpu_custom_call.1} parent=5 // pred_fallthru
        _
      %p3687 = scmp.le.s32.totalorder 2, %s12
      // Predicated region
      $region37: #{tpu_custom_call.1} parent=5 // pred_check
        %p3688 = pneg %p3687
      $region38: #{tpu_custom_call.1} parent=5 // pred_check_branch
        %3690 = sbr.rel (%p3688) target = $region40
      $region39: #{tpu_custom_call.1} parent=5 // pred_region
        %s3691 = ssub.s32 %s12, 2
        // Predicated region
        $region41: #{tpu_custom_call.1} parent=39 // pred_check
          %p3692 = pneg %p109
        $region42: #{tpu_custom_call.1} parent=39 // pred_check_branch
          %3694 = sbr.rel (%p3692) target = $region44
        $region43: #{tpu_custom_call.1} parent=39 // pred_region
          %s3695 = sand.u32 %s94, 1
          %s3696 = scalar_lea.sflag [#allocation3], %s3695
          %s3697 = sand.u32 %s94, 1
          %s3698 = smul.addr %s3697, 48
          %s3699 = scalar_lea.vmem [#allocation2], %s3698
          %3700 = dma.done %s3696, 768
        $region44: #{tpu_custom_call.1} parent=39 // pred_fallthru
          _
      $region40: #{tpu_custom_call.1} parent=5 // pred_fallthru
        _
    $region6: #{tpu_custom_call.1} parent=1 // loop_footer
      %s16 = sadd.s32 1, %s12
    $region7: #{tpu_custom_call.1} parent=1 // loop_footer_branch
      %11 = sbr.rel target = $region3
    $region8: #{tpu_custom_call.1} parent=1 // loop_exit
      _
    %3701 = vsyncpa [#allocation3], 1
    %s3702 = scalar_lea.sflag [#allocation3], 1
    %3703 = vsyncpa %s3702, 1

</llo_original>
